<compile_context>
chip_gen: v7x
topology: tpu7x:2x2x1
jax: 0.10.0
libtpu: 0.0.40
codegen_flags: <defaults>
</compile_context>

<pallas_src>
import math

import jax
import jax.numpy as jnp
from jax.experimental import pallas as pl
from jax.experimental.pallas import tpu as pltpu

NUM_FILTERS = 6   # number of filters produced by filters(in_channels=1, ...)
FILTER_SIZE = 5   # self.filter_size
LANE = 128        # TPU lane width; batch*channel axis is padded to a multiple of this


def make_filter_bank(kernel_size: int, num_filters: int) -> jnp.ndarray:
    """Deterministic Gabor-like bank standing in for `filters(...)`.

    The original repo's `filters()` builds a curvature/Gabor bank from
    `filter_params`; its exact code is not provided here, so we synthesize a
    deterministic oriented-Gabor bank with the same (F, 1, K, K) shape.
    """
    # TODO(synk): exact `filters()` bank definition not available; using a deterministic Gabor bank.
    half = (kernel_size - 1) / 2.0
    ys, xs = jnp.meshgrid(
        jnp.arange(kernel_size, dtype=jnp.float32) - half,
        jnp.arange(kernel_size, dtype=jnp.float32) - half,
        indexing="ij",
    )
    sigma, freq = 2.0, 0.5
    filts = []
    for i in range(num_filters):
        theta = math.pi * i / num_filters
        xr = xs * math.cos(theta) + ys * math.sin(theta)
        yr = -xs * math.sin(theta) + ys * math.cos(theta)
        g = jnp.exp(-(xr ** 2 + yr ** 2) / (2.0 * sigma ** 2)) * jnp.cos(
            2.0 * math.pi * freq * xr
        )
        filts.append(g)
    return jnp.stack(filts)[:, None, :, :].astype(jnp.float32)  # (F, 1, K, K)


def _pick_row_tile(H: int) -> int:
    """Largest row tile from {8,4,2,1} dividing H (keeps acc+slab << 64 vregs)."""
    for tr in (8, 4, 2, 1):
        if H % tr == 0:
            return tr
    return H


def _make_kernel(K: int, TR: int):
    KK = K * K

    def kernel(x_ref, w_ref, out_ref):
        """One grid step = one 128-image lane tile x one filter.

        x_ref   : VMEM (H+2p, W+2p, LANE)  zero-padded images, lanes = batch*channel
        w_ref   : SMEM (F*K*K,)            flattened filter taps (scalar reads)
        out_ref : VMEM (H, W, LANE)        response of filter f = program_id(1)
        """
        f = pl.program_id(1)
        H, W, lanes = out_ref.shape
        for rt in range(H // TR):              # row-tiled to bound vreg pressure
            r0 = rt * TR
            acc = jnp.zeros((TR, W, lanes), jnp.float32)
            for ki in range(K):
                for kj in range(K):
                    tap = w_ref[f * KK + ki * K + kj]       # scalar from SMEM
                    # shifted slab: slices only leading/sublane dims, lanes stay dense
                    acc = acc + tap * x_ref[r0 + ki:r0 + ki + TR, kj:kj + W, :]
            # single full-width (128-lane) unmasked store per row tile
            out_ref[r0:r0 + TR, :, :] = acc

    return kernel


def convolution_forward(x: jnp.ndarray, weights: jnp.ndarray) -> jnp.ndarray:
    """x: (N, C, H, W) float32; weights: (F, 1, K, K) float32 -> (N, C*F, H, W)."""
    N, C, H, W = x.shape
    F, _, K, K2 = weights.shape
    assert K == K2 and K % 2 == 1, "only odd 'same' kernels keep H,W (matches K=5)"
    p = K // 2  # math.floor(weights.shape[-1] / 2)

    M = N * C
    M_pad = ((M + LANE - 1) // LANE) * LANE
    Hp, Wp = H + 2 * p, W + 2 * p
    TR = _pick_row_tile(H)

    # Layout plumbing (single materialization): NCHW -> (Hp, Wp, M_pad) with the
    # batch*channel axis on lanes; spatial zero-pad and lane-pad fused into it.
    xt = jnp.transpose(x.reshape(M, H, W), (1, 2, 0))                 # (H, W, M)
    xt = jnp.pad(xt, ((p, p), (p, p), (0, M_pad - M))).astype(jnp.float32)
    w_flat = weights.reshape(-1).astype(jnp.float32)                  # (F*K*K,)

    out = pl.pallas_call(
        _make_kernel(K, TR),
        out_shape=jax.ShapeDtypeStruct((F, H, W, M_pad), jnp.float32),
        grid=(M_pad // LANE, F),
        in_specs=[
            pl.BlockSpec((Hp, Wp, LANE), lambda m, f: (0, 0, m)),
            pl.BlockSpec(memory_space=pltpu.MemorySpace.SMEM),
        ],
        out_specs=pl.BlockSpec((None, H, W, LANE), lambda m, f: (f, 0, 0, m)),
        compiler_params=pltpu.CompilerParams(
            dimension_semantics=("parallel", "parallel")),
    )(xt, w_flat)

    # (F, H, W, M_pad) -> drop lane padding -> (M, F, H, W) -> (N, C*F, H, W)
    out = out[:, :, :, :M]
    out = jnp.moveaxis(out, -1, 0)
    return out.reshape(N, C * F, H, W)


def _reference(x: jnp.ndarray, weights: jnp.ndarray) -> jnp.ndarray:
    """Pure-JAX reference mirroring the PyTorch forward loop."""
    N, C, H, W = x.shape
    p = weights.shape[-1] // 2
    outs = []
    for i in range(C):
        xi = x[:, i:i + 1, :, :]
        o = jax.lax.conv_general_dilated(
            xi, weights, window_strides=(1, 1),
            padding=[(p, p), (p, p)],
            dimension_numbers=("NCHW", "OIHW", "NCHW"),
        )
        outs.append(o)
    return jnp.concatenate(outs, axis=1)


if __name__ == "__main__":
    key = jax.random.PRNGKey(0)
    N, C, H, W = 2, 4, 16, 16
    x = jax.random.normal(key, (N, C, H, W), dtype=jnp.float32)
    weights = make_filter_bank(FILTER_SIZE, NUM_FILTERS)

    y = convolution_forward(x, weights)
    y = jax.block_until_ready(y)

    y_ref = _reference(x, weights)
    assert y.shape == (N, C * NUM_FILTERS, H, W), y.shape
    assert jnp.allclose(y, y_ref, atol=1e-4, rtol=1e-4), float(jnp.max(jnp.abs(y - y_ref)))

    print("KERNEL_OK")
</pallas_src>

<mosaic_0001>
module attributes {stable_mosaic.version = 11 : i64} {
  func.func @kernel(%arg0: i32, %arg1: i32, %arg2: memref<20x20x128xf32, #tpu.memory_space<vmem>>, %arg3: memref<150xf32, #tpu.memory_space<smem>>, %arg4: memref<1x16x16x128xf32, #tpu.memory_space<vmem>>) attributes {dimension_semantics = [#tpu.dimension_semantics<parallel>, #tpu.dimension_semantics<parallel>], iteration_bounds = array<i64: 1, 6>, scalar_prefetch = 0 : i64, scratch_operands = 0 : i64, tpu.core_type = #tpu.core_type<tc>, window_params = [{transform_indices = @transform_0, window_bounds = array<i64: 20, 20, 128>}, {transform_indices = @transform_1, window_bounds = array<i64: 150>}, {transform_indices = @transform_2, window_bounds = array<i64: 1, 16, 16, 128>}]} {
    %cst = arith.constant 0.000000e+00 : f32
    %0 = vector.broadcast %cst : f32 to vector<8x16x128xf32>
    %c25_i32 = arith.constant 25 : i32
    %1 = arith.muli %arg1, %c25_i32 : i32
    %c0_i32 = arith.constant 0 : i32
    %2 = arith.addi %1, %c0_i32 : i32
    %c0_i32_0 = arith.constant 0 : i32
    %3 = arith.addi %2, %c0_i32_0 : i32
    %4 = arith.index_cast %3 : i32 to index
    %5 = memref.load %arg3[%4] : memref<150xf32, #tpu.memory_space<smem>>
    %c0 = arith.constant 0 : index
    %c0_1 = arith.constant 0 : index
    %c0_2 = arith.constant 0 : index
    %6 = vector.load %arg2[%c0, %c0_1, %c0_2] : memref<20x20x128xf32, #tpu.memory_space<vmem>>, vector<8x16x128xf32>
    %7 = vector.broadcast %5 : f32 to vector<8x16x128xf32>
    %8 = arith.mulf %7, %6 : vector<8x16x128xf32>
    %9 = arith.addf %0, %8 : vector<8x16x128xf32>
    %c25_i32_3 = arith.constant 25 : i32
    %10 = arith.muli %arg1, %c25_i32_3 : i32
    %c0_i32_4 = arith.constant 0 : i32
    %11 = arith.addi %10, %c0_i32_4 : i32
    %c1_i32 = arith.constant 1 : i32
    %12 = arith.addi %11, %c1_i32 : i32
    %13 = arith.index_cast %12 : i32 to index
    %14 = memref.load %arg3[%13] : memref<150xf32, #tpu.memory_space<smem>>
    %c0_5 = arith.constant 0 : index
    %c1 = arith.constant 1 : index
    %c0_6 = arith.constant 0 : index
    %15 = vector.load %arg2[%c0_5, %c1, %c0_6] : memref<20x20x128xf32, #tpu.memory_space<vmem>>, vector<8x16x128xf32>
    %16 = vector.broadcast %14 : f32 to vector<8x16x128xf32>
    %17 = arith.mulf %16, %15 : vector<8x16x128xf32>
    %18 = arith.addf %9, %17 : vector<8x16x128xf32>
    %c25_i32_7 = arith.constant 25 : i32
    %19 = arith.muli %arg1, %c25_i32_7 : i32
    %c0_i32_8 = arith.constant 0 : i32
    %20 = arith.addi %19, %c0_i32_8 : i32
    %c2_i32 = arith.constant 2 : i32
    %21 = arith.addi %20, %c2_i32 : i32
    %22 = arith.index_cast %21 : i32 to index
    %23 = memref.load %arg3[%22] : memref<150xf32, #tpu.memory_space<smem>>
    %c0_9 = arith.constant 0 : index
    %c2 = arith.constant 2 : index
    %c0_10 = arith.constant 0 : index
    %24 = vector.load %arg2[%c0_9, %c2, %c0_10] : memref<20x20x128xf32, #tpu.memory_space<vmem>>, vector<8x16x128xf32>
    %25 = vector.broadcast %23 : f32 to vector<8x16x128xf32>
    %26 = arith.mulf %25, %24 : vector<8x16x128xf32>
    %27 = arith.addf %18, %26 : vector<8x16x128xf32>
    %c25_i32_11 = arith.constant 25 : i32
    %28 = arith.muli %arg1, %c25_i32_11 : i32
    %c0_i32_12 = arith.constant 0 : i32
    %29 = arith.addi %28, %c0_i32_12 : i32
    %c3_i32 = arith.constant 3 : i32
    %30 = arith.addi %29, %c3_i32 : i32
    %31 = arith.index_cast %30 : i32 to index
    %32 = memref.load %arg3[%31] : memref<150xf32, #tpu.memory_space<smem>>
    %c0_13 = arith.constant 0 : index
    %c3 = arith.constant 3 : index
    %c0_14 = arith.constant 0 : index
    %33 = vector.load %arg2[%c0_13, %c3, %c0_14] : memref<20x20x128xf32, #tpu.memory_space<vmem>>, vector<8x16x128xf32>
    %34 = vector.broadcast %32 : f32 to vector<8x16x128xf32>
    %35 = arith.mulf %34, %33 : vector<8x16x128xf32>
    %36 = arith.addf %27, %35 : vector<8x16x128xf32>
    %c25_i32_15 = arith.constant 25 : i32
    %37 = arith.muli %arg1, %c25_i32_15 : i32
    %c0_i32_16 = arith.constant 0 : i32
    %38 = arith.addi %37, %c0_i32_16 : i32
    %c4_i32 = arith.constant 4 : i32
    %39 = arith.addi %38, %c4_i32 : i32
    %40 = arith.index_cast %39 : i32 to index
    %41 = memref.load %arg3[%40] : memref<150xf32, #tpu.memory_space<smem>>
    %c0_17 = arith.constant 0 : index
    %c4 = arith.constant 4 : index
    %c0_18 = arith.constant 0 : index
    %42 = vector.load %arg2[%c0_17, %c4, %c0_18] : memref<20x20x128xf32, #tpu.memory_space<vmem>>, vector<8x16x128xf32>
    %43 = vector.broadcast %41 : f32 to vector<8x16x128xf32>
    %44 = arith.mulf %43, %42 : vector<8x16x128xf32>
    %45 = arith.addf %36, %44 : vector<8x16x128xf32>
    %c25_i32_19 = arith.constant 25 : i32
    %46 = arith.muli %arg1, %c25_i32_19 : i32
    %c5_i32 = arith.constant 5 : i32
    %47 = arith.addi %46, %c5_i32 : i32
    %c0_i32_20 = arith.constant 0 : i32
    %48 = arith.addi %47, %c0_i32_20 : i32
    %49 = arith.index_cast %48 : i32 to index
    %50 = memref.load %arg3[%49] : memref<150xf32, #tpu.memory_space<smem>>
    %c1_21 = arith.constant 1 : index
    %c0_22 = arith.constant 0 : index
    %c0_23 = arith.constant 0 : index
    %51 = vector.load %arg2[%c1_21, %c0_22, %c0_23] : memref<20x20x128xf32, #tpu.memory_space<vmem>>, vector<8x16x128xf32>
    %52 = vector.broadcast %50 : f32 to vector<8x16x128xf32>
    %53 = arith.mulf %52, %51 : vector<8x16x128xf32>
    %54 = arith.addf %45, %53 : vector<8x16x128xf32>
    %c25_i32_24 = arith.constant 25 : i32
    %55 = arith.muli %arg1, %c25_i32_24 : i32
    %c5_i32_25 = arith.constant 5 : i32
    %56 = arith.addi %55, %c5_i32_25 : i32
    %c1_i32_26 = arith.constant 1 : i32
    %57 = arith.addi %56, %c1_i32_26 : i32
    %58 = arith.index_cast %57 : i32 to index
    %59 = memref.load %arg3[%58] : memref<150xf32, #tpu.memory_space<smem>>
    %c1_27 = arith.constant 1 : index
    %c1_28 = arith.constant 1 : index
    %c0_29 = arith.constant 0 : index
    %60 = vector.load %arg2[%c1_27, %c1_28, %c0_29] : memref<20x20x128xf32, #tpu.memory_space<vmem>>, vector<8x16x128xf32>
    %61 = vector.broadcast %59 : f32 to vector<8x16x128xf32>
    %62 = arith.mulf %61, %60 : vector<8x16x128xf32>
    %63 = arith.addf %54, %62 : vector<8x16x128xf32>
    %c25_i32_30 = arith.constant 25 : i32
    %64 = arith.muli %arg1, %c25_i32_30 : i32
    %c5_i32_31 = arith.constant 5 : i32
    %65 = arith.addi %64, %c5_i32_31 : i32
    %c2_i32_32 = arith.constant 2 : i32
    %66 = arith.addi %65, %c2_i32_32 : i32
    %67 = arith.index_cast %66 : i32 to index
    %68 = memref.load %arg3[%67] : memref<150xf32, #tpu.memory_space<smem>>
    %c1_33 = arith.constant 1 : index
    %c2_34 = arith.constant 2 : index
    %c0_35 = arith.constant 0 : index
    %69 = vector.load %arg2[%c1_33, %c2_34, %c0_35] : memref<20x20x128xf32, #tpu.memory_space<vmem>>, vector<8x16x128xf32>
    %70 = vector.broadcast %68 : f32 to vector<8x16x128xf32>
    %71 = arith.mulf %70, %69 : vector<8x16x128xf32>
    %72 = arith.addf %63, %71 : vector<8x16x128xf32>
    %c25_i32_36 = arith.constant 25 : i32
    %73 = arith.muli %arg1, %c25_i32_36 : i32
    %c5_i32_37 = arith.constant 5 : i32
    %74 = arith.addi %73, %c5_i32_37 : i32
    %c3_i32_38 = arith.constant 3 : i32
    %75 = arith.addi %74, %c3_i32_38 : i32
    %76 = arith.index_cast %75 : i32 to index
    %77 = memref.load %arg3[%76] : memref<150xf32, #tpu.memory_space<smem>>
    %c1_39 = arith.constant 1 : index
    %c3_40 = arith.constant 3 : index
    %c0_41 = arith.constant 0 : index
    %78 = vector.load %arg2[%c1_39, %c3_40, %c0_41] : memref<20x20x128xf32, #tpu.memory_space<vmem>>, vector<8x16x128xf32>
    %79 = vector.broadcast %77 : f32 to vector<8x16x128xf32>
    %80 = arith.mulf %79, %78 : vector<8x16x128xf32>
    %81 = arith.addf %72, %80 : vector<8x16x128xf32>
    %c25_i32_42 = arith.constant 25 : i32
    %82 = arith.muli %arg1, %c25_i32_42 : i32
    %c5_i32_43 = arith.constant 5 : i32
    %83 = arith.addi %82, %c5_i32_43 : i32
    %c4_i32_44 = arith.constant 4 : i32
    %84 = arith.addi %83, %c4_i32_44 : i32
    %85 = arith.index_cast %84 : i32 to index
    %86 = memref.load %arg3[%85] : memref<150xf32, #tpu.memory_space<smem>>
    %c1_45 = arith.constant 1 : index
    %c4_46 = arith.constant 4 : index
    %c0_47 = arith.constant 0 : index
    %87 = vector.load %arg2[%c1_45, %c4_46, %c0_47] : memref<20x20x128xf32, #tpu.memory_space<vmem>>, vector<8x16x128xf32>
    %88 = vector.broadcast %86 : f32 to vector<8x16x128xf32>
    %89 = arith.mulf %88, %87 : vector<8x16x128xf32>
    %90 = arith.addf %81, %89 : vector<8x16x128xf32>
    %c25_i32_48 = arith.constant 25 : i32
    %91 = arith.muli %arg1, %c25_i32_48 : i32
    %c10_i32 = arith.constant 10 : i32
    %92 = arith.addi %91, %c10_i32 : i32
    %c0_i32_49 = arith.constant 0 : i32
    %93 = arith.addi %92, %c0_i32_49 : i32
    %94 = arith.index_cast %93 : i32 to index
    %95 = memref.load %arg3[%94] : memref<150xf32, #tpu.memory_space<smem>>
    %c2_50 = arith.constant 2 : index
    %c0_51 = arith.constant 0 : index
    %c0_52 = arith.constant 0 : index
    %96 = vector.load %arg2[%c2_50, %c0_51, %c0_52] : memref<20x20x128xf32, #tpu.memory_space<vmem>>, vector<8x16x128xf32>
    %97 = vector.broadcast %95 : f32 to vector<8x16x128xf32>
    %98 = arith.mulf %97, %96 : vector<8x16x128xf32>
    %99 = arith.addf %90, %98 : vector<8x16x128xf32>
    %c25_i32_53 = arith.constant 25 : i32
    %100 = arith.muli %arg1, %c25_i32_53 : i32
    %c10_i32_54 = arith.constant 10 : i32
    %101 = arith.addi %100, %c10_i32_54 : i32
    %c1_i32_55 = arith.constant 1 : i32
    %102 = arith.addi %101, %c1_i32_55 : i32
    %103 = arith.index_cast %102 : i32 to index
    %104 = memref.load %arg3[%103] : memref<150xf32, #tpu.memory_space<smem>>
    %c2_56 = arith.constant 2 : index
    %c1_57 = arith.constant 1 : index
    %c0_58 = arith.constant 0 : index
    %105 = vector.load %arg2[%c2_56, %c1_57, %c0_58] : memref<20x20x128xf32, #tpu.memory_space<vmem>>, vector<8x16x128xf32>
    %106 = vector.broadcast %104 : f32 to vector<8x16x128xf32>
    %107 = arith.mulf %106, %105 : vector<8x16x128xf32>
    %108 = arith.addf %99, %107 : vector<8x16x128xf32>
    %c25_i32_59 = arith.constant 25 : i32
    %109 = arith.muli %arg1, %c25_i32_59 : i32
    %c10_i32_60 = arith.constant 10 : i32
    %110 = arith.addi %109, %c10_i32_60 : i32
    %c2_i32_61 = arith.constant 2 : i32
    %111 = arith.addi %110, %c2_i32_61 : i32
    %112 = arith.index_cast %111 : i32 to index
    %113 = memref.load %arg3[%112] : memref<150xf32, #tpu.memory_space<smem>>
    %c2_62 = arith.constant 2 : index
    %c2_63 = arith.constant 2 : index
    %c0_64 = arith.constant 0 : index
    %114 = vector.load %arg2[%c2_62, %c2_63, %c0_64] : memref<20x20x128xf32, #tpu.memory_space<vmem>>, vector<8x16x128xf32>
    %115 = vector.broadcast %113 : f32 to vector<8x16x128xf32>
    %116 = arith.mulf %115, %114 : vector<8x16x128xf32>
    %117 = arith.addf %108, %116 : vector<8x16x128xf32>
    %c25_i32_65 = arith.constant 25 : i32
    %118 = arith.muli %arg1, %c25_i32_65 : i32
    %c10_i32_66 = arith.constant 10 : i32
    %119 = arith.addi %118, %c10_i32_66 : i32
    %c3_i32_67 = arith.constant 3 : i32
    %120 = arith.addi %119, %c3_i32_67 : i32
    %121 = arith.index_cast %120 : i32 to index
    %122 = memref.load %arg3[%121] : memref<150xf32, #tpu.memory_space<smem>>
    %c2_68 = arith.constant 2 : index
    %c3_69 = arith.constant 3 : index
    %c0_70 = arith.constant 0 : index
    %123 = vector.load %arg2[%c2_68, %c3_69, %c0_70] : memref<20x20x128xf32, #tpu.memory_space<vmem>>, vector<8x16x128xf32>
    %124 = vector.broadcast %122 : f32 to vector<8x16x128xf32>
    %125 = arith.mulf %124, %123 : vector<8x16x128xf32>
    %126 = arith.addf %117, %125 : vector<8x16x128xf32>
    %c25_i32_71 = arith.constant 25 : i32
    %127 = arith.muli %arg1, %c25_i32_71 : i32
    %c10_i32_72 = arith.constant 10 : i32
    %128 = arith.addi %127, %c10_i32_72 : i32
    %c4_i32_73 = arith.constant 4 : i32
    %129 = arith.addi %128, %c4_i32_73 : i32
    %130 = arith.index_cast %129 : i32 to index
    %131 = memref.load %arg3[%130] : memref<150xf32, #tpu.memory_space<smem>>
    %c2_74 = arith.constant 2 : index
    %c4_75 = arith.constant 4 : index
    %c0_76 = arith.constant 0 : index
    %132 = vector.load %arg2[%c2_74, %c4_75, %c0_76] : memref<20x20x128xf32, #tpu.memory_space<vmem>>, vector<8x16x128xf32>
    %133 = vector.broadcast %131 : f32 to vector<8x16x128xf32>
    %134 = arith.mulf %133, %132 : vector<8x16x128xf32>
    %135 = arith.addf %126, %134 : vector<8x16x128xf32>
    %c25_i32_77 = arith.constant 25 : i32
    %136 = arith.muli %arg1, %c25_i32_77 : i32
    %c15_i32 = arith.constant 15 : i32
    %137 = arith.addi %136, %c15_i32 : i32
    %c0_i32_78 = arith.constant 0 : i32
    %138 = arith.addi %137, %c0_i32_78 : i32
    %139 = arith.index_cast %138 : i32 to index
    %140 = memref.load %arg3[%139] : memref<150xf32, #tpu.memory_space<smem>>
    %c3_79 = arith.constant 3 : index
    %c0_80 = arith.constant 0 : index
    %c0_81 = arith.constant 0 : index
    %141 = vector.load %arg2[%c3_79, %c0_80, %c0_81] : memref<20x20x128xf32, #tpu.memory_space<vmem>>, vector<8x16x128xf32>
    %142 = vector.broadcast %140 : f32 to vector<8x16x128xf32>
    %143 = arith.mulf %142, %141 : vector<8x16x128xf32>
    %144 = arith.addf %135, %143 : vector<8x16x128xf32>
    %c25_i32_82 = arith.constant 25 : i32
    %145 = arith.muli %arg1, %c25_i32_82 : i32
    %c15_i32_83 = arith.constant 15 : i32
    %146 = arith.addi %145, %c15_i32_83 : i32
    %c1_i32_84 = arith.constant 1 : i32
    %147 = arith.addi %146, %c1_i32_84 : i32
    %148 = arith.index_cast %147 : i32 to index
    %149 = memref.load %arg3[%148] : memref<150xf32, #tpu.memory_space<smem>>
    %c3_85 = arith.constant 3 : index
    %c1_86 = arith.constant 1 : index
    %c0_87 = arith.constant 0 : index
    %150 = vector.load %arg2[%c3_85, %c1_86, %c0_87] : memref<20x20x128xf32, #tpu.memory_space<vmem>>, vector<8x16x128xf32>
    %151 = vector.broadcast %149 : f32 to vector<8x16x128xf32>
    %152 = arith.mulf %151, %150 : vector<8x16x128xf32>
    %153 = arith.addf %144, %152 : vector<8x16x128xf32>
    %c25_i32_88 = arith.constant 25 : i32
    %154 = arith.muli %arg1, %c25_i32_88 : i32
    %c15_i32_89 = arith.constant 15 : i32
    %155 = arith.addi %154, %c15_i32_89 : i32
    %c2_i32_90 = arith.constant 2 : i32
    %156 = arith.addi %155, %c2_i32_90 : i32
    %157 = arith.index_cast %156 : i32 to index
    %158 = memref.load %arg3[%157] : memref<150xf32, #tpu.memory_space<smem>>
    %c3_91 = arith.constant 3 : index
    %c2_92 = arith.constant 2 : index
    %c0_93 = arith.constant 0 : index
    %159 = vector.load %arg2[%c3_91, %c2_92, %c0_93] : memref<20x20x128xf32, #tpu.memory_space<vmem>>, vector<8x16x128xf32>
    %160 = vector.broadcast %158 : f32 to vector<8x16x128xf32>
    %161 = arith.mulf %160, %159 : vector<8x16x128xf32>
    %162 = arith.addf %153, %161 : vector<8x16x128xf32>
    %c25_i32_94 = arith.constant 25 : i32
    %163 = arith.muli %arg1, %c25_i32_94 : i32
    %c15_i32_95 = arith.constant 15 : i32
    %164 = arith.addi %163, %c15_i32_95 : i32
    %c3_i32_96 = arith.constant 3 : i32
    %165 = arith.addi %164, %c3_i32_96 : i32
    %166 = arith.index_cast %165 : i32 to index
    %167 = memref.load %arg3[%166] : memref<150xf32, #tpu.memory_space<smem>>
    %c3_97 = arith.constant 3 : index
    %c3_98 = arith.constant 3 : index
    %c0_99 = arith.constant 0 : index
    %168 = vector.load %arg2[%c3_97, %c3_98, %c0_99] : memref<20x20x128xf32, #tpu.memory_space<vmem>>, vector<8x16x128xf32>
    %169 = vector.broadcast %167 : f32 to vector<8x16x128xf32>
    %170 = arith.mulf %169, %168 : vector<8x16x128xf32>
    %171 = arith.addf %162, %170 : vector<8x16x128xf32>
    %c25_i32_100 = arith.constant 25 : i32
    %172 = arith.muli %arg1, %c25_i32_100 : i32
    %c15_i32_101 = arith.constant 15 : i32
    %173 = arith.addi %172, %c15_i32_101 : i32
    %c4_i32_102 = arith.constant 4 : i32
    %174 = arith.addi %173, %c4_i32_102 : i32
    %175 = arith.index_cast %174 : i32 to index
    %176 = memref.load %arg3[%175] : memref<150xf32, #tpu.memory_space<smem>>
    %c3_103 = arith.constant 3 : index
    %c4_104 = arith.constant 4 : index
    %c0_105 = arith.constant 0 : index
    %177 = vector.load %arg2[%c3_103, %c4_104, %c0_105] : memref<20x20x128xf32, #tpu.memory_space<vmem>>, vector<8x16x128xf32>
    %178 = vector.broadcast %176 : f32 to vector<8x16x128xf32>
    %179 = arith.mulf %178, %177 : vector<8x16x128xf32>
    %180 = arith.addf %171, %179 : vector<8x16x128xf32>
    %c25_i32_106 = arith.constant 25 : i32
    %181 = arith.muli %arg1, %c25_i32_106 : i32
    %c20_i32 = arith.constant 20 : i32
    %182 = arith.addi %181, %c20_i32 : i32
    %c0_i32_107 = arith.constant 0 : i32
    %183 = arith.addi %182, %c0_i32_107 : i32
    %184 = arith.index_cast %183 : i32 to index
    %185 = memref.load %arg3[%184] : memref<150xf32, #tpu.memory_space<smem>>
    %c4_108 = arith.constant 4 : index
    %c0_109 = arith.constant 0 : index
    %c0_110 = arith.constant 0 : index
    %186 = vector.load %arg2[%c4_108, %c0_109, %c0_110] : memref<20x20x128xf32, #tpu.memory_space<vmem>>, vector<8x16x128xf32>
    %187 = vector.broadcast %185 : f32 to vector<8x16x128xf32>
    %188 = arith.mulf %187, %186 : vector<8x16x128xf32>
    %189 = arith.addf %180, %188 : vector<8x16x128xf32>
    %c25_i32_111 = arith.constant 25 : i32
    %190 = arith.muli %arg1, %c25_i32_111 : i32
    %c20_i32_112 = arith.constant 20 : i32
    %191 = arith.addi %190, %c20_i32_112 : i32
    %c1_i32_113 = arith.constant 1 : i32
    %192 = arith.addi %191, %c1_i32_113 : i32
    %193 = arith.index_cast %192 : i32 to index
    %194 = memref.load %arg3[%193] : memref<150xf32, #tpu.memory_space<smem>>
    %c4_114 = arith.constant 4 : index
    %c1_115 = arith.constant 1 : index
    %c0_116 = arith.constant 0 : index
    %195 = vector.load %arg2[%c4_114, %c1_115, %c0_116] : memref<20x20x128xf32, #tpu.memory_space<vmem>>, vector<8x16x128xf32>
    %196 = vector.broadcast %194 : f32 to vector<8x16x128xf32>
    %197 = arith.mulf %196, %195 : vector<8x16x128xf32>
    %198 = arith.addf %189, %197 : vector<8x16x128xf32>
    %c25_i32_117 = arith.constant 25 : i32
    %199 = arith.muli %arg1, %c25_i32_117 : i32
    %c20_i32_118 = arith.constant 20 : i32
    %200 = arith.addi %199, %c20_i32_118 : i32
    %c2_i32_119 = arith.constant 2 : i32
    %201 = arith.addi %200, %c2_i32_119 : i32
    %202 = arith.index_cast %201 : i32 to index
    %203 = memref.load %arg3[%202] : memref<150xf32, #tpu.memory_space<smem>>
    %c4_120 = arith.constant 4 : index
    %c2_121 = arith.constant 2 : index
    %c0_122 = arith.constant 0 : index
    %204 = vector.load %arg2[%c4_120, %c2_121, %c0_122] : memref<20x20x128xf32, #tpu.memory_space<vmem>>, vector<8x16x128xf32>
    %205 = vector.broadcast %203 : f32 to vector<8x16x128xf32>
    %206 = arith.mulf %205, %204 : vector<8x16x128xf32>
    %207 = arith.addf %198, %206 : vector<8x16x128xf32>
    %c25_i32_123 = arith.constant 25 : i32
    %208 = arith.muli %arg1, %c25_i32_123 : i32
    %c20_i32_124 = arith.constant 20 : i32
    %209 = arith.addi %208, %c20_i32_124 : i32
    %c3_i32_125 = arith.constant 3 : i32
    %210 = arith.addi %209, %c3_i32_125 : i32
    %211 = arith.index_cast %210 : i32 to index
    %212 = memref.load %arg3[%211] : memref<150xf32, #tpu.memory_space<smem>>
    %c4_126 = arith.constant 4 : index
    %c3_127 = arith.constant 3 : index
    %c0_128 = arith.constant 0 : index
    %213 = vector.load %arg2[%c4_126, %c3_127, %c0_128] : memref<20x20x128xf32, #tpu.memory_space<vmem>>, vector<8x16x128xf32>
    %214 = vector.broadcast %212 : f32 to vector<8x16x128xf32>
    %215 = arith.mulf %214, %213 : vector<8x16x128xf32>
    %216 = arith.addf %207, %215 : vector<8x16x128xf32>
    %c25_i32_129 = arith.constant 25 : i32
    %217 = arith.muli %arg1, %c25_i32_129 : i32
    %c20_i32_130 = arith.constant 20 : i32
    %218 = arith.addi %217, %c20_i32_130 : i32
    %c4_i32_131 = arith.constant 4 : i32
    %219 = arith.addi %218, %c4_i32_131 : i32
    %220 = arith.index_cast %219 : i32 to index
    %221 = memref.load %arg3[%220] : memref<150xf32, #tpu.memory_space<smem>>
    %c4_132 = arith.constant 4 : index
    %c4_133 = arith.constant 4 : index
    %c0_134 = arith.constant 0 : index
    %222 = vector.load %arg2[%c4_132, %c4_133, %c0_134] : memref<20x20x128xf32, #tpu.memory_space<vmem>>, vector<8x16x128xf32>
    %223 = vector.broadcast %221 : f32 to vector<8x16x128xf32>
    %224 = arith.mulf %223, %222 : vector<8x16x128xf32>
    %225 = arith.addf %216, %224 : vector<8x16x128xf32>
    %c0_135 = arith.constant 0 : index
    %c0_136 = arith.constant 0 : index
    %c0_137 = arith.constant 0 : index
    %c0_138 = arith.constant 0 : index
    %226 = vector.load %arg4[%c0_135, %c0_136, %c0_137, %c0_138] : memref<1x16x16x128xf32, #tpu.memory_space<vmem>>, vector<1x8x16x128xf32>
    %227 = vector.shape_cast %226 : vector<1x8x16x128xf32> to vector<8x16x128xf32>
    %228 = vector.shape_cast %225 : vector<8x16x128xf32> to vector<1x8x16x128xf32>
    tpu.vector_store %arg4[%c0_135, %c0_136, %c0_137, %c0_138], %228 {strides = array<i32>} : memref<1x16x16x128xf32, #tpu.memory_space<vmem>>, vector<1x8x16x128xf32>,
    %cst_139 = arith.constant 0.000000e+00 : f32
    %229 = vector.broadcast %cst_139 : f32 to vector<8x16x128xf32>
    %c25_i32_140 = arith.constant 25 : i32
    %230 = arith.muli %arg1, %c25_i32_140 : i32
    %c0_i32_141 = arith.constant 0 : i32
    %231 = arith.addi %230, %c0_i32_141 : i32
    %c0_i32_142 = arith.constant 0 : i32
    %232 = arith.addi %231, %c0_i32_142 : i32
    %233 = arith.index_cast %232 : i32 to index
    %234 = memref.load %arg3[%233] : memref<150xf32, #tpu.memory_space<smem>>
    %c8 = arith.constant 8 : index
    %c0_143 = arith.constant 0 : index
    %c0_144 = arith.constant 0 : index
    %235 = vector.load %arg2[%c8, %c0_143, %c0_144] : memref<20x20x128xf32, #tpu.memory_space<vmem>>, vector<8x16x128xf32>
    %236 = vector.broadcast %234 : f32 to vector<8x16x128xf32>
    %237 = arith.mulf %236, %235 : vector<8x16x128xf32>
    %238 = arith.addf %229, %237 : vector<8x16x128xf32>
    %c25_i32_145 = arith.constant 25 : i32
    %239 = arith.muli %arg1, %c25_i32_145 : i32
    %c0_i32_146 = arith.constant 0 : i32
    %240 = arith.addi %239, %c0_i32_146 : i32
    %c1_i32_147 = arith.constant 1 : i32
    %241 = arith.addi %240, %c1_i32_147 : i32
    %242 = arith.index_cast %241 : i32 to index
    %243 = memref.load %arg3[%242] : memref<150xf32, #tpu.memory_space<smem>>
    %c8_148 = arith.constant 8 : index
    %c1_149 = arith.constant 1 : index
    %c0_150 = arith.constant 0 : index
    %244 = vector.load %arg2[%c8_148, %c1_149, %c0_150] : memref<20x20x128xf32, #tpu.memory_space<vmem>>, vector<8x16x128xf32>
    %245 = vector.broadcast %243 : f32 to vector<8x16x128xf32>
    %246 = arith.mulf %245, %244 : vector<8x16x128xf32>
    %247 = arith.addf %238, %246 : vector<8x16x128xf32>
    %c25_i32_151 = arith.constant 25 : i32
    %248 = arith.muli %arg1, %c25_i32_151 : i32
    %c0_i32_152 = arith.constant 0 : i32
    %249 = arith.addi %248, %c0_i32_152 : i32
    %c2_i32_153 = arith.constant 2 : i32
    %250 = arith.addi %249, %c2_i32_153 : i32
    %251 = arith.index_cast %250 : i32 to index
    %252 = memref.load %arg3[%251] : memref<150xf32, #tpu.memory_space<smem>>
    %c8_154 = arith.constant 8 : index
    %c2_155 = arith.constant 2 : index
    %c0_156 = arith.constant 0 : index
    %253 = vector.load %arg2[%c8_154, %c2_155, %c0_156] : memref<20x20x128xf32, #tpu.memory_space<vmem>>, vector<8x16x128xf32>
    %254 = vector.broadcast %252 : f32 to vector<8x16x128xf32>
    %255 = arith.mulf %254, %253 : vector<8x16x128xf32>
    %256 = arith.addf %247, %255 : vector<8x16x128xf32>
    %c25_i32_157 = arith.constant 25 : i32
    %257 = arith.muli %arg1, %c25_i32_157 : i32
    %c0_i32_158 = arith.constant 0 : i32
    %258 = arith.addi %257, %c0_i32_158 : i32
    %c3_i32_159 = arith.constant 3 : i32
    %259 = arith.addi %258, %c3_i32_159 : i32
    %260 = arith.index_cast %259 : i32 to index
    %261 = memref.load %arg3[%260] : memref<150xf32, #tpu.memory_space<smem>>
    %c8_160 = arith.constant 8 : index
    %c3_161 = arith.constant 3 : index
    %c0_162 = arith.constant 0 : index
    %262 = vector.load %arg2[%c8_160, %c3_161, %c0_162] : memref<20x20x128xf32, #tpu.memory_space<vmem>>, vector<8x16x128xf32>
    %263 = vector.broadcast %261 : f32 to vector<8x16x128xf32>
    %264 = arith.mulf %263, %262 : vector<8x16x128xf32>
    %265 = arith.addf %256, %264 : vector<8x16x128xf32>
    %c25_i32_163 = arith.constant 25 : i32
    %266 = arith.muli %arg1, %c25_i32_163 : i32
    %c0_i32_164 = arith.constant 0 : i32
    %267 = arith.addi %266, %c0_i32_164 : i32
    %c4_i32_165 = arith.constant 4 : i32
    %268 = arith.addi %267, %c4_i32_165 : i32
    %269 = arith.index_cast %268 : i32 to index
    %270 = memref.load %arg3[%269] : memref<150xf32, #tpu.memory_space<smem>>
    %c8_166 = arith.constant 8 : index
    %c4_167 = arith.constant 4 : index
    %c0_168 = arith.constant 0 : index
    %271 = vector.load %arg2[%c8_166, %c4_167, %c0_168] : memref<20x20x128xf32, #tpu.memory_space<vmem>>, vector<8x16x128xf32>
    %272 = vector.broadcast %270 : f32 to vector<8x16x128xf32>
    %273 = arith.mulf %272, %271 : vector<8x16x128xf32>
    %274 = arith.addf %265, %273 : vector<8x16x128xf32>
    %c25_i32_169 = arith.constant 25 : i32
    %275 = arith.muli %arg1, %c25_i32_169 : i32
    %c5_i32_170 = arith.constant 5 : i32
    %276 = arith.addi %275, %c5_i32_170 : i32
    %c0_i32_171 = arith.constant 0 : i32
    %277 = arith.addi %276, %c0_i32_171 : i32
    %278 = arith.index_cast %277 : i32 to index
    %279 = memref.load %arg3[%278] : memref<150xf32, #tpu.memory_space<smem>>
    %c9 = arith.constant 9 : index
    %c0_172 = arith.constant 0 : index
    %c0_173 = arith.constant 0 : index
    %280 = vector.load %arg2[%c9, %c0_172, %c0_173] : memref<20x20x128xf32, #tpu.memory_space<vmem>>, vector<8x16x128xf32>
    %281 = vector.broadcast %279 : f32 to vector<8x16x128xf32>
    %282 = arith.mulf %281, %280 : vector<8x16x128xf32>
    %283 = arith.addf %274, %282 : vector<8x16x128xf32>
    %c25_i32_174 = arith.constant 25 : i32
    %284 = arith.muli %arg1, %c25_i32_174 : i32
    %c5_i32_175 = arith.constant 5 : i32
    %285 = arith.addi %284, %c5_i32_175 : i32
    %c1_i32_176 = arith.constant 1 : i32
    %286 = arith.addi %285, %c1_i32_176 : i32
    %287 = arith.index_cast %286 : i32 to index
    %288 = memref.load %arg3[%287] : memref<150xf32, #tpu.memory_space<smem>>
    %c9_177 = arith.constant 9 : index
    %c1_178 = arith.constant 1 : index
    %c0_179 = arith.constant 0 : index
    %289 = vector.load %arg2[%c9_177, %c1_178, %c0_179] : memref<20x20x128xf32, #tpu.memory_space<vmem>>, vector<8x16x128xf32>
    %290 = vector.broadcast %288 : f32 to vector<8x16x128xf32>
    %291 = arith.mulf %290, %289 : vector<8x16x128xf32>
    %292 = arith.addf %283, %291 : vector<8x16x128xf32>
    %c25_i32_180 = arith.constant 25 : i32
    %293 = arith.muli %arg1, %c25_i32_180 : i32
    %c5_i32_181 = arith.constant 5 : i32
    %294 = arith.addi %293, %c5_i32_181 : i32
    %c2_i32_182 = arith.constant 2 : i32
    %295 = arith.addi %294, %c2_i32_182 : i32
    %296 = arith.index_cast %295 : i32 to index
    %297 = memref.load %arg3[%296] : memref<150xf32, #tpu.memory_space<smem>>
    %c9_183 = arith.constant 9 : index
    %c2_184 = arith.constant 2 : index
    %c0_185 = arith.constant 0 : index
    %298 = vector.load %arg2[%c9_183, %c2_184, %c0_185] : memref<20x20x128xf32, #tpu.memory_space<vmem>>, vector<8x16x128xf32>
    %299 = vector.broadcast %297 : f32 to vector<8x16x128xf32>
    %300 = arith.mulf %299, %298 : vector<8x16x128xf32>
    %301 = arith.addf %292, %300 : vector<8x16x128xf32>
    %c25_i32_186 = arith.constant 25 : i32
    %302 = arith.muli %arg1, %c25_i32_186 : i32
    %c5_i32_187 = arith.constant 5 : i32
    %303 = arith.addi %302, %c5_i32_187 : i32
    %c3_i32_188 = arith.constant 3 : i32
    %304 = arith.addi %303, %c3_i32_188 : i32
    %305 = arith.index_cast %304 : i32 to index
    %306 = memref.load %arg3[%305] : memref<150xf32, #tpu.memory_space<smem>>
    %c9_189 = arith.constant 9 : index
    %c3_190 = arith.constant 3 : index
    %c0_191 = arith.constant 0 : index
    %307 = vector.load %arg2[%c9_189, %c3_190, %c0_191] : memref<20x20x128xf32, #tpu.memory_space<vmem>>, vector<8x16x128xf32>
    %308 = vector.broadcast %306 : f32 to vector<8x16x128xf32>
    %309 = arith.mulf %308, %307 : vector<8x16x128xf32>
    %310 = arith.addf %301, %309 : vector<8x16x128xf32>
    %c25_i32_192 = arith.constant 25 : i32
    %311 = arith.muli %arg1, %c25_i32_192 : i32
    %c5_i32_193 = arith.constant 5 : i32
    %312 = arith.addi %311, %c5_i32_193 : i32
    %c4_i32_194 = arith.constant 4 : i32
    %313 = arith.addi %312, %c4_i32_194 : i32
    %314 = arith.index_cast %313 : i32 to index
    %315 = memref.load %arg3[%314] : memref<150xf32, #tpu.memory_space<smem>>
    %c9_195 = arith.constant 9 : index
    %c4_196 = arith.constant 4 : index
    %c0_197 = arith.constant 0 : index
    %316 = vector.load %arg2[%c9_195, %c4_196, %c0_197] : memref<20x20x128xf32, #tpu.memory_space<vmem>>, vector<8x16x128xf32>
    %317 = vector.broadcast %315 : f32 to vector<8x16x128xf32>
    %318 = arith.mulf %317, %316 : vector<8x16x128xf32>
    %319 = arith.addf %310, %318 : vector<8x16x128xf32>
    %c25_i32_198 = arith.constant 25 : i32
    %320 = arith.muli %arg1, %c25_i32_198 : i32
    %c10_i32_199 = arith.constant 10 : i32
    %321 = arith.addi %320, %c10_i32_199 : i32
    %c0_i32_200 = arith.constant 0 : i32
    %322 = arith.addi %321, %c0_i32_200 : i32
    %323 = arith.index_cast %322 : i32 to index
    %324 = memref.load %arg3[%323] : memref<150xf32, #tpu.memory_space<smem>>
    %c10 = arith.constant 10 : index
    %c0_201 = arith.constant 0 : index
    %c0_202 = arith.constant 0 : index
    %325 = vector.load %arg2[%c10, %c0_201, %c0_202] : memref<20x20x128xf32, #tpu.memory_space<vmem>>, vector<8x16x128xf32>
    %326 = vector.broadcast %324 : f32 to vector<8x16x128xf32>
    %327 = arith.mulf %326, %325 : vector<8x16x128xf32>
    %328 = arith.addf %319, %327 : vector<8x16x128xf32>
    %c25_i32_203 = arith.constant 25 : i32
    %329 = arith.muli %arg1, %c25_i32_203 : i32
    %c10_i32_204 = arith.constant 10 : i32
    %330 = arith.addi %329, %c10_i32_204 : i32
    %c1_i32_205 = arith.constant 1 : i32
    %331 = arith.addi %330, %c1_i32_205 : i32
    %332 = arith.index_cast %331 : i32 to index
    %333 = memref.load %arg3[%332] : memref<150xf32, #tpu.memory_space<smem>>
    %c10_206 = arith.constant 10 : index
    %c1_207 = arith.constant 1 : index
    %c0_208 = arith.constant 0 : index
    %334 = vector.load %arg2[%c10_206, %c1_207, %c0_208] : memref<20x20x128xf32, #tpu.memory_space<vmem>>, vector<8x16x128xf32>
    %335 = vector.broadcast %333 : f32 to vector<8x16x128xf32>
    %336 = arith.mulf %335, %334 : vector<8x16x128xf32>
    %337 = arith.addf %328, %336 : vector<8x16x128xf32>
    %c25_i32_209 = arith.constant 25 : i32
    %338 = arith.muli %arg1, %c25_i32_209 : i32
    %c10_i32_210 = arith.constant 10 : i32
    %339 = arith.addi %338, %c10_i32_210 : i32
    %c2_i32_211 = arith.constant 2 : i32
    %340 = arith.addi %339, %c2_i32_211 : i32
    %341 = arith.index_cast %340 : i32 to index
    %342 = memref.load %arg3[%341] : memref<150xf32, #tpu.memory_space<smem>>
    %c10_212 = arith.constant 10 : index
    %c2_213 = arith.constant 2 : index
    %c0_214 = arith.constant 0 : index
    %343 = vector.load %arg2[%c10_212, %c2_213, %c0_214] : memref<20x20x128xf32, #tpu.memory_space<vmem>>, vector<8x16x128xf32>
    %344 = vector.broadcast %342 : f32 to vector<8x16x128xf32>
    %345 = arith.mulf %344, %343 : vector<8x16x128xf32>
    %346 = arith.addf %337, %345 : vector<8x16x128xf32>
    %c25_i32_215 = arith.constant 25 : i32
    %347 = arith.muli %arg1, %c25_i32_215 : i32
    %c10_i32_216 = arith.constant 10 : i32
    %348 = arith.addi %347, %c10_i32_216 : i32
    %c3_i32_217 = arith.constant 3 : i32
    %349 = arith.addi %348, %c3_i32_217 : i32
    %350 = arith.index_cast %349 : i32 to index
    %351 = memref.load %arg3[%350] : memref<150xf32, #tpu.memory_space<smem>>
    %c10_218 = arith.constant 10 : index
    %c3_219 = arith.constant 3 : index
    %c0_220 = arith.constant 0 : index
    %352 = vector.load %arg2[%c10_218, %c3_219, %c0_220] : memref<20x20x128xf32, #tpu.memory_space<vmem>>, vector<8x16x128xf32>
    %353 = vector.broadcast %351 : f32 to vector<8x16x128xf32>
    %354 = arith.mulf %353, %352 : vector<8x16x128xf32>
    %355 = arith.addf %346, %354 : vector<8x16x128xf32>
    %c25_i32_221 = arith.constant 25 : i32
    %356 = arith.muli %arg1, %c25_i32_221 : i32
    %c10_i32_222 = arith.constant 10 : i32
    %357 = arith.addi %356, %c10_i32_222 : i32
    %c4_i32_223 = arith.constant 4 : i32
    %358 = arith.addi %357, %c4_i32_223 : i32
    %359 = arith.index_cast %358 : i32 to index
    %360 = memref.load %arg3[%359] : memref<150xf32, #tpu.memory_space<smem>>
    %c10_224 = arith.constant 10 : index
    %c4_225 = arith.constant 4 : index
    %c0_226 = arith.constant 0 : index
    %361 = vector.load %arg2[%c10_224, %c4_225, %c0_226] : memref<20x20x128xf32, #tpu.memory_space<vmem>>, vector<8x16x128xf32>
    %362 = vector.broadcast %360 : f32 to vector<8x16x128xf32>
    %363 = arith.mulf %362, %361 : vector<8x16x128xf32>
    %364 = arith.addf %355, %363 : vector<8x16x128xf32>
    %c25_i32_227 = arith.constant 25 : i32
    %365 = arith.muli %arg1, %c25_i32_227 : i32
    %c15_i32_228 = arith.constant 15 : i32
    %366 = arith.addi %365, %c15_i32_228 : i32
    %c0_i32_229 = arith.constant 0 : i32
    %367 = arith.addi %366, %c0_i32_229 : i32
    %368 = arith.index_cast %367 : i32 to index
    %369 = memref.load %arg3[%368] : memref<150xf32, #tpu.memory_space<smem>>
    %c11 = arith.constant 11 : index
    %c0_230 = arith.constant 0 : index
    %c0_231 = arith.constant 0 : index
    %370 = vector.load %arg2[%c11, %c0_230, %c0_231] : memref<20x20x128xf32, #tpu.memory_space<vmem>>, vector<8x16x128xf32>
    %371 = vector.broadcast %369 : f32 to vector<8x16x128xf32>
    %372 = arith.mulf %371, %370 : vector<8x16x128xf32>
    %373 = arith.addf %364, %372 : vector<8x16x128xf32>
    %c25_i32_232 = arith.constant 25 : i32
    %374 = arith.muli %arg1, %c25_i32_232 : i32
    %c15_i32_233 = arith.constant 15 : i32
    %375 = arith.addi %374, %c15_i32_233 : i32
    %c1_i32_234 = arith.constant 1 : i32
    %376 = arith.addi %375, %c1_i32_234 : i32
    %377 = arith.index_cast %376 : i32 to index
    %378 = memref.load %arg3[%377] : memref<150xf32, #tpu.memory_space<smem>>
    %c11_235 = arith.constant 11 : index
    %c1_236 = arith.constant 1 : index
    %c0_237 = arith.constant 0 : index
    %379 = vector.load %arg2[%c11_235, %c1_236, %c0_237] : memref<20x20x128xf32, #tpu.memory_space<vmem>>, vector<8x16x128xf32>
    %380 = vector.broadcast %378 : f32 to vector<8x16x128xf32>
    %381 = arith.mulf %380, %379 : vector<8x16x128xf32>
    %382 = arith.addf %373, %381 : vector<8x16x128xf32>
    %c25_i32_238 = arith.constant 25 : i32
    %383 = arith.muli %arg1, %c25_i32_238 : i32
    %c15_i32_239 = arith.constant 15 : i32
    %384 = arith.addi %383, %c15_i32_239 : i32
    %c2_i32_240 = arith.constant 2 : i32
    %385 = arith.addi %384, %c2_i32_240 : i32
    %386 = arith.index_cast %385 : i32 to index
    %387 = memref.load %arg3[%386] : memref<150xf32, #tpu.memory_space<smem>>
    %c11_241 = arith.constant 11 : index
    %c2_242 = arith.constant 2 : index
    %c0_243 = arith.constant 0 : index
    %388 = vector.load %arg2[%c11_241, %c2_242, %c0_243] : memref<20x20x128xf32, #tpu.memory_space<vmem>>, vector<8x16x128xf32>
    %389 = vector.broadcast %387 : f32 to vector<8x16x128xf32>
    %390 = arith.mulf %389, %388 : vector<8x16x128xf32>
    %391 = arith.addf %382, %390 : vector<8x16x128xf32>
    %c25_i32_244 = arith.constant 25 : i32
    %392 = arith.muli %arg1, %c25_i32_244 : i32
    %c15_i32_245 = arith.constant 15 : i32
    %393 = arith.addi %392, %c15_i32_245 : i32
    %c3_i32_246 = arith.constant 3 : i32
    %394 = arith.addi %393, %c3_i32_246 : i32
    %395 = arith.index_cast %394 : i32 to index
    %396 = memref.load %arg3[%395] : memref<150xf32, #tpu.memory_space<smem>>
    %c11_247 = arith.constant 11 : index
    %c3_248 = arith.constant 3 : index
    %c0_249 = arith.constant 0 : index
    %397 = vector.load %arg2[%c11_247, %c3_248, %c0_249] : memref<20x20x128xf32, #tpu.memory_space<vmem>>, vector<8x16x128xf32>
    %398 = vector.broadcast %396 : f32 to vector<8x16x128xf32>
    %399 = arith.mulf %398, %397 : vector<8x16x128xf32>
    %400 = arith.addf %391, %399 : vector<8x16x128xf32>
    %c25_i32_250 = arith.constant 25 : i32
    %401 = arith.muli %arg1, %c25_i32_250 : i32
    %c15_i32_251 = arith.constant 15 : i32
    %402 = arith.addi %401, %c15_i32_251 : i32
    %c4_i32_252 = arith.constant 4 : i32
    %403 = arith.addi %402, %c4_i32_252 : i32
    %404 = arith.index_cast %403 : i32 to index
    %405 = memref.load %arg3[%404] : memref<150xf32, #tpu.memory_space<smem>>
    %c11_253 = arith.constant 11 : index
    %c4_254 = arith.constant 4 : index
    %c0_255 = arith.constant 0 : index
    %406 = vector.load %arg2[%c11_253, %c4_254, %c0_255] : memref<20x20x128xf32, #tpu.memory_space<vmem>>, vector<8x16x128xf32>
    %407 = vector.broadcast %405 : f32 to vector<8x16x128xf32>
    %408 = arith.mulf %407, %406 : vector<8x16x128xf32>
    %409 = arith.addf %400, %408 : vector<8x16x128xf32>
    %c25_i32_256 = arith.constant 25 : i32
    %410 = arith.muli %arg1, %c25_i32_256 : i32
    %c20_i32_257 = arith.constant 20 : i32
    %411 = arith.addi %410, %c20_i32_257 : i32
    %c0_i32_258 = arith.constant 0 : i32
    %412 = arith.addi %411, %c0_i32_258 : i32
    %413 = arith.index_cast %412 : i32 to index
    %414 = memref.load %arg3[%413] : memref<150xf32, #tpu.memory_space<smem>>
    %c12 = arith.constant 12 : index
    %c0_259 = arith.constant 0 : index
    %c0_260 = arith.constant 0 : index
    %415 = vector.load %arg2[%c12, %c0_259, %c0_260] : memref<20x20x128xf32, #tpu.memory_space<vmem>>, vector<8x16x128xf32>
    %416 = vector.broadcast %414 : f32 to vector<8x16x128xf32>
    %417 = arith.mulf %416, %415 : vector<8x16x128xf32>
    %418 = arith.addf %409, %417 : vector<8x16x128xf32>
    %c25_i32_261 = arith.constant 25 : i32
    %419 = arith.muli %arg1, %c25_i32_261 : i32
    %c20_i32_262 = arith.constant 20 : i32
    %420 = arith.addi %419, %c20_i32_262 : i32
    %c1_i32_263 = arith.constant 1 : i32
    %421 = arith.addi %420, %c1_i32_263 : i32
    %422 = arith.index_cast %421 : i32 to index
    %423 = memref.load %arg3[%422] : memref<150xf32, #tpu.memory_space<smem>>
    %c12_264 = arith.constant 12 : index
    %c1_265 = arith.constant 1 : index
    %c0_266 = arith.constant 0 : index
    %424 = vector.load %arg2[%c12_264, %c1_265, %c0_266] : memref<20x20x128xf32, #tpu.memory_space<vmem>>, vector<8x16x128xf32>
    %425 = vector.broadcast %423 : f32 to vector<8x16x128xf32>
    %426 = arith.mulf %425, %424 : vector<8x16x128xf32>
    %427 = arith.addf %418, %426 : vector<8x16x128xf32>
    %c25_i32_267 = arith.constant 25 : i32
    %428 = arith.muli %arg1, %c25_i32_267 : i32
    %c20_i32_268 = arith.constant 20 : i32
    %429 = arith.addi %428, %c20_i32_268 : i32
    %c2_i32_269 = arith.constant 2 : i32
    %430 = arith.addi %429, %c2_i32_269 : i32
    %431 = arith.index_cast %430 : i32 to index
    %432 = memref.load %arg3[%431] : memref<150xf32, #tpu.memory_space<smem>>
    %c12_270 = arith.constant 12 : index
    %c2_271 = arith.constant 2 : index
    %c0_272 = arith.constant 0 : index
    %433 = vector.load %arg2[%c12_270, %c2_271, %c0_272] : memref<20x20x128xf32, #tpu.memory_space<vmem>>, vector<8x16x128xf32>
    %434 = vector.broadcast %432 : f32 to vector<8x16x128xf32>
    %435 = arith.mulf %434, %433 : vector<8x16x128xf32>
    %436 = arith.addf %427, %435 : vector<8x16x128xf32>
    %c25_i32_273 = arith.constant 25 : i32
    %437 = arith.muli %arg1, %c25_i32_273 : i32
    %c20_i32_274 = arith.constant 20 : i32
    %438 = arith.addi %437, %c20_i32_274 : i32
    %c3_i32_275 = arith.constant 3 : i32
    %439 = arith.addi %438, %c3_i32_275 : i32
    %440 = arith.index_cast %439 : i32 to index
    %441 = memref.load %arg3[%440] : memref<150xf32, #tpu.memory_space<smem>>
    %c12_276 = arith.constant 12 : index
    %c3_277 = arith.constant 3 : index
    %c0_278 = arith.constant 0 : index
    %442 = vector.load %arg2[%c12_276, %c3_277, %c0_278] : memref<20x20x128xf32, #tpu.memory_space<vmem>>, vector<8x16x128xf32>
    %443 = vector.broadcast %441 : f32 to vector<8x16x128xf32>
    %444 = arith.mulf %443, %442 : vector<8x16x128xf32>
    %445 = arith.addf %436, %444 : vector<8x16x128xf32>
    %c25_i32_279 = arith.constant 25 : i32
    %446 = arith.muli %arg1, %c25_i32_279 : i32
    %c20_i32_280 = arith.constant 20 : i32
    %447 = arith.addi %446, %c20_i32_280 : i32
    %c4_i32_281 = arith.constant 4 : i32
    %448 = arith.addi %447, %c4_i32_281 : i32
    %449 = arith.index_cast %448 : i32 to index
    %450 = memref.load %arg3[%449] : memref<150xf32, #tpu.memory_space<smem>>
    %c12_282 = arith.constant 12 : index
    %c4_283 = arith.constant 4 : index
    %c0_284 = arith.constant 0 : index
    %451 = vector.load %arg2[%c12_282, %c4_283, %c0_284] : memref<20x20x128xf32, #tpu.memory_space<vmem>>, vector<8x16x128xf32>
    %452 = vector.broadcast %450 : f32 to vector<8x16x128xf32>
    %453 = arith.mulf %452, %451 : vector<8x16x128xf32>
    %454 = arith.addf %445, %453 : vector<8x16x128xf32>
    %c0_285 = arith.constant 0 : index
    %c8_286 = arith.constant 8 : index
    %c0_287 = arith.constant 0 : index
    %c0_288 = arith.constant 0 : index
    %455 = vector.load %arg4[%c0_285, %c8_286, %c0_287, %c0_288] : memref<1x16x16x128xf32, #tpu.memory_space<vmem>>, vector<1x8x16x128xf32>
    %456 = vector.shape_cast %455 : vector<1x8x16x128xf32> to vector<8x16x128xf32>
    %457 = vector.shape_cast %454 : vector<8x16x128xf32> to vector<1x8x16x128xf32>
    tpu.vector_store %arg4[%c0_285, %c8_286, %c0_287, %c0_288], %457 {strides = array<i32>} : memref<1x16x16x128xf32, #tpu.memory_space<vmem>>, vector<1x8x16x128xf32>,
    return
  }
  func.func @transform_0(%arg0: i32, %arg1: i32) -> (i32, i32, i32) {
    %c0_i32 = arith.constant 0 : i32
    %c0_i32_0 = arith.constant 0 : i32
    %c0_i32_1 = arith.constant 0 : i32
    return %c0_i32, %c0_i32_0, %arg0 : i32, i32, i32
  }
  func.func @transform_1(%arg0: i32, %arg1: i32) -> i32 {
    %c0_i32 = arith.constant 0 : i32
    %c0_i32_0 = arith.constant 0 : i32
    return %c0_i32 : i32
  }
  func.func @transform_2(%arg0: i32, %arg1: i32) -> (i32, i32, i32, i32) {
    %c0_i32 = arith.constant 0 : i32
    %c0_i32_0 = arith.constant 0 : i32
    %c0_i32_1 = arith.constant 0 : i32
    return %arg1, %c0_i32, %c0_i32_0, %arg0 : i32, i32, i32, i32
  }
}

</mosaic_0001>

<llo_original>
// kernel: tpu_custom_call.1
$region0: #{tpu_custom_call.1}
  #allocation0 [shape = 'u32[]', space=smem, size = 0x4, offset = 0x4, fixed_abs, tag = 'smem constant byte address 0x4 - core index']
  #allocation1 [shape = 'u32[144,128]{1,0:T(1,128)}', space=vmem, size = 0x12000, scoped, tag = 'internal scratch']
  %s0 = inlined_call_operand.hbm [shape: f32[20,20,128], index: 0, kind: input, shape index: {}]
  %s1 = inlined_call_operand.vmem [shape: f32[150], index: 1, kind: input, shape index: {}]
  %s2 = inlined_call_operand.hbm [shape: f32[6,16,16,128], index: 2, kind: output, shape index: {}]
  %s3 = sld [smem:[#allocation0]]
  $region49: #{tpu_custom_call.1} parent=0
    _
  %s5 = ssub.s32 1, %s3
  %s6 = scalar_select 0, %s5, %s3
  $region1: #{tpu_custom_call.1} parent=0
    #allocation2 [shape = 'u8[245760]{0}', space=vmem, size = 0x3c000, scoped, tag = 'input window, operand 0, single buffered']
    #allocation3 [shape = 's32[2]{0}', space=sflag, size = 0x8, scoped, tag = 'scoped memory for tpu_custom_call.1']
    #allocation4 [shape = 's32[2]{0}', space=sflag, size = 0x8, scoped, tag = 'scoped memory for tpu_custom_call.1']
    #allocation5 [shape = 's32[2]{0}', space=sflag, size = 0x8, scoped, tag = 'scoped memory for tpu_custom_call.1']
    #allocation6 [shape = 'u8[1024]{0}', space=smem, size = 0x400, scoped, tag = 'input window, operand 1, single buffered']
    #allocation7 [shape = 'u8[262144]{0}', space=vmem, size = 0x40000, scoped, tag = 'output window, operand 0']
    %7 = vsyncpa [#allocation3], 0
    %8 = vsyncpa [#allocation5], 0
    %9 = vsyncpa [#allocation4], 0
    %s10 = scalar_lea.sflag [#allocation4], 1
    %11 = vsyncpa %s10, 0
    loop: start=0, step=1, limit=8
    $region2: #{tpu_custom_call.1} parent=1 // loop_pre_header
      _
    $region3: #{tpu_custom_call.1} parent=1 // loop_header
      %s13 = sphi 0, %s17
      %p14 = scmp.ge.s32.totalorder %s13, 8
      %s20 = sphi 0, %s32
      %s21 = sphi 0, %s28
      %s22 = sphi 0, %s20
      %s23 = sphi 0, %s21
      %s24 = sphi 0, %s22
      %s25 = sphi 0, %s23
      %s35 = sphi 0, %s37
      %s38 = sphi 0, %s35
      %s39 = sphi 0, %s38
      %s55 = sphi 0, %s39
      %s59 = sphi 0, %s59
      %s61 = sphi 0, %s59
      %s62 = sphi 0, %s61
      %s76 = sphi 0, %s62
      %s84 = sphi 0, %s86
      %s87 = sphi 0, %s84
      %s88 = sphi 0, %s87
      %s104 = sphi 0, %s88
    $region4: #{tpu_custom_call.1} parent=1 // loop_header_branch
      %16 = sbr.rel (%p14) target = $region8
    $region5: #{tpu_custom_call.1} parent=1 // loop_body
      %s18 = ssub.s32 %s13, 1
      %s19 = ssub.s32 %s13, 2
      %s26 = sadd.s32 1, %s21
      %p27 = scmp.ge.s32.totalorder %s26, 6
      %s28 = scalar_select %p27, 0, %s26
      %s29 = sadd.s32 1, %s20
      %s30 = scalar_select %p27, %s29, %s20
      %p31 = scmp.ge.s32.totalorder %s30, 1
      %s32 = scalar_select %p31, 0, %s30
      %s33 = ssub.s32 %s20, %s32
      %p34 = scmp.eq.s32.totalorder %s33, 0
      %s36 = sadd.s32 %s35, 1
      %s37 = scalar_select %p34, %s35, %s36
      %p40 = pneg %p34
      %p41 = scmp.eq.s32.totalorder %s13, 5
      %p42 = por %p40, %p41
      %p43 = scmp.ne.s32.totalorder %s35, %s38
      %p44 = scmp.eq.s32.totalorder %s13, 0
      %p45 = por %p43, %p44
      %p46 = scmp.ne.s32.totalorder %s35, %s38
      %p47 = scmp.eq.s32.totalorder %s18, 5
      %p48 = por %p46, %p47
      %p49 = scmp.ne.s32.totalorder %s38, %s39
      %p50 = scmp.eq.s32.totalorder %s18, 0
      %p51 = por %p49, %p50
      %p52 = scmp.ne.s32.totalorder %s38, %s39
      %p53 = scmp.eq.s32.totalorder %s19, 5
      %p54 = por %p52, %p53
      %p56 = scmp.ne.s32.totalorder %s39, %s55
      %p57 = scmp.eq.s32.totalorder %s19, 0
      %p58 = por %p56, %p57
      %s60 = sadd.s32 %s59, 1
      %p63 = scmp.eq.s32.totalorder %s13, 5
      %p64 = scmp.ne.s32.totalorder %s59, %s61
      %p65 = scmp.eq.s32.totalorder %s13, 0
      %p66 = por %p64, %p65
      %p67 = scmp.ne.s32.totalorder %s59, %s61
      %p68 = scmp.eq.s32.totalorder %s18, 5
      %p69 = por %p67, %p68
      %p70 = scmp.ne.s32.totalorder %s61, %s62
      %p71 = scmp.eq.s32.totalorder %s18, 0
      %p72 = por %p70, %p71
      %p73 = scmp.ne.s32.totalorder %s61, %s62
      %p74 = scmp.eq.s32.totalorder %s19, 5
      %p75 = por %p73, %p74
      %p77 = scmp.ne.s32.totalorder %s62, %s76
      %p78 = scmp.eq.s32.totalorder %s19, 0
      %p79 = por %p77, %p78
      %s80 = ssub.s32 %s21, %s28
      %s81 = ssub.s32 %s20, %s32
      %s82 = sor.u32 %s80, %s81
      %p83 = scmp.eq.s32.totalorder %s82, 0
      %s85 = sadd.s32 %s84, 1
      %s86 = scalar_select %p83, %s84, %s85
      %p89 = pneg %p83
      %p90 = scmp.eq.s32.totalorder %s13, 5
      %p91 = por %p89, %p90
      %p92 = scmp.ne.s32.totalorder %s84, %s87
      %p93 = scmp.eq.s32.totalorder %s13, 0
      %p94 = por %p92, %p93
      %p95 = scmp.ne.s32.totalorder %s84, %s87
      %p96 = scmp.eq.s32.totalorder %s18, 5
      %p97 = por %p95, %p96
      %p98 = scmp.ne.s32.totalorder %s87, %s88
      %p99 = scmp.eq.s32.totalorder %s18, 0
      %p100 = por %p98, %p99
      %p101 = scmp.ne.s32.totalorder %s87, %s88
      %p102 = scmp.eq.s32.totalorder %s19, 5
      %p103 = por %p101, %p102
      %p105 = scmp.ne.s32.totalorder %s88, %s104
      %p106 = scmp.eq.s32.totalorder %s19, 0
      %p107 = por %p105, %p106
      %p108 = scmp.le.s32.totalorder 1, %s13
      %p109 = scmp.lt.s32.totalorder %s13, 7
      %p110 = pnand %p108, %p109
      %p111 = pneg %p110
      // Predicated region
      $region9: #{tpu_custom_call.1} parent=5 // pred_check
        _
      $region10: #{tpu_custom_call.1} parent=5 // pred_check_branch
        %113 = sbr.rel (%p110) target = $region12
      $region11: #{tpu_custom_call.1} parent=5 // pred_region
        %s114 = ssub.s32 %s13, 1
        // Predicated region
        $region13: #{tpu_custom_call.1} parent=11 // pred_check
          %p115 = pneg %p51
        $region14: #{tpu_custom_call.1} parent=11 // pred_check_branch
          %117 = sbr.rel (%p115) target = $region16
        $region15: #{tpu_custom_call.1} parent=11 // pred_region
          %s119 = ssub.s32 7680, 7680
          %120 = vsyncadd [#allocation3], %s119
          %s121 = smul.addr %s22, 128
          %s122 = scalar_lea.hbm %s0, %s121
          %s123 = sshll.u32 [#allocation2], 4
          %s124 = int_to_ptr.vmem [resolvable:$true] %s123
          %129 = dma.hbm_to_vmem [thread:$0]  %s122, 7680, %s124, [#allocation3], 128, 128, 8
        $region16: #{tpu_custom_call.1} parent=11 // pred_fallthru
          _
        // Predicated region
        $region17: #{tpu_custom_call.1} parent=11 // pred_check
          %p130 = pneg %p72
        $region18: #{tpu_custom_call.1} parent=11 // pred_check_branch
          %132 = sbr.rel (%p130) target = $region20
        $region19: #{tpu_custom_call.1} parent=11 // pred_region
          %s134 = ssub.s32 32, 32
          %135 = vsyncadd [#allocation5], %s134
          %s137 = sshll.u32 %s1, 4
          %s138 = int_to_ptr.vmem [resolvable:$true] %s137
          %140 = dma.vmem_to_smem %s138, 32, [#allocation6], [#allocation5]
        $region20: #{tpu_custom_call.1} parent=11 // pred_fallthru
          _
      $region12: #{tpu_custom_call.1} parent=5 // pred_fallthru
        _
      %p141 = scmp.lt.s32.totalorder %s13, 6
      // Predicated region
      $region21: #{tpu_custom_call.1} parent=5 // pred_check
        %p142 = pneg %p141
      $region22: #{tpu_custom_call.1} parent=5 // pred_check_branch
        %144 = sbr.rel (%p142) target = $region24
      $region23: #{tpu_custom_call.1} parent=5 // pred_region
        _
      $region24: #{tpu_custom_call.1} parent=5 // pred_fallthru
        _
      %p145 = scmp.le.s32.totalorder 1, %s13
      %p146 = scmp.lt.s32.totalorder %s13, 7
      %p147 = pnand %p145, %p146
      %p148 = pneg %p147
      // Predicated region
      $region25: #{tpu_custom_call.1} parent=5 // pred_check
        _
      $region26: #{tpu_custom_call.1} parent=5 // pred_check_branch
        %150 = sbr.rel (%p147) target = $region28
      $region27: #{tpu_custom_call.1} parent=5 // pred_region
        %s151 = ssub.s32 %s13, 1
        // Predicated region
        $region29: #{tpu_custom_call.1} parent=27 // pred_check
          %p152 = pneg %p51
        $region30: #{tpu_custom_call.1} parent=27 // pred_check_branch
          %154 = sbr.rel (%p152) target = $region32
        $region31: #{tpu_custom_call.1} parent=27 // pred_region
          %155 = dma.done [#allocation3], 7680
        $region32: #{tpu_custom_call.1} parent=27 // pred_fallthru
          _
        // Predicated region
        $region33: #{tpu_custom_call.1} parent=27 // pred_check
          %p156 = pneg %p72
        $region34: #{tpu_custom_call.1} parent=27 // pred_check_branch
          %158 = sbr.rel (%p156) target = $region36
        $region35: #{tpu_custom_call.1} parent=27 // pred_region
          %159 = dma.done [#allocation5], 32
        $region36: #{tpu_custom_call.1} parent=27 // pred_fallthru
          _
        %160 = sfence
        %p161 = pneg %p51
        %p162 = pneg %p48
        %p163 = pneg %p72
        %p164 = pneg %p69
        %p165 = pneg %p100
        %p166 = pneg %p97
        %s167 = sand.u32 %s87, 1
        %s168 = scalar_lea.sflag [#allocation4], %s167
        %s169 = sand.u32 %s87, 1
        %s170 = smul.addr %s169, 256
        %s171 = scalar_lea.vmem [#allocation7], %s170
        %s172 = smul.u32 %s23, 25
        %s173 = sld [smem:[#allocation6 + %s172]]
        %v174 = vld [vmem:[#allocation2] sm:$0xff]
        %v175 = vld [vmem:[#allocation2 + $0x8] sm:$0xff]
        %v176 = vld [vmem:[#allocation2 + $0x18] sm:$0xff]
        %v177 = vld [vmem:[#allocation2 + $0x20] sm:$0xff]
        %v178 = vld [vmem:[#allocation2 + $0x30] sm:$0xff]
        %v179 = vld [vmem:[#allocation2 + $0x38] sm:$0xff]
        %v180 = vld [vmem:[#allocation2 + $0x48] sm:$0xff]
        %v181 = vld [vmem:[#allocation2 + $0x50] sm:$0xff]
        %v182 = vld [vmem:[#allocation2 + $0x60] sm:$0xff]
        %v183 = vld [vmem:[#allocation2 + $0x68] sm:$0xff]
        %v184 = vld [vmem:[#allocation2 + $0x78] sm:$0xff]
        %v185 = vld [vmem:[#allocation2 + $0x80] sm:$0xff]
        %v186 = vld [vmem:[#allocation2 + $0x90] sm:$0xff]
        %v187 = vld [vmem:[#allocation2 + $0x98] sm:$0xff]
        %v188 = vld [vmem:[#allocation2 + $0xa8] sm:$0xff]
        %v189 = vld [vmem:[#allocation2 + $0xb0] sm:$0xff]
        %v190 = vstv %s173
        %v191 = vmul.f32 %v190, %v174
        %v192 = vmul.f32 %v190, %v175
        %v193 = vmul.f32 %v190, %v176
        %v194 = vmul.f32 %v190, %v177
        %v195 = vmul.f32 %v190, %v178
        %v196 = vmul.f32 %v190, %v179
        %v197 = vmul.f32 %v190, %v180
        %v198 = vmul.f32 %v190, %v181
        %v199 = vmul.f32 %v190, %v182
        %v200 = vmul.f32 %v190, %v183
        %v201 = vmul.f32 %v190, %v184
        %v202 = vmul.f32 %v190, %v185
        %v203 = vmul.f32 %v190, %v186
        %v204 = vmul.f32 %v190, %v187
        %v205 = vmul.f32 %v190, %v188
        %v206 = vmul.f32 %v190, %v189
        %v207 = vadd.f32 %v191, 0.0
        %v208 = vadd.f32 %v192, 0.0
        %v209 = vadd.f32 %v193, 0.0
        %v210 = vadd.f32 %v194, 0.0
        %v211 = vadd.f32 %v195, 0.0
        %v212 = vadd.f32 %v196, 0.0
        %v213 = vadd.f32 %v197, 0.0
        %v214 = vadd.f32 %v198, 0.0
        %v215 = vadd.f32 %v199, 0.0
        %v216 = vadd.f32 %v200, 0.0
        %v217 = vadd.f32 %v201, 0.0
        %v218 = vadd.f32 %v202, 0.0
        %v219 = vadd.f32 %v203, 0.0
        %v220 = vadd.f32 %v204, 0.0
        %v221 = vadd.f32 %v205, 0.0
        %v222 = vadd.f32 %v206, 0.0
        %s223 = sadd.s32 %s172, 1
        %s224 = sld [smem:[#allocation6 + %s223]]
        %v225 = vld [vmem:[#allocation2 + $0x1] sm:$0xff]
        %v226 = vld [vmem:[#allocation2 + $0x9] sm:$0xff]
        %v227 = vld [vmem:[#allocation2 + $0x19] sm:$0xff]
        %v228 = vld [vmem:[#allocation2 + $0x21] sm:$0xff]
        %v229 = vld [vmem:[#allocation2 + $0x31] sm:$0xff]
        %v230 = vld [vmem:[#allocation2 + $0x39] sm:$0xff]
        %v231 = vld [vmem:[#allocation2 + $0x49] sm:$0xff]
        %v232 = vld [vmem:[#allocation2 + $0x51] sm:$0xff]
        %v233 = vld [vmem:[#allocation2 + $0x61] sm:$0xff]
        %v234 = vld [vmem:[#allocation2 + $0x69] sm:$0xff]
        %v235 = vld [vmem:[#allocation2 + $0x79] sm:$0xff]
        %v236 = vld [vmem:[#allocation2 + $0x81] sm:$0xff]
        %v237 = vld [vmem:[#allocation2 + $0x91] sm:$0xff]
        %v238 = vld [vmem:[#allocation2 + $0x99] sm:$0xff]
        %v239 = vld [vmem:[#allocation2 + $0xa9] sm:$0xff]
        %v240 = vld [vmem:[#allocation2 + $0xb1] sm:$0xff]
        %v241 = vstv %s224
        %v242 = vmul.f32 %v241, %v225
        %v243 = vmul.f32 %v241, %v226
        %v244 = vmul.f32 %v241, %v227
        %v245 = vmul.f32 %v241, %v228
        %v246 = vmul.f32 %v241, %v229
        %v247 = vmul.f32 %v241, %v230
        %v248 = vmul.f32 %v241, %v231
        %v249 = vmul.f32 %v241, %v232
        %v250 = vmul.f32 %v241, %v233
        %v251 = vmul.f32 %v241, %v234
        %v252 = vmul.f32 %v241, %v235
        %v253 = vmul.f32 %v241, %v236
        %v254 = vmul.f32 %v241, %v237
        %v255 = vmul.f32 %v241, %v238
        %v256 = vmul.f32 %v241, %v239
        %v257 = vmul.f32 %v241, %v240
        %v258 = vadd.f32 %v207, %v242
        %v259 = vadd.f32 %v208, %v243
        %v260 = vadd.f32 %v209, %v244
        %v261 = vadd.f32 %v210, %v245
        %v262 = vadd.f32 %v211, %v246
        %v263 = vadd.f32 %v212, %v247
        %v264 = vadd.f32 %v213, %v248
        %v265 = vadd.f32 %v214, %v249
        %v266 = vadd.f32 %v215, %v250
        %v267 = vadd.f32 %v216, %v251
        %v268 = vadd.f32 %v217, %v252
        %v269 = vadd.f32 %v218, %v253
        %v270 = vadd.f32 %v219, %v254
        %v271 = vadd.f32 %v220, %v255
        %v272 = vadd.f32 %v221, %v256
        %v273 = vadd.f32 %v222, %v257
        %s274 = sadd.s32 %s172, 2
        %s275 = sld [smem:[#allocation6 + %s274]]
        %v276 = vld [vmem:[#allocation2 + $0x2] sm:$0xff]
        %v277 = vld [vmem:[#allocation2 + $0xa] sm:$0xff]
        %v278 = vld [vmem:[#allocation2 + $0x1a] sm:$0xff]
        %v279 = vld [vmem:[#allocation2 + $0x22] sm:$0xff]
        %v280 = vld [vmem:[#allocation2 + $0x32] sm:$0xff]
        %v281 = vld [vmem:[#allocation2 + $0x3a] sm:$0xff]
        %v282 = vld [vmem:[#allocation2 + $0x4a] sm:$0xff]
        %v283 = vld [vmem:[#allocation2 + $0x52] sm:$0xff]
        %v284 = vld [vmem:[#allocation2 + $0x62] sm:$0xff]
        %v285 = vld [vmem:[#allocation2 + $0x6a] sm:$0xff]
        %v286 = vld [vmem:[#allocation2 + $0x7a] sm:$0xff]
        %v287 = vld [vmem:[#allocation2 + $0x82] sm:$0xff]
        %v288 = vld [vmem:[#allocation2 + $0x92] sm:$0xff]
        %v289 = vld [vmem:[#allocation2 + $0x9a] sm:$0xff]
        %v290 = vld [vmem:[#allocation2 + $0xaa] sm:$0xff]
        %v291 = vld [vmem:[#allocation2 + $0xb2] sm:$0xff]
        %v292 = vstv %s275
        %v293 = vmul.f32 %v292, %v276
        %v294 = vmul.f32 %v292, %v277
        %v295 = vmul.f32 %v292, %v278
        %v296 = vmul.f32 %v292, %v279
        %v297 = vmul.f32 %v292, %v280
        %v298 = vmul.f32 %v292, %v281
        %v299 = vmul.f32 %v292, %v282
        %v300 = vmul.f32 %v292, %v283
        %v301 = vmul.f32 %v292, %v284
        %v302 = vmul.f32 %v292, %v285
        %v303 = vmul.f32 %v292, %v286
        %v304 = vmul.f32 %v292, %v287
        %v305 = vmul.f32 %v292, %v288
        %v306 = vmul.f32 %v292, %v289
        %v307 = vmul.f32 %v292, %v290
        %v308 = vmul.f32 %v292, %v291
        %v309 = vadd.f32 %v258, %v293
        %v310 = vadd.f32 %v259, %v294
        %v311 = vadd.f32 %v260, %v295
        %v312 = vadd.f32 %v261, %v296
        %v313 = vadd.f32 %v262, %v297
        %v314 = vadd.f32 %v263, %v298
        %v315 = vadd.f32 %v264, %v299
        %v316 = vadd.f32 %v265, %v300
        %v317 = vadd.f32 %v266, %v301
        %v318 = vadd.f32 %v267, %v302
        %v319 = vadd.f32 %v268, %v303
        %v320 = vadd.f32 %v269, %v304
        %v321 = vadd.f32 %v270, %v305
        %v322 = vadd.f32 %v271, %v306
        %v323 = vadd.f32 %v272, %v307
        %v324 = vadd.f32 %v273, %v308
        %s325 = sadd.s32 %s172, 3
        %s326 = sld [smem:[#allocation6 + %s325]]
        %v327 = vld [vmem:[#allocation2 + $0x3] sm:$0xff]
        %v328 = vld [vmem:[#allocation2 + $0xb] sm:$0xff]
        %v329 = vld [vmem:[#allocation2 + $0x1b] sm:$0xff]
        %v330 = vld [vmem:[#allocation2 + $0x23] sm:$0xff]
        %v331 = vld [vmem:[#allocation2 + $0x33] sm:$0xff]
        %v332 = vld [vmem:[#allocation2 + $0x3b] sm:$0xff]
        %v333 = vld [vmem:[#allocation2 + $0x4b] sm:$0xff]
        %v334 = vld [vmem:[#allocation2 + $0x53] sm:$0xff]
        %v335 = vld [vmem:[#allocation2 + $0x63] sm:$0xff]
        %v336 = vld [vmem:[#allocation2 + $0x6b] sm:$0xff]
        %v337 = vld [vmem:[#allocation2 + $0x7b] sm:$0xff]
        %v338 = vld [vmem:[#allocation2 + $0x83] sm:$0xff]
        %v339 = vld [vmem:[#allocation2 + $0x93] sm:$0xff]
        %v340 = vld [vmem:[#allocation2 + $0x9b] sm:$0xff]
        %v341 = vld [vmem:[#allocation2 + $0xab] sm:$0xff]
        %v342 = vld [vmem:[#allocation2 + $0xb3] sm:$0xff]
        %v343 = vstv %s326
        %v344 = vmul.f32 %v343, %v327
        %v345 = vmul.f32 %v343, %v328
        %v346 = vmul.f32 %v343, %v329
        %v347 = vmul.f32 %v343, %v330
        %v348 = vmul.f32 %v343, %v331
        %v349 = vmul.f32 %v343, %v332
        %v350 = vmul.f32 %v343, %v333
        %v351 = vmul.f32 %v343, %v334
        %v352 = vmul.f32 %v343, %v335
        %v353 = vmul.f32 %v343, %v336
        %v354 = vmul.f32 %v343, %v337
        %v355 = vmul.f32 %v343, %v338
        %v356 = vmul.f32 %v343, %v339
        %v357 = vmul.f32 %v343, %v340
        %v358 = vmul.f32 %v343, %v341
        %v359 = vmul.f32 %v343, %v342
        %v360 = vadd.f32 %v309, %v344
        %v361 = vadd.f32 %v310, %v345
        %v362 = vadd.f32 %v311, %v346
        %v363 = vadd.f32 %v312, %v347
        %v364 = vadd.f32 %v313, %v348
        %v365 = vadd.f32 %v314, %v349
        %v366 = vadd.f32 %v315, %v350
        %v367 = vadd.f32 %v316, %v351
        %v368 = vadd.f32 %v317, %v352
        %v369 = vadd.f32 %v318, %v353
        %v370 = vadd.f32 %v319, %v354
        %v371 = vadd.f32 %v320, %v355
        %v372 = vadd.f32 %v321, %v356
        %v373 = vadd.f32 %v322, %v357
        %v374 = vadd.f32 %v323, %v358
        %v375 = vadd.f32 %v324, %v359
        %s376 = sadd.s32 %s172, 4
        %s377 = sld [smem:[#allocation6 + %s376]]
        %v378 = vld [vmem:[#allocation2 + $0x4] sm:$0xff]
        %v379 = vld [vmem:[#allocation2 + $0xc] sm:$0xff]
        %v380 = vld [vmem:[#allocation2 + $0x1c] sm:$0xff]
        %v381 = vld [vmem:[#allocation2 + $0x24] sm:$0xff]
        %v382 = vld [vmem:[#allocation2 + $0x34] sm:$0xff]
        %v383 = vld [vmem:[#allocation2 + $0x3c] sm:$0xff]
        %v384 = vld [vmem:[#allocation2 + $0x4c] sm:$0xff]
        %v385 = vld [vmem:[#allocation2 + $0x54] sm:$0xff]
        %v386 = vld [vmem:[#allocation2 + $0x64] sm:$0xff]
        %v387 = vld [vmem:[#allocation2 + $0x6c] sm:$0xff]
        %v388 = vld [vmem:[#allocation2 + $0x7c] sm:$0xff]
        %v389 = vld [vmem:[#allocation2 + $0x84] sm:$0xff]
        %v390 = vld [vmem:[#allocation2 + $0x94] sm:$0xff]
        %v391 = vld [vmem:[#allocation2 + $0x9c] sm:$0xff]
        %v392 = vld [vmem:[#allocation2 + $0xac] sm:$0xff]
        %v393 = vld [vmem:[#allocation2 + $0xb4] sm:$0xff]
        %v394 = vstv %s377
        %v395 = vmul.f32 %v394, %v378
        %v396 = vmul.f32 %v394, %v379
        %v397 = vmul.f32 %v394, %v380
        %v398 = vmul.f32 %v394, %v381
        %v399 = vmul.f32 %v394, %v382
        %v400 = vmul.f32 %v394, %v383
        %v401 = vmul.f32 %v394, %v384
        %v402 = vmul.f32 %v394, %v385
        %v403 = vmul.f32 %v394, %v386
        %v404 = vmul.f32 %v394, %v387
        %v405 = vmul.f32 %v394, %v388
        %v406 = vmul.f32 %v394, %v389
        %v407 = vmul.f32 %v394, %v390
        %v408 = vmul.f32 %v394, %v391
        %v409 = vmul.f32 %v394, %v392
        %v410 = vmul.f32 %v394, %v393
        %v411 = vadd.f32 %v360, %v395
        %v412 = vadd.f32 %v361, %v396
        %v413 = vadd.f32 %v362, %v397
        %v414 = vadd.f32 %v363, %v398
        %v415 = vadd.f32 %v364, %v399
        %v416 = vadd.f32 %v365, %v400
        %v417 = vadd.f32 %v366, %v401
        %v418 = vadd.f32 %v367, %v402
        %v419 = vadd.f32 %v368, %v403
        %v420 = vadd.f32 %v369, %v404
        %v421 = vadd.f32 %v370, %v405
        %v422 = vadd.f32 %v371, %v406
        %v423 = vadd.f32 %v372, %v407
        %v424 = vadd.f32 %v373, %v408
        %v425 = vadd.f32 %v374, %v409
        %v426 = vadd.f32 %v375, %v410
        %s427 = sadd.s32 %s172, 5
        %s428 = sld [smem:[#allocation6 + %s427]]
        %s429 = scalar_lea.vmem [#allocation2], 24
        %v430 = vld [vmem:[%s429] sm:$0xff]
        %v431 = vld [vmem:[%s429 + $0x8] sm:$0xff]
        %v432 = vld [vmem:[%s429 + $0x18] sm:$0xff]
        %v433 = vld [vmem:[%s429 + $0x20] sm:$0xff]
        %v434 = vld [vmem:[%s429 + $0x30] sm:$0xff]
        %v435 = vld [vmem:[%s429 + $0x38] sm:$0xff]
        %v436 = vld [vmem:[%s429 + $0x48] sm:$0xff]
        %v437 = vld [vmem:[%s429 + $0x50] sm:$0xff]
        %v438 = vld [vmem:[%s429 + $0x60] sm:$0xff]
        %v439 = vld [vmem:[%s429 + $0x68] sm:$0xff]
        %v440 = vld [vmem:[%s429 + $0x78] sm:$0xff]
        %v441 = vld [vmem:[%s429 + $0x80] sm:$0xff]
        %v442 = vld [vmem:[%s429 + $0x90] sm:$0xff]
        %v443 = vld [vmem:[%s429 + $0x98] sm:$0xff]
        %v444 = vld [vmem:[%s429 + $0xa8] sm:$0xff]
        %v445 = vld [vmem:[%s429 + $0xb0] sm:$0xff]
        %v446 = vstv %s428
        %v447 = vmul.f32 %v446, %v430
        %v448 = vmul.f32 %v446, %v431
        %v449 = vmul.f32 %v446, %v432
        %v450 = vmul.f32 %v446, %v433
        %v451 = vmul.f32 %v446, %v434
        %v452 = vmul.f32 %v446, %v435
        %v453 = vmul.f32 %v446, %v436
        %v454 = vmul.f32 %v446, %v437
        %v455 = vmul.f32 %v446, %v438
        %v456 = vmul.f32 %v446, %v439
        %v457 = vmul.f32 %v446, %v440
        %v458 = vmul.f32 %v446, %v441
        %v459 = vmul.f32 %v446, %v442
        %v460 = vmul.f32 %v446, %v443
        %v461 = vmul.f32 %v446, %v444
        %v462 = vmul.f32 %v446, %v445
        %v463 = vadd.f32 %v411, %v447
        %v464 = vadd.f32 %v412, %v448
        %v465 = vadd.f32 %v413, %v449
        %v466 = vadd.f32 %v414, %v450
        %v467 = vadd.f32 %v415, %v451
        %v468 = vadd.f32 %v416, %v452
        %v469 = vadd.f32 %v417, %v453
        %v470 = vadd.f32 %v418, %v454
        %v471 = vadd.f32 %v419, %v455
        %v472 = vadd.f32 %v420, %v456
        %v473 = vadd.f32 %v421, %v457
        %v474 = vadd.f32 %v422, %v458
        %v475 = vadd.f32 %v423, %v459
        %v476 = vadd.f32 %v424, %v460
        %v477 = vadd.f32 %v425, %v461
        %v478 = vadd.f32 %v426, %v462
        %s479 = sadd.s32 %s172, 6
        %s480 = sld [smem:[#allocation6 + %s479]]
        %v481 = vld [vmem:[%s429 + $0x1] sm:$0xff]
        %v482 = vld [vmem:[%s429 + $0x9] sm:$0xff]
        %v483 = vld [vmem:[%s429 + $0x19] sm:$0xff]
        %v484 = vld [vmem:[%s429 + $0x21] sm:$0xff]
        %v485 = vld [vmem:[%s429 + $0x31] sm:$0xff]
        %v486 = vld [vmem:[%s429 + $0x39] sm:$0xff]
        %v487 = vld [vmem:[%s429 + $0x49] sm:$0xff]
        %v488 = vld [vmem:[%s429 + $0x51] sm:$0xff]
        %v489 = vld [vmem:[%s429 + $0x61] sm:$0xff]
        %v490 = vld [vmem:[%s429 + $0x69] sm:$0xff]
        %v491 = vld [vmem:[%s429 + $0x79] sm:$0xff]
        %v492 = vld [vmem:[%s429 + $0x81] sm:$0xff]
        %v493 = vld [vmem:[%s429 + $0x91] sm:$0xff]
        %v494 = vld [vmem:[%s429 + $0x99] sm:$0xff]
        %v495 = vld [vmem:[%s429 + $0xa9] sm:$0xff]
        %v496 = vld [vmem:[%s429 + $0xb1] sm:$0xff]
        %v497 = vstv %s480
        %v498 = vmul.f32 %v497, %v481
        %v499 = vmul.f32 %v497, %v482
        %v500 = vmul.f32 %v497, %v483
        %v501 = vmul.f32 %v497, %v484
        %v502 = vmul.f32 %v497, %v485
        %v503 = vmul.f32 %v497, %v486
        %v504 = vmul.f32 %v497, %v487
        %v505 = vmul.f32 %v497, %v488
        %v506 = vmul.f32 %v497, %v489
        %v507 = vmul.f32 %v497, %v490
        %v508 = vmul.f32 %v497, %v491
        %v509 = vmul.f32 %v497, %v492
        %v510 = vmul.f32 %v497, %v493
        %v511 = vmul.f32 %v497, %v494
        %v512 = vmul.f32 %v497, %v495
        %v513 = vmul.f32 %v497, %v496
        %v514 = vadd.f32 %v463, %v498
        %v515 = vadd.f32 %v464, %v499
        %v516 = vadd.f32 %v465, %v500
        %v517 = vadd.f32 %v466, %v501
        %v518 = vadd.f32 %v467, %v502
        %v519 = vadd.f32 %v468, %v503
        %v520 = vadd.f32 %v469, %v504
        %v521 = vadd.f32 %v470, %v505
        %v522 = vadd.f32 %v471, %v506
        %v523 = vadd.f32 %v472, %v507
        %v524 = vadd.f32 %v473, %v508
        %v525 = vadd.f32 %v474, %v509
        %v526 = vadd.f32 %v475, %v510
        %v527 = vadd.f32 %v476, %v511
        %v528 = vadd.f32 %v477, %v512
        %v529 = vadd.f32 %v478, %v513
        %s530 = sadd.s32 %s172, 7
        %s531 = sld [smem:[#allocation6 + %s530]]
        %v532 = vld [vmem:[%s429 + $0x2] sm:$0xff]
        %v533 = vld [vmem:[%s429 + $0xa] sm:$0xff]
        %v534 = vld [vmem:[%s429 + $0x1a] sm:$0xff]
        %v535 = vld [vmem:[%s429 + $0x22] sm:$0xff]
        %v536 = vld [vmem:[%s429 + $0x32] sm:$0xff]
        %v537 = vld [vmem:[%s429 + $0x3a] sm:$0xff]
        %v538 = vld [vmem:[%s429 + $0x4a] sm:$0xff]
        %v539 = vld [vmem:[%s429 + $0x52] sm:$0xff]
        %v540 = vld [vmem:[%s429 + $0x62] sm:$0xff]
        %v541 = vld [vmem:[%s429 + $0x6a] sm:$0xff]
        %v542 = vld [vmem:[%s429 + $0x7a] sm:$0xff]
        %v543 = vld [vmem:[%s429 + $0x82] sm:$0xff]
        %v544 = vld [vmem:[%s429 + $0x92] sm:$0xff]
        %v545 = vld [vmem:[%s429 + $0x9a] sm:$0xff]
        %v546 = vld [vmem:[%s429 + $0xaa] sm:$0xff]
        %v547 = vld [vmem:[%s429 + $0xb2] sm:$0xff]
        %v548 = vstv %s531
        %v549 = vmul.f32 %v548, %v532
        %v550 = vmul.f32 %v548, %v533
        %v551 = vmul.f32 %v548, %v534
        %v552 = vmul.f32 %v548, %v535
        %v553 = vmul.f32 %v548, %v536
        %v554 = vmul.f32 %v548, %v537
        %v555 = vmul.f32 %v548, %v538
        %v556 = vmul.f32 %v548, %v539
        %v557 = vmul.f32 %v548, %v540
        %v558 = vmul.f32 %v548, %v541
        %v559 = vmul.f32 %v548, %v542
        %v560 = vmul.f32 %v548, %v543
        %v561 = vmul.f32 %v548, %v544
        %v562 = vmul.f32 %v548, %v545
        %v563 = vmul.f32 %v548, %v546
        %v564 = vmul.f32 %v548, %v547
        %v565 = vadd.f32 %v514, %v549
        %v566 = vadd.f32 %v515, %v550
        %v567 = vadd.f32 %v516, %v551
        %v568 = vadd.f32 %v517, %v552
        %v569 = vadd.f32 %v518, %v553
        %v570 = vadd.f32 %v519, %v554
        %v571 = vadd.f32 %v520, %v555
        %v572 = vadd.f32 %v521, %v556
        %v573 = vadd.f32 %v522, %v557
        %v574 = vadd.f32 %v523, %v558
        %v575 = vadd.f32 %v524, %v559
        %v576 = vadd.f32 %v525, %v560
        %v577 = vadd.f32 %v526, %v561
        %v578 = vadd.f32 %v527, %v562
        %v579 = vadd.f32 %v528, %v563
        %v580 = vadd.f32 %v529, %v564
        %s581 = sadd.s32 %s172, 8
        %s582 = sld [smem:[#allocation6 + %s581]]
        %v583 = vld [vmem:[%s429 + $0x3] sm:$0xff]
        %v584 = vld [vmem:[%s429 + $0xb] sm:$0xff]
        %v585 = vld [vmem:[%s429 + $0x1b] sm:$0xff]
        %v586 = vld [vmem:[%s429 + $0x23] sm:$0xff]
        %v587 = vld [vmem:[%s429 + $0x33] sm:$0xff]
        %v588 = vld [vmem:[%s429 + $0x3b] sm:$0xff]
        %v589 = vld [vmem:[%s429 + $0x4b] sm:$0xff]
        %v590 = vld [vmem:[%s429 + $0x53] sm:$0xff]
        %v591 = vld [vmem:[%s429 + $0x63] sm:$0xff]
        %v592 = vld [vmem:[%s429 + $0x6b] sm:$0xff]
        %v593 = vld [vmem:[%s429 + $0x7b] sm:$0xff]
        %v594 = vld [vmem:[%s429 + $0x83] sm:$0xff]
        %v595 = vld [vmem:[%s429 + $0x93] sm:$0xff]
        %v596 = vld [vmem:[%s429 + $0x9b] sm:$0xff]
        %v597 = vld [vmem:[%s429 + $0xab] sm:$0xff]
        %v598 = vld [vmem:[%s429 + $0xb3] sm:$0xff]
        %v599 = vstv %s582
        %v600 = vmul.f32 %v599, %v583
        %v601 = vmul.f32 %v599, %v584
        %v602 = vmul.f32 %v599, %v585
        %v603 = vmul.f32 %v599, %v586
        %v604 = vmul.f32 %v599, %v587
        %v605 = vmul.f32 %v599, %v588
        %v606 = vmul.f32 %v599, %v589
        %v607 = vmul.f32 %v599, %v590
        %v608 = vmul.f32 %v599, %v591
        %v609 = vmul.f32 %v599, %v592
        %v610 = vmul.f32 %v599, %v593
        %v611 = vmul.f32 %v599, %v594
        %v612 = vmul.f32 %v599, %v595
        %v613 = vmul.f32 %v599, %v596
        %v614 = vmul.f32 %v599, %v597
        %v615 = vmul.f32 %v599, %v598
        %v616 = vadd.f32 %v565, %v600
        %v617 = vadd.f32 %v566, %v601
        %v618 = vadd.f32 %v567, %v602
        %v619 = vadd.f32 %v568, %v603
        %v620 = vadd.f32 %v569, %v604
        %v621 = vadd.f32 %v570, %v605
        %v622 = vadd.f32 %v571, %v606
        %v623 = vadd.f32 %v572, %v607
        %v624 = vadd.f32 %v573, %v608
        %v625 = vadd.f32 %v574, %v609
        %v626 = vadd.f32 %v575, %v610
        %v627 = vadd.f32 %v576, %v611
        %v628 = vadd.f32 %v577, %v612
        %v629 = vadd.f32 %v578, %v613
        %v630 = vadd.f32 %v579, %v614
        %v631 = vadd.f32 %v580, %v615
        %s632 = sadd.s32 %s172, 9
        %s633 = sld [smem:[#allocation6 + %s632]]
        %v634 = vld [vmem:[%s429 + $0x4] sm:$0xff]
        %v635 = vld [vmem:[%s429 + $0xc] sm:$0xff]
        %v636 = vld [vmem:[%s429 + $0x1c] sm:$0xff]
        %v637 = vld [vmem:[%s429 + $0x24] sm:$0xff]
        %v638 = vld [vmem:[%s429 + $0x34] sm:$0xff]
        %v639 = vld [vmem:[%s429 + $0x3c] sm:$0xff]
        %v640 = vld [vmem:[%s429 + $0x4c] sm:$0xff]
        %v641 = vld [vmem:[%s429 + $0x54] sm:$0xff]
        %v642 = vld [vmem:[%s429 + $0x64] sm:$0xff]
        %v643 = vld [vmem:[%s429 + $0x6c] sm:$0xff]
        %v644 = vld [vmem:[%s429 + $0x7c] sm:$0xff]
        %v645 = vld [vmem:[%s429 + $0x84] sm:$0xff]
        %v646 = vld [vmem:[%s429 + $0x94] sm:$0xff]
        %v647 = vld [vmem:[%s429 + $0x9c] sm:$0xff]
        %v648 = vld [vmem:[%s429 + $0xac] sm:$0xff]
        %v649 = vld [vmem:[%s429 + $0xb4] sm:$0xff]
        %v650 = vstv %s633
        %v651 = vmul.f32 %v650, %v634
        %v652 = vmul.f32 %v650, %v635
        %v653 = vmul.f32 %v650, %v636
        %v654 = vmul.f32 %v650, %v637
        %v655 = vmul.f32 %v650, %v638
        %v656 = vmul.f32 %v650, %v639
        %v657 = vmul.f32 %v650, %v640
        %v658 = vmul.f32 %v650, %v641
        %v659 = vmul.f32 %v650, %v642
        %v660 = vmul.f32 %v650, %v643
        %v661 = vmul.f32 %v650, %v644
        %v662 = vmul.f32 %v650, %v645
        %v663 = vmul.f32 %v650, %v646
        %v664 = vmul.f32 %v650, %v647
        %v665 = vmul.f32 %v650, %v648
        %v666 = vmul.f32 %v650, %v649
        %v667 = vadd.f32 %v616, %v651
        %v668 = vadd.f32 %v617, %v652
        %v669 = vadd.f32 %v618, %v653
        %v670 = vadd.f32 %v619, %v654
        %v671 = vadd.f32 %v620, %v655
        %v672 = vadd.f32 %v621, %v656
        %v673 = vadd.f32 %v622, %v657
        %v674 = vadd.f32 %v623, %v658
        %v675 = vadd.f32 %v624, %v659
        %v676 = vadd.f32 %v625, %v660
        %v677 = vadd.f32 %v626, %v661
        %v678 = vadd.f32 %v627, %v662
        %v679 = vadd.f32 %v628, %v663
        %v680 = vadd.f32 %v629, %v664
        %v681 = vadd.f32 %v630, %v665
        %v682 = vadd.f32 %v631, %v666
        %s683 = sadd.s32 %s172, 10
        %s684 = sld [smem:[#allocation6 + %s683]]
        %s685 = scalar_lea.vmem [#allocation2], 48
        %v686 = vld [vmem:[%s685] sm:$0xff]
        %v687 = vld [vmem:[%s685 + $0x8] sm:$0xff]
        %v688 = vld [vmem:[%s685 + $0x18] sm:$0xff]
        %v689 = vld [vmem:[%s685 + $0x20] sm:$0xff]
        %v690 = vld [vmem:[%s685 + $0x30] sm:$0xff]
        %v691 = vld [vmem:[%s685 + $0x38] sm:$0xff]
        %v692 = vld [vmem:[%s685 + $0x48] sm:$0xff]
        %v693 = vld [vmem:[%s685 + $0x50] sm:$0xff]
        %v694 = vld [vmem:[%s685 + $0x60] sm:$0xff]
        %v695 = vld [vmem:[%s685 + $0x68] sm:$0xff]
        %v696 = vld [vmem:[%s685 + $0x78] sm:$0xff]
        %v697 = vld [vmem:[%s685 + $0x80] sm:$0xff]
        %v698 = vld [vmem:[%s685 + $0x90] sm:$0xff]
        %v699 = vld [vmem:[%s685 + $0x98] sm:$0xff]
        %v700 = vld [vmem:[%s685 + $0xa8] sm:$0xff]
        %v701 = vld [vmem:[%s685 + $0xb0] sm:$0xff]
        %v702 = vstv %s684
        %v703 = vmul.f32 %v702, %v686
        %v704 = vmul.f32 %v702, %v687
        %v705 = vmul.f32 %v702, %v688
        %v706 = vmul.f32 %v702, %v689
        %v707 = vmul.f32 %v702, %v690
        %v708 = vmul.f32 %v702, %v691
        %v709 = vmul.f32 %v702, %v692
        %v710 = vmul.f32 %v702, %v693
        %v711 = vmul.f32 %v702, %v694
        %v712 = vmul.f32 %v702, %v695
        %v713 = vmul.f32 %v702, %v696
        %v714 = vmul.f32 %v702, %v697
        %v715 = vmul.f32 %v702, %v698
        %v716 = vmul.f32 %v702, %v699
        %v717 = vmul.f32 %v702, %v700
        %v718 = vmul.f32 %v702, %v701
        %v719 = vadd.f32 %v667, %v703
        %v720 = vadd.f32 %v668, %v704
        %v721 = vadd.f32 %v669, %v705
        %v722 = vadd.f32 %v670, %v706
        %v723 = vadd.f32 %v671, %v707
        %v724 = vadd.f32 %v672, %v708
        %v725 = vadd.f32 %v673, %v709
        %v726 = vadd.f32 %v674, %v710
        %v727 = vadd.f32 %v675, %v711
        %v728 = vadd.f32 %v676, %v712
        %v729 = vadd.f32 %v677, %v713
        %v730 = vadd.f32 %v678, %v714
        %v731 = vadd.f32 %v679, %v715
        %v732 = vadd.f32 %v680, %v716
        %v733 = vadd.f32 %v681, %v717
        %v734 = vadd.f32 %v682, %v718
        %s735 = sadd.s32 %s172, 11
        %s736 = sld [smem:[#allocation6 + %s735]]
        %v737 = vld [vmem:[%s685 + $0x1] sm:$0xff]
        %v738 = vld [vmem:[%s685 + $0x9] sm:$0xff]
        %v739 = vld [vmem:[%s685 + $0x19] sm:$0xff]
        %v740 = vld [vmem:[%s685 + $0x21] sm:$0xff]
        %v741 = vld [vmem:[%s685 + $0x31] sm:$0xff]
        %v742 = vld [vmem:[%s685 + $0x39] sm:$0xff]
        %v743 = vld [vmem:[%s685 + $0x49] sm:$0xff]
        %v744 = vld [vmem:[%s685 + $0x51] sm:$0xff]
        %v745 = vld [vmem:[%s685 + $0x61] sm:$0xff]
        %v746 = vld [vmem:[%s685 + $0x69] sm:$0xff]
        %v747 = vld [vmem:[%s685 + $0x79] sm:$0xff]
        %v748 = vld [vmem:[%s685 + $0x81] sm:$0xff]
        %v749 = vld [vmem:[%s685 + $0x91] sm:$0xff]
        %v750 = vld [vmem:[%s685 + $0x99] sm:$0xff]
        %v751 = vld [vmem:[%s685 + $0xa9] sm:$0xff]
        %v752 = vld [vmem:[%s685 + $0xb1] sm:$0xff]
        %v753 = vstv %s736
        %v754 = vmul.f32 %v753, %v737
        %v755 = vmul.f32 %v753, %v738
        %v756 = vmul.f32 %v753, %v739
        %v757 = vmul.f32 %v753, %v740
        %v758 = vmul.f32 %v753, %v741
        %v759 = vmul.f32 %v753, %v742
        %v760 = vmul.f32 %v753, %v743
        %v761 = vmul.f32 %v753, %v744
        %v762 = vmul.f32 %v753, %v745
        %v763 = vmul.f32 %v753, %v746
        %v764 = vmul.f32 %v753, %v747
        %v765 = vmul.f32 %v753, %v748
        %v766 = vmul.f32 %v753, %v749
        %v767 = vmul.f32 %v753, %v750
        %v768 = vmul.f32 %v753, %v751
        %v769 = vmul.f32 %v753, %v752
        %v770 = vadd.f32 %v719, %v754
        %v771 = vadd.f32 %v720, %v755
        %v772 = vadd.f32 %v721, %v756
        %v773 = vadd.f32 %v722, %v757
        %v774 = vadd.f32 %v723, %v758
        %v775 = vadd.f32 %v724, %v759
        %v776 = vadd.f32 %v725, %v760
        %v777 = vadd.f32 %v726, %v761
        %v778 = vadd.f32 %v727, %v762
        %v779 = vadd.f32 %v728, %v763
        %v780 = vadd.f32 %v729, %v764
        %v781 = vadd.f32 %v730, %v765
        %v782 = vadd.f32 %v731, %v766
        %v783 = vadd.f32 %v732, %v767
        %v784 = vadd.f32 %v733, %v768
        %v785 = vadd.f32 %v734, %v769
        %s786 = sadd.s32 %s172, 12
        %s787 = sld [smem:[#allocation6 + %s786]]
        %v788 = vld [vmem:[%s685 + $0x2] sm:$0xff]
        %v789 = vld [vmem:[%s685 + $0xa] sm:$0xff]
        %v790 = vld [vmem:[%s685 + $0x1a] sm:$0xff]
        %v791 = vld [vmem:[%s685 + $0x22] sm:$0xff]
        %v792 = vld [vmem:[%s685 + $0x32] sm:$0xff]
        %v793 = vld [vmem:[%s685 + $0x3a] sm:$0xff]
        %v794 = vld [vmem:[%s685 + $0x4a] sm:$0xff]
        %v795 = vld [vmem:[%s685 + $0x52] sm:$0xff]
        %v796 = vld [vmem:[%s685 + $0x62] sm:$0xff]
        %v797 = vld [vmem:[%s685 + $0x6a] sm:$0xff]
        %v798 = vld [vmem:[%s685 + $0x7a] sm:$0xff]
        %v799 = vld [vmem:[%s685 + $0x82] sm:$0xff]
        %v800 = vld [vmem:[%s685 + $0x92] sm:$0xff]
        %v801 = vld [vmem:[%s685 + $0x9a] sm:$0xff]
        %v802 = vld [vmem:[%s685 + $0xaa] sm:$0xff]
        %v803 = vld [vmem:[%s685 + $0xb2] sm:$0xff]
        %v804 = vstv %s787
        %v805 = vmul.f32 %v804, %v788
        %v806 = vmul.f32 %v804, %v789
        %v807 = vmul.f32 %v804, %v790
        %v808 = vmul.f32 %v804, %v791
        %v809 = vmul.f32 %v804, %v792
        %v810 = vmul.f32 %v804, %v793
        %v811 = vmul.f32 %v804, %v794
        %v812 = vmul.f32 %v804, %v795
        %v813 = vmul.f32 %v804, %v796
        %v814 = vmul.f32 %v804, %v797
        %v815 = vmul.f32 %v804, %v798
        %v816 = vmul.f32 %v804, %v799
        %v817 = vmul.f32 %v804, %v800
        %v818 = vmul.f32 %v804, %v801
        %v819 = vmul.f32 %v804, %v802
        %v820 = vmul.f32 %v804, %v803
        %v821 = vadd.f32 %v770, %v805
        %v822 = vadd.f32 %v771, %v806
        %v823 = vadd.f32 %v772, %v807
        %v824 = vadd.f32 %v773, %v808
        %v825 = vadd.f32 %v774, %v809
        %v826 = vadd.f32 %v775, %v810
        %v827 = vadd.f32 %v776, %v811
        %v828 = vadd.f32 %v777, %v812
        %v829 = vadd.f32 %v778, %v813
        %v830 = vadd.f32 %v779, %v814
        %v831 = vadd.f32 %v780, %v815
        %v832 = vadd.f32 %v781, %v816
        %v833 = vadd.f32 %v782, %v817
        %v834 = vadd.f32 %v783, %v818
        %v835 = vadd.f32 %v784, %v819
        %v836 = vadd.f32 %v785, %v820
        %s837 = sadd.s32 %s172, 13
        %s838 = sld [smem:[#allocation6 + %s837]]
        %v839 = vld [vmem:[%s685 + $0x3] sm:$0xff]
        %v840 = vld [vmem:[%s685 + $0xb] sm:$0xff]
        %v841 = vld [vmem:[%s685 + $0x1b] sm:$0xff]
        %v842 = vld [vmem:[%s685 + $0x23] sm:$0xff]
        %v843 = vld [vmem:[%s685 + $0x33] sm:$0xff]
        %v844 = vld [vmem:[%s685 + $0x3b] sm:$0xff]
        %v845 = vld [vmem:[%s685 + $0x4b] sm:$0xff]
        %v846 = vld [vmem:[%s685 + $0x53] sm:$0xff]
        %v847 = vld [vmem:[%s685 + $0x63] sm:$0xff]
        %v848 = vld [vmem:[%s685 + $0x6b] sm:$0xff]
        %v849 = vld [vmem:[%s685 + $0x7b] sm:$0xff]
        %v850 = vld [vmem:[%s685 + $0x83] sm:$0xff]
        %v851 = vld [vmem:[%s685 + $0x93] sm:$0xff]
        %v852 = vld [vmem:[%s685 + $0x9b] sm:$0xff]
        %v853 = vld [vmem:[%s685 + $0xab] sm:$0xff]
        %v854 = vld [vmem:[%s685 + $0xb3] sm:$0xff]
        %v855 = vstv %s838
        %v856 = vmul.f32 %v855, %v839
        %v857 = vmul.f32 %v855, %v840
        %v858 = vmul.f32 %v855, %v841
        %v859 = vmul.f32 %v855, %v842
        %v860 = vmul.f32 %v855, %v843
        %v861 = vmul.f32 %v855, %v844
        %v862 = vmul.f32 %v855, %v845
        %v863 = vmul.f32 %v855, %v846
        %v864 = vmul.f32 %v855, %v847
        %v865 = vmul.f32 %v855, %v848
        %v866 = vmul.f32 %v855, %v849
        %v867 = vmul.f32 %v855, %v850
        %v868 = vmul.f32 %v855, %v851
        %v869 = vmul.f32 %v855, %v852
        %v870 = vmul.f32 %v855, %v853
        %v871 = vmul.f32 %v855, %v854
        %v872 = vadd.f32 %v821, %v856
        %v873 = vadd.f32 %v822, %v857
        %v874 = vadd.f32 %v823, %v858
        %v875 = vadd.f32 %v824, %v859
        %v876 = vadd.f32 %v825, %v860
        %v877 = vadd.f32 %v826, %v861
        %v878 = vadd.f32 %v827, %v862
        %v879 = vadd.f32 %v828, %v863
        %v880 = vadd.f32 %v829, %v864
        %v881 = vadd.f32 %v830, %v865
        %v882 = vadd.f32 %v831, %v866
        %v883 = vadd.f32 %v832, %v867
        %v884 = vadd.f32 %v833, %v868
        %v885 = vadd.f32 %v834, %v869
        %v886 = vadd.f32 %v835, %v870
        %v887 = vadd.f32 %v836, %v871
        %s888 = sadd.s32 %s172, 14
        %s889 = sld [smem:[#allocation6 + %s888]]
        %v890 = vld [vmem:[%s685 + $0x4] sm:$0xff]
        %v891 = vld [vmem:[%s685 + $0xc] sm:$0xff]
        %v892 = vld [vmem:[%s685 + $0x1c] sm:$0xff]
        %v893 = vld [vmem:[%s685 + $0x24] sm:$0xff]
        %v894 = vld [vmem:[%s685 + $0x34] sm:$0xff]
        %v895 = vld [vmem:[%s685 + $0x3c] sm:$0xff]
        %v896 = vld [vmem:[%s685 + $0x4c] sm:$0xff]
        %v897 = vld [vmem:[%s685 + $0x54] sm:$0xff]
        %v898 = vld [vmem:[%s685 + $0x64] sm:$0xff]
        %v899 = vld [vmem:[%s685 + $0x6c] sm:$0xff]
        %v900 = vld [vmem:[%s685 + $0x7c] sm:$0xff]
        %v901 = vld [vmem:[%s685 + $0x84] sm:$0xff]
        %v902 = vld [vmem:[%s685 + $0x94] sm:$0xff]
        %v903 = vld [vmem:[%s685 + $0x9c] sm:$0xff]
        %v904 = vld [vmem:[%s685 + $0xac] sm:$0xff]
        %v905 = vld [vmem:[%s685 + $0xb4] sm:$0xff]
        %v906 = vstv %s889
        %v907 = vmul.f32 %v906, %v890
        %v908 = vmul.f32 %v906, %v891
        %v909 = vmul.f32 %v906, %v892
        %v910 = vmul.f32 %v906, %v893
        %v911 = vmul.f32 %v906, %v894
        %v912 = vmul.f32 %v906, %v895
        %v913 = vmul.f32 %v906, %v896
        %v914 = vmul.f32 %v906, %v897
        %v915 = vmul.f32 %v906, %v898
        %v916 = vmul.f32 %v906, %v899
        %v917 = vmul.f32 %v906, %v900
        %v918 = vmul.f32 %v906, %v901
        %v919 = vmul.f32 %v906, %v902
        %v920 = vmul.f32 %v906, %v903
        %v921 = vmul.f32 %v906, %v904
        %v922 = vmul.f32 %v906, %v905
        %v923 = vadd.f32 %v872, %v907
        %v924 = vadd.f32 %v873, %v908
        %v925 = vadd.f32 %v874, %v909
        %v926 = vadd.f32 %v875, %v910
        %v927 = vadd.f32 %v876, %v911
        %v928 = vadd.f32 %v877, %v912
        %v929 = vadd.f32 %v878, %v913
        %v930 = vadd.f32 %v879, %v914
        %v931 = vadd.f32 %v880, %v915
        %v932 = vadd.f32 %v881, %v916
        %v933 = vadd.f32 %v882, %v917
        %v934 = vadd.f32 %v883, %v918
        %v935 = vadd.f32 %v884, %v919
        %v936 = vadd.f32 %v885, %v920
        %v937 = vadd.f32 %v886, %v921
        %v938 = vadd.f32 %v887, %v922
        %s939 = sadd.s32 %s172, 15
        %s940 = sld [smem:[#allocation6 + %s939]]
        %s941 = scalar_lea.vmem [#allocation2], 72
        %v942 = vld [vmem:[%s941] sm:$0xff]
        %v943 = vld [vmem:[%s941 + $0x8] sm:$0xff]
        %v944 = vld [vmem:[%s941 + $0x18] sm:$0xff]
        %v945 = vld [vmem:[%s941 + $0x20] sm:$0xff]
        %v946 = vld [vmem:[%s941 + $0x30] sm:$0xff]
        %v947 = vld [vmem:[%s941 + $0x38] sm:$0xff]
        %v948 = vld [vmem:[%s941 + $0x48] sm:$0xff]
        %v949 = vld [vmem:[%s941 + $0x50] sm:$0xff]
        %v950 = vld [vmem:[%s941 + $0x60] sm:$0xff]
        %v951 = vld [vmem:[%s941 + $0x68] sm:$0xff]
        %v952 = vld [vmem:[%s941 + $0x78] sm:$0xff]
        %v953 = vld [vmem:[%s941 + $0x80] sm:$0xff]
        %v954 = vld [vmem:[%s941 + $0x90] sm:$0xff]
        %v955 = vld [vmem:[%s941 + $0x98] sm:$0xff]
        %v956 = vld [vmem:[%s941 + $0xa8] sm:$0xff]
        %v957 = vld [vmem:[%s941 + $0xb0] sm:$0xff]
        %v958 = vstv %s940
        %v959 = vmul.f32 %v958, %v942
        %v960 = vmul.f32 %v958, %v943
        %v961 = vmul.f32 %v958, %v944
        %v962 = vmul.f32 %v958, %v945
        %v963 = vmul.f32 %v958, %v946
        %v964 = vmul.f32 %v958, %v947
        %v965 = vmul.f32 %v958, %v948
        %v966 = vmul.f32 %v958, %v949
        %v967 = vmul.f32 %v958, %v950
        %v968 = vmul.f32 %v958, %v951
        %v969 = vmul.f32 %v958, %v952
        %v970 = vmul.f32 %v958, %v953
        %v971 = vmul.f32 %v958, %v954
        %v972 = vmul.f32 %v958, %v955
        %v973 = vmul.f32 %v958, %v956
        %v974 = vmul.f32 %v958, %v957
        %v975 = vadd.f32 %v923, %v959
        %v976 = vadd.f32 %v924, %v960
        %v977 = vadd.f32 %v925, %v961
        %v978 = vadd.f32 %v926, %v962
        %v979 = vadd.f32 %v927, %v963
        %v980 = vadd.f32 %v928, %v964
        %v981 = vadd.f32 %v929, %v965
        %v982 = vadd.f32 %v930, %v966
        %v983 = vadd.f32 %v931, %v967
        %v984 = vadd.f32 %v932, %v968
        %v985 = vadd.f32 %v933, %v969
        %v986 = vadd.f32 %v934, %v970
        %v987 = vadd.f32 %v935, %v971
        %v988 = vadd.f32 %v936, %v972
        %v989 = vadd.f32 %v937, %v973
        %v990 = vadd.f32 %v938, %v974
        %s991 = sadd.s32 %s172, 16
        %s992 = sld [smem:[#allocation6 + %s991]]
        %v993 = vld [vmem:[%s941 + $0x1] sm:$0xff]
        %v994 = vld [vmem:[%s941 + $0x9] sm:$0xff]
        %v995 = vld [vmem:[%s941 + $0x19] sm:$0xff]
        %v996 = vld [vmem:[%s941 + $0x21] sm:$0xff]
        %v997 = vld [vmem:[%s941 + $0x31] sm:$0xff]
        %v998 = vld [vmem:[%s941 + $0x39] sm:$0xff]
        %v999 = vld [vmem:[%s941 + $0x49] sm:$0xff]
        %v1000 = vld [vmem:[%s941 + $0x51] sm:$0xff]
        %v1001 = vld [vmem:[%s941 + $0x61] sm:$0xff]
        %v1002 = vld [vmem:[%s941 + $0x69] sm:$0xff]
        %v1003 = vld [vmem:[%s941 + $0x79] sm:$0xff]
        %v1004 = vld [vmem:[%s941 + $0x81] sm:$0xff]
        %v1005 = vld [vmem:[%s941 + $0x91] sm:$0xff]
        %v1006 = vld [vmem:[%s941 + $0x99] sm:$0xff]
        %v1007 = vld [vmem:[%s941 + $0xa9] sm:$0xff]
        %v1008 = vld [vmem:[%s941 + $0xb1] sm:$0xff]
        %v1009 = vstv %s992
        %v1010 = vmul.f32 %v1009, %v993
        %v1011 = vmul.f32 %v1009, %v994
        %v1012 = vmul.f32 %v1009, %v995
        %v1013 = vmul.f32 %v1009, %v996
        %v1014 = vmul.f32 %v1009, %v997
        %v1015 = vmul.f32 %v1009, %v998
        %v1016 = vmul.f32 %v1009, %v999
        %v1017 = vmul.f32 %v1009, %v1000
        %v1018 = vmul.f32 %v1009, %v1001
        %v1019 = vmul.f32 %v1009, %v1002
        %v1020 = vmul.f32 %v1009, %v1003
        %v1021 = vmul.f32 %v1009, %v1004
        %v1022 = vmul.f32 %v1009, %v1005
        %v1023 = vmul.f32 %v1009, %v1006
        %v1024 = vmul.f32 %v1009, %v1007
        %v1025 = vmul.f32 %v1009, %v1008
        %v1026 = vadd.f32 %v975, %v1010
        %v1027 = vadd.f32 %v976, %v1011
        %v1028 = vadd.f32 %v977, %v1012
        %v1029 = vadd.f32 %v978, %v1013
        %v1030 = vadd.f32 %v979, %v1014
        %v1031 = vadd.f32 %v980, %v1015
        %v1032 = vadd.f32 %v981, %v1016
        %v1033 = vadd.f32 %v982, %v1017
        %v1034 = vadd.f32 %v983, %v1018
        %v1035 = vadd.f32 %v984, %v1019
        %v1036 = vadd.f32 %v985, %v1020
        %v1037 = vadd.f32 %v986, %v1021
        %v1038 = vadd.f32 %v987, %v1022
        %v1039 = vadd.f32 %v988, %v1023
        %v1040 = vadd.f32 %v989, %v1024
        %v1041 = vadd.f32 %v990, %v1025
        %s1042 = sadd.s32 %s172, 17
        %s1043 = sld [smem:[#allocation6 + %s1042]]
        %v1044 = vld [vmem:[%s941 + $0x2] sm:$0xff]
        %v1045 = vld [vmem:[%s941 + $0xa] sm:$0xff]
        %v1046 = vld [vmem:[%s941 + $0x1a] sm:$0xff]
        %v1047 = vld [vmem:[%s941 + $0x22] sm:$0xff]
        %v1048 = vld [vmem:[%s941 + $0x32] sm:$0xff]
        %v1049 = vld [vmem:[%s941 + $0x3a] sm:$0xff]
        %v1050 = vld [vmem:[%s941 + $0x4a] sm:$0xff]
        %v1051 = vld [vmem:[%s941 + $0x52] sm:$0xff]
        %v1052 = vld [vmem:[%s941 + $0x62] sm:$0xff]
        %v1053 = vld [vmem:[%s941 + $0x6a] sm:$0xff]
        %v1054 = vld [vmem:[%s941 + $0x7a] sm:$0xff]
        %v1055 = vld [vmem:[%s941 + $0x82] sm:$0xff]
        %v1056 = vld [vmem:[%s941 + $0x92] sm:$0xff]
        %v1057 = vld [vmem:[%s941 + $0x9a] sm:$0xff]
        %v1058 = vld [vmem:[%s941 + $0xaa] sm:$0xff]
        %v1059 = vld [vmem:[%s941 + $0xb2] sm:$0xff]
        %v1060 = vstv %s1043
        %v1061 = vmul.f32 %v1060, %v1044
        %v1062 = vmul.f32 %v1060, %v1045
        %v1063 = vmul.f32 %v1060, %v1046
        %v1064 = vmul.f32 %v1060, %v1047
        %v1065 = vmul.f32 %v1060, %v1048
        %v1066 = vmul.f32 %v1060, %v1049
        %v1067 = vmul.f32 %v1060, %v1050
        %v1068 = vmul.f32 %v1060, %v1051
        %v1069 = vmul.f32 %v1060, %v1052
        %v1070 = vmul.f32 %v1060, %v1053
        %v1071 = vmul.f32 %v1060, %v1054
        %v1072 = vmul.f32 %v1060, %v1055
        %v1073 = vmul.f32 %v1060, %v1056
        %v1074 = vmul.f32 %v1060, %v1057
        %v1075 = vmul.f32 %v1060, %v1058
        %v1076 = vmul.f32 %v1060, %v1059
        %v1077 = vadd.f32 %v1026, %v1061
        %v1078 = vadd.f32 %v1027, %v1062
        %v1079 = vadd.f32 %v1028, %v1063
        %v1080 = vadd.f32 %v1029, %v1064
        %v1081 = vadd.f32 %v1030, %v1065
        %v1082 = vadd.f32 %v1031, %v1066
        %v1083 = vadd.f32 %v1032, %v1067
        %v1084 = vadd.f32 %v1033, %v1068
        %v1085 = vadd.f32 %v1034, %v1069
        %v1086 = vadd.f32 %v1035, %v1070
        %v1087 = vadd.f32 %v1036, %v1071
        %v1088 = vadd.f32 %v1037, %v1072
        %v1089 = vadd.f32 %v1038, %v1073
        %v1090 = vadd.f32 %v1039, %v1074
        %v1091 = vadd.f32 %v1040, %v1075
        %v1092 = vadd.f32 %v1041, %v1076
        %s1093 = sadd.s32 %s172, 18
        %s1094 = sld [smem:[#allocation6 + %s1093]]
        %v1095 = vld [vmem:[%s941 + $0x3] sm:$0xff]
        %v1096 = vld [vmem:[%s941 + $0xb] sm:$0xff]
        %v1097 = vld [vmem:[%s941 + $0x1b] sm:$0xff]
        %v1098 = vld [vmem:[%s941 + $0x23] sm:$0xff]
        %v1099 = vld [vmem:[%s941 + $0x33] sm:$0xff]
        %v1100 = vld [vmem:[%s941 + $0x3b] sm:$0xff]
        %v1101 = vld [vmem:[%s941 + $0x4b] sm:$0xff]
        %v1102 = vld [vmem:[%s941 + $0x53] sm:$0xff]
        %v1103 = vld [vmem:[%s941 + $0x63] sm:$0xff]
        %v1104 = vld [vmem:[%s941 + $0x6b] sm:$0xff]
        %v1105 = vld [vmem:[%s941 + $0x7b] sm:$0xff]
        %v1106 = vld [vmem:[%s941 + $0x83] sm:$0xff]
        %v1107 = vld [vmem:[%s941 + $0x93] sm:$0xff]
        %v1108 = vld [vmem:[%s941 + $0x9b] sm:$0xff]
        %v1109 = vld [vmem:[%s941 + $0xab] sm:$0xff]
        %v1110 = vld [vmem:[%s941 + $0xb3] sm:$0xff]
        %v1111 = vstv %s1094
        %v1112 = vmul.f32 %v1111, %v1095
        %v1113 = vmul.f32 %v1111, %v1096
        %v1114 = vmul.f32 %v1111, %v1097
        %v1115 = vmul.f32 %v1111, %v1098
        %v1116 = vmul.f32 %v1111, %v1099
        %v1117 = vmul.f32 %v1111, %v1100
        %v1118 = vmul.f32 %v1111, %v1101
        %v1119 = vmul.f32 %v1111, %v1102
        %v1120 = vmul.f32 %v1111, %v1103
        %v1121 = vmul.f32 %v1111, %v1104
        %v1122 = vmul.f32 %v1111, %v1105
        %v1123 = vmul.f32 %v1111, %v1106
        %v1124 = vmul.f32 %v1111, %v1107
        %v1125 = vmul.f32 %v1111, %v1108
        %v1126 = vmul.f32 %v1111, %v1109
        %v1127 = vmul.f32 %v1111, %v1110
        %v1128 = vadd.f32 %v1077, %v1112
        %v1129 = vadd.f32 %v1078, %v1113
        %v1130 = vadd.f32 %v1079, %v1114
        %v1131 = vadd.f32 %v1080, %v1115
        %v1132 = vadd.f32 %v1081, %v1116
        %v1133 = vadd.f32 %v1082, %v1117
        %v1134 = vadd.f32 %v1083, %v1118
        %v1135 = vadd.f32 %v1084, %v1119
        %v1136 = vadd.f32 %v1085, %v1120
        %v1137 = vadd.f32 %v1086, %v1121
        %v1138 = vadd.f32 %v1087, %v1122
        %v1139 = vadd.f32 %v1088, %v1123
        %v1140 = vadd.f32 %v1089, %v1124
        %v1141 = vadd.f32 %v1090, %v1125
        %v1142 = vadd.f32 %v1091, %v1126
        %v1143 = vadd.f32 %v1092, %v1127
        %s1144 = sadd.s32 %s172, 19
        %s1145 = sld [smem:[#allocation6 + %s1144]]
        %v1146 = vld [vmem:[%s941 + $0x4] sm:$0xff]
        %v1147 = vld [vmem:[%s941 + $0xc] sm:$0xff]
        %v1148 = vld [vmem:[%s941 + $0x1c] sm:$0xff]
        %v1149 = vld [vmem:[%s941 + $0x24] sm:$0xff]
        %v1150 = vld [vmem:[%s941 + $0x34] sm:$0xff]
        %v1151 = vld [vmem:[%s941 + $0x3c] sm:$0xff]
        %v1152 = vld [vmem:[%s941 + $0x4c] sm:$0xff]
        %v1153 = vld [vmem:[%s941 + $0x54] sm:$0xff]
        %v1154 = vld [vmem:[%s941 + $0x64] sm:$0xff]
        %v1155 = vld [vmem:[%s941 + $0x6c] sm:$0xff]
        %v1156 = vld [vmem:[%s941 + $0x7c] sm:$0xff]
        %v1157 = vld [vmem:[%s941 + $0x84] sm:$0xff]
        %v1158 = vld [vmem:[%s941 + $0x94] sm:$0xff]
        %v1159 = vld [vmem:[%s941 + $0x9c] sm:$0xff]
        %v1160 = vld [vmem:[%s941 + $0xac] sm:$0xff]
        %v1161 = vld [vmem:[%s941 + $0xb4] sm:$0xff]
        %v1162 = vstv %s1145
        %v1163 = vmul.f32 %v1162, %v1146
        %v1164 = vmul.f32 %v1162, %v1147
        %v1165 = vmul.f32 %v1162, %v1148
        %v1166 = vmul.f32 %v1162, %v1149
        %v1167 = vmul.f32 %v1162, %v1150
        %v1168 = vmul.f32 %v1162, %v1151
        %v1169 = vmul.f32 %v1162, %v1152
        %v1170 = vmul.f32 %v1162, %v1153
        %v1171 = vmul.f32 %v1162, %v1154
        %v1172 = vmul.f32 %v1162, %v1155
        %v1173 = vmul.f32 %v1162, %v1156
        %v1174 = vmul.f32 %v1162, %v1157
        %v1175 = vmul.f32 %v1162, %v1158
        %v1176 = vmul.f32 %v1162, %v1159
        %v1177 = vmul.f32 %v1162, %v1160
        %v1178 = vmul.f32 %v1162, %v1161
        %v1179 = vadd.f32 %v1128, %v1163
        %v1180 = vadd.f32 %v1129, %v1164
        %v1181 = vadd.f32 %v1130, %v1165
        %v1182 = vadd.f32 %v1131, %v1166
        %v1183 = vadd.f32 %v1132, %v1167
        %v1184 = vadd.f32 %v1133, %v1168
        %v1185 = vadd.f32 %v1134, %v1169
        %v1186 = vadd.f32 %v1135, %v1170
        %v1187 = vadd.f32 %v1136, %v1171
        %v1188 = vadd.f32 %v1137, %v1172
        %v1189 = vadd.f32 %v1138, %v1173
        %v1190 = vadd.f32 %v1139, %v1174
        %v1191 = vadd.f32 %v1140, %v1175
        %v1192 = vadd.f32 %v1141, %v1176
        %v1193 = vadd.f32 %v1142, %v1177
        %v1194 = vadd.f32 %v1143, %v1178
        %s1195 = sadd.s32 %s172, 20
        %s1196 = sld [smem:[#allocation6 + %s1195]]
        %s1197 = scalar_lea.vmem [#allocation2], 96
        %v1198 = vld [vmem:[%s1197] sm:$0xff]
        %v1199 = vld [vmem:[%s1197 + $0x8] sm:$0xff]
        %v1200 = vld [vmem:[%s1197 + $0x18] sm:$0xff]
        %v1201 = vld [vmem:[%s1197 + $0x20] sm:$0xff]
        %v1202 = vld [vmem:[%s1197 + $0x30] sm:$0xff]
        %v1203 = vld [vmem:[%s1197 + $0x38] sm:$0xff]
        %v1204 = vld [vmem:[%s1197 + $0x48] sm:$0xff]
        %v1205 = vld [vmem:[%s1197 + $0x50] sm:$0xff]
        %v1206 = vld [vmem:[%s1197 + $0x60] sm:$0xff]
        %v1207 = vld [vmem:[%s1197 + $0x68] sm:$0xff]
        %v1208 = vld [vmem:[%s1197 + $0x78] sm:$0xff]
        %v1209 = vld [vmem:[%s1197 + $0x80] sm:$0xff]
        %v1210 = vld [vmem:[%s1197 + $0x90] sm:$0xff]
        %v1211 = vld [vmem:[%s1197 + $0x98] sm:$0xff]
        %v1212 = vld [vmem:[%s1197 + $0xa8] sm:$0xff]
        %v1213 = vld [vmem:[%s1197 + $0xb0] sm:$0xff]
        %v1214 = vstv %s1196
        %v1215 = vmul.f32 %v1214, %v1198
        %v1216 = vmul.f32 %v1214, %v1199
        %v1217 = vmul.f32 %v1214, %v1200
        %v1218 = vmul.f32 %v1214, %v1201
        %v1219 = vmul.f32 %v1214, %v1202
        %v1220 = vmul.f32 %v1214, %v1203
        %v1221 = vmul.f32 %v1214, %v1204
        %v1222 = vmul.f32 %v1214, %v1205
        %v1223 = vmul.f32 %v1214, %v1206
        %v1224 = vmul.f32 %v1214, %v1207
        %v1225 = vmul.f32 %v1214, %v1208
        %v1226 = vmul.f32 %v1214, %v1209
        %v1227 = vmul.f32 %v1214, %v1210
        %v1228 = vmul.f32 %v1214, %v1211
        %v1229 = vmul.f32 %v1214, %v1212
        %v1230 = vmul.f32 %v1214, %v1213
        %v1231 = vadd.f32 %v1179, %v1215
        %v1232 = vadd.f32 %v1180, %v1216
        %v1233 = vadd.f32 %v1181, %v1217
        %v1234 = vadd.f32 %v1182, %v1218
        %v1235 = vadd.f32 %v1183, %v1219
        %v1236 = vadd.f32 %v1184, %v1220
        %v1237 = vadd.f32 %v1185, %v1221
        %v1238 = vadd.f32 %v1186, %v1222
        %v1239 = vadd.f32 %v1187, %v1223
        %v1240 = vadd.f32 %v1188, %v1224
        %v1241 = vadd.f32 %v1189, %v1225
        %v1242 = vadd.f32 %v1190, %v1226
        %v1243 = vadd.f32 %v1191, %v1227
        %v1244 = vadd.f32 %v1192, %v1228
        %v1245 = vadd.f32 %v1193, %v1229
        %v1246 = vadd.f32 %v1194, %v1230
        %s1247 = sadd.s32 %s172, 21
        %s1248 = sld [smem:[#allocation6 + %s1247]]
        %v1249 = vld [vmem:[%s1197 + $0x1] sm:$0xff]
        %v1250 = vld [vmem:[%s1197 + $0x9] sm:$0xff]
        %v1251 = vld [vmem:[%s1197 + $0x19] sm:$0xff]
        %v1252 = vld [vmem:[%s1197 + $0x21] sm:$0xff]
        %v1253 = vld [vmem:[%s1197 + $0x31] sm:$0xff]
        %v1254 = vld [vmem:[%s1197 + $0x39] sm:$0xff]
        %v1255 = vld [vmem:[%s1197 + $0x49] sm:$0xff]
        %v1256 = vld [vmem:[%s1197 + $0x51] sm:$0xff]
        %v1257 = vld [vmem:[%s1197 + $0x61] sm:$0xff]
        %v1258 = vld [vmem:[%s1197 + $0x69] sm:$0xff]
        %v1259 = vld [vmem:[%s1197 + $0x79] sm:$0xff]
        %v1260 = vld [vmem:[%s1197 + $0x81] sm:$0xff]
        %v1261 = vld [vmem:[%s1197 + $0x91] sm:$0xff]
        %v1262 = vld [vmem:[%s1197 + $0x99] sm:$0xff]
        %v1263 = vld [vmem:[%s1197 + $0xa9] sm:$0xff]
        %v1264 = vld [vmem:[%s1197 + $0xb1] sm:$0xff]
        %v1265 = vstv %s1248
        %v1266 = vmul.f32 %v1265, %v1249
        %v1267 = vmul.f32 %v1265, %v1250
        %v1268 = vmul.f32 %v1265, %v1251
        %v1269 = vmul.f32 %v1265, %v1252
        %v1270 = vmul.f32 %v1265, %v1253
        %v1271 = vmul.f32 %v1265, %v1254
        %v1272 = vmul.f32 %v1265, %v1255
        %v1273 = vmul.f32 %v1265, %v1256
        %v1274 = vmul.f32 %v1265, %v1257
        %v1275 = vmul.f32 %v1265, %v1258
        %v1276 = vmul.f32 %v1265, %v1259
        %v1277 = vmul.f32 %v1265, %v1260
        %v1278 = vmul.f32 %v1265, %v1261
        %v1279 = vmul.f32 %v1265, %v1262
        %v1280 = vmul.f32 %v1265, %v1263
        %v1281 = vmul.f32 %v1265, %v1264
        %v1282 = vadd.f32 %v1231, %v1266
        %v1283 = vadd.f32 %v1232, %v1267
        %v1284 = vadd.f32 %v1233, %v1268
        %v1285 = vadd.f32 %v1234, %v1269
        %v1286 = vadd.f32 %v1235, %v1270
        %v1287 = vadd.f32 %v1236, %v1271
        %v1288 = vadd.f32 %v1237, %v1272
        %v1289 = vadd.f32 %v1238, %v1273
        %v1290 = vadd.f32 %v1239, %v1274
        %v1291 = vadd.f32 %v1240, %v1275
        %v1292 = vadd.f32 %v1241, %v1276
        %v1293 = vadd.f32 %v1242, %v1277
        %v1294 = vadd.f32 %v1243, %v1278
        %v1295 = vadd.f32 %v1244, %v1279
        %v1296 = vadd.f32 %v1245, %v1280
        %v1297 = vadd.f32 %v1246, %v1281
        %s1298 = sadd.s32 %s172, 22
        %s1299 = sld [smem:[#allocation6 + %s1298]]
        %v1300 = vld [vmem:[%s1197 + $0x2] sm:$0xff]
        %v1301 = vld [vmem:[%s1197 + $0xa] sm:$0xff]
        %v1302 = vld [vmem:[%s1197 + $0x1a] sm:$0xff]
        %v1303 = vld [vmem:[%s1197 + $0x22] sm:$0xff]
        %v1304 = vld [vmem:[%s1197 + $0x32] sm:$0xff]
        %v1305 = vld [vmem:[%s1197 + $0x3a] sm:$0xff]
        %v1306 = vld [vmem:[%s1197 + $0x4a] sm:$0xff]
        %v1307 = vld [vmem:[%s1197 + $0x52] sm:$0xff]
        %v1308 = vld [vmem:[%s1197 + $0x62] sm:$0xff]
        %v1309 = vld [vmem:[%s1197 + $0x6a] sm:$0xff]
        %v1310 = vld [vmem:[%s1197 + $0x7a] sm:$0xff]
        %v1311 = vld [vmem:[%s1197 + $0x82] sm:$0xff]
        %v1312 = vld [vmem:[%s1197 + $0x92] sm:$0xff]
        %v1313 = vld [vmem:[%s1197 + $0x9a] sm:$0xff]
        %v1314 = vld [vmem:[%s1197 + $0xaa] sm:$0xff]
        %v1315 = vld [vmem:[%s1197 + $0xb2] sm:$0xff]
        %v1316 = vstv %s1299
        %v1317 = vmul.f32 %v1316, %v1300
        %v1318 = vmul.f32 %v1316, %v1301
        %v1319 = vmul.f32 %v1316, %v1302
        %v1320 = vmul.f32 %v1316, %v1303
        %v1321 = vmul.f32 %v1316, %v1304
        %v1322 = vmul.f32 %v1316, %v1305
        %v1323 = vmul.f32 %v1316, %v1306
        %v1324 = vmul.f32 %v1316, %v1307
        %v1325 = vmul.f32 %v1316, %v1308
        %v1326 = vmul.f32 %v1316, %v1309
        %v1327 = vmul.f32 %v1316, %v1310
        %v1328 = vmul.f32 %v1316, %v1311
        %v1329 = vmul.f32 %v1316, %v1312
        %v1330 = vmul.f32 %v1316, %v1313
        %v1331 = vmul.f32 %v1316, %v1314
        %v1332 = vmul.f32 %v1316, %v1315
        %v1333 = vadd.f32 %v1282, %v1317
        %v1334 = vadd.f32 %v1283, %v1318
        %v1335 = vadd.f32 %v1284, %v1319
        %v1336 = vadd.f32 %v1285, %v1320
        %v1337 = vadd.f32 %v1286, %v1321
        %v1338 = vadd.f32 %v1287, %v1322
        %v1339 = vadd.f32 %v1288, %v1323
        %v1340 = vadd.f32 %v1289, %v1324
        %v1341 = vadd.f32 %v1290, %v1325
        %v1342 = vadd.f32 %v1291, %v1326
        %v1343 = vadd.f32 %v1292, %v1327
        %v1344 = vadd.f32 %v1293, %v1328
        %v1345 = vadd.f32 %v1294, %v1329
        %v1346 = vadd.f32 %v1295, %v1330
        %v1347 = vadd.f32 %v1296, %v1331
        %v1348 = vadd.f32 %v1297, %v1332
        %s1349 = sadd.s32 %s172, 23
        %s1350 = sld [smem:[#allocation6 + %s1349]]
        %v1351 = vld [vmem:[%s1197 + $0x3] sm:$0xff]
        %v1352 = vld [vmem:[%s1197 + $0xb] sm:$0xff]
        %v1353 = vld [vmem:[%s1197 + $0x1b] sm:$0xff]
        %v1354 = vld [vmem:[%s1197 + $0x23] sm:$0xff]
        %v1355 = vld [vmem:[%s1197 + $0x33] sm:$0xff]
        %v1356 = vld [vmem:[%s1197 + $0x3b] sm:$0xff]
        %v1357 = vld [vmem:[%s1197 + $0x4b] sm:$0xff]
        %v1358 = vld [vmem:[%s1197 + $0x53] sm:$0xff]
        %v1359 = vld [vmem:[%s1197 + $0x63] sm:$0xff]
        %v1360 = vld [vmem:[%s1197 + $0x6b] sm:$0xff]
        %v1361 = vld [vmem:[%s1197 + $0x7b] sm:$0xff]
        %v1362 = vld [vmem:[%s1197 + $0x83] sm:$0xff]
        %v1363 = vld [vmem:[%s1197 + $0x93] sm:$0xff]
        %v1364 = vld [vmem:[%s1197 + $0x9b] sm:$0xff]
        %v1365 = vld [vmem:[%s1197 + $0xab] sm:$0xff]
        %v1366 = vld [vmem:[%s1197 + $0xb3] sm:$0xff]
        %v1367 = vstv %s1350
        %v1368 = vmul.f32 %v1367, %v1351
        %v1369 = vmul.f32 %v1367, %v1352
        %v1370 = vmul.f32 %v1367, %v1353
        %v1371 = vmul.f32 %v1367, %v1354
        %v1372 = vmul.f32 %v1367, %v1355
        %v1373 = vmul.f32 %v1367, %v1356
        %v1374 = vmul.f32 %v1367, %v1357
        %v1375 = vmul.f32 %v1367, %v1358
        %v1376 = vmul.f32 %v1367, %v1359
        %v1377 = vmul.f32 %v1367, %v1360
        %v1378 = vmul.f32 %v1367, %v1361
        %v1379 = vmul.f32 %v1367, %v1362
        %v1380 = vmul.f32 %v1367, %v1363
        %v1381 = vmul.f32 %v1367, %v1364
        %v1382 = vmul.f32 %v1367, %v1365
        %v1383 = vmul.f32 %v1367, %v1366
        %v1384 = vadd.f32 %v1333, %v1368
        %v1385 = vadd.f32 %v1334, %v1369
        %v1386 = vadd.f32 %v1335, %v1370
        %v1387 = vadd.f32 %v1336, %v1371
        %v1388 = vadd.f32 %v1337, %v1372
        %v1389 = vadd.f32 %v1338, %v1373
        %v1390 = vadd.f32 %v1339, %v1374
        %v1391 = vadd.f32 %v1340, %v1375
        %v1392 = vadd.f32 %v1341, %v1376
        %v1393 = vadd.f32 %v1342, %v1377
        %v1394 = vadd.f32 %v1343, %v1378
        %v1395 = vadd.f32 %v1344, %v1379
        %v1396 = vadd.f32 %v1345, %v1380
        %v1397 = vadd.f32 %v1346, %v1381
        %v1398 = vadd.f32 %v1347, %v1382
        %v1399 = vadd.f32 %v1348, %v1383
        %s1400 = sadd.s32 %s172, 24
        %s1401 = sld [smem:[#allocation6 + %s1400]]
        %v1402 = vld [vmem:[%s1197 + $0x4] sm:$0xff]
        %v1403 = vld [vmem:[%s1197 + $0xc] sm:$0xff]
        %v1404 = vld [vmem:[%s1197 + $0x1c] sm:$0xff]
        %v1405 = vld [vmem:[%s1197 + $0x24] sm:$0xff]
        %v1406 = vld [vmem:[%s1197 + $0x34] sm:$0xff]
        %v1407 = vld [vmem:[%s1197 + $0x3c] sm:$0xff]
        %v1408 = vld [vmem:[%s1197 + $0x4c] sm:$0xff]
        %v1409 = vld [vmem:[%s1197 + $0x54] sm:$0xff]
        %v1410 = vld [vmem:[%s1197 + $0x64] sm:$0xff]
        %v1411 = vld [vmem:[%s1197 + $0x6c] sm:$0xff]
        %v1412 = vld [vmem:[%s1197 + $0x7c] sm:$0xff]
        %v1413 = vld [vmem:[%s1197 + $0x84] sm:$0xff]
        %v1414 = vld [vmem:[%s1197 + $0x94] sm:$0xff]
        %v1415 = vld [vmem:[%s1197 + $0x9c] sm:$0xff]
        %v1416 = vld [vmem:[%s1197 + $0xac] sm:$0xff]
        %v1417 = vld [vmem:[%s1197 + $0xb4] sm:$0xff]
        %v1418 = vstv %s1401
        %v1419 = vmul.f32 %v1418, %v1402
        %v1420 = vmul.f32 %v1418, %v1403
        %v1421 = vmul.f32 %v1418, %v1404
        %v1422 = vmul.f32 %v1418, %v1405
        %v1423 = vmul.f32 %v1418, %v1406
        %v1424 = vmul.f32 %v1418, %v1407
        %v1425 = vmul.f32 %v1418, %v1408
        %v1426 = vmul.f32 %v1418, %v1409
        %v1427 = vmul.f32 %v1418, %v1410
        %v1428 = vmul.f32 %v1418, %v1411
        %v1429 = vmul.f32 %v1418, %v1412
        %v1430 = vmul.f32 %v1418, %v1413
        %v1431 = vmul.f32 %v1418, %v1414
        %v1432 = vmul.f32 %v1418, %v1415
        %v1433 = vmul.f32 %v1418, %v1416
        %v1434 = vmul.f32 %v1418, %v1417
        %v1435 = vadd.f32 %v1384, %v1419
        %v1436 = vadd.f32 %v1385, %v1420
        %v1437 = vadd.f32 %v1386, %v1421
        %v1438 = vadd.f32 %v1387, %v1422
        %v1439 = vadd.f32 %v1388, %v1423
        %v1440 = vadd.f32 %v1389, %v1424
        %v1441 = vadd.f32 %v1390, %v1425
        %v1442 = vadd.f32 %v1391, %v1426
        %v1443 = vadd.f32 %v1392, %v1427
        %v1444 = vadd.f32 %v1393, %v1428
        %v1445 = vadd.f32 %v1394, %v1429
        %v1446 = vadd.f32 %v1395, %v1430
        %v1447 = vadd.f32 %v1396, %v1431
        %v1448 = vadd.f32 %v1397, %v1432
        %v1449 = vadd.f32 %v1398, %v1433
        %v1450 = vadd.f32 %v1399, %v1434
        %1451 = vst [vmem:[%s171] sm:$0xff] %v1435
        %1452 = vst [vmem:[%s171 + $0x8] sm:$0xff] %v1436
        %1453 = vst [vmem:[%s171 + $0x10] sm:$0xff] %v1437
        %1454 = vst [vmem:[%s171 + $0x18] sm:$0xff] %v1438
        %1455 = vst [vmem:[%s171 + $0x20] sm:$0xff] %v1439
        %1456 = vst [vmem:[%s171 + $0x28] sm:$0xff] %v1440
        %1457 = vst [vmem:[%s171 + $0x30] sm:$0xff] %v1441
        %1458 = vst [vmem:[%s171 + $0x38] sm:$0xff] %v1442
        %1459 = vst [vmem:[%s171 + $0x40] sm:$0xff] %v1443
        %1460 = vst [vmem:[%s171 + $0x48] sm:$0xff] %v1444
        %1461 = vst [vmem:[%s171 + $0x50] sm:$0xff] %v1445
        %1462 = vst [vmem:[%s171 + $0x58] sm:$0xff] %v1446
        %1463 = vst [vmem:[%s171 + $0x60] sm:$0xff] %v1447
        %1464 = vst [vmem:[%s171 + $0x68] sm:$0xff] %v1448
        %1465 = vst [vmem:[%s171 + $0x70] sm:$0xff] %v1449
        %1466 = vst [vmem:[%s171 + $0x78] sm:$0xff] %v1450
        %s1467 = sld [smem:[#allocation6 + %s172]]
        %s1468 = scalar_lea.vmem [#allocation2], 192
        %v1469 = vld [vmem:[%s1468] sm:$0xff]
        %v1470 = vld [vmem:[%s1468 + $0x8] sm:$0xff]
        %v1471 = vld [vmem:[%s1468 + $0x18] sm:$0xff]
        %v1472 = vld [vmem:[%s1468 + $0x20] sm:$0xff]
        %v1473 = vld [vmem:[%s1468 + $0x30] sm:$0xff]
        %v1474 = vld [vmem:[%s1468 + $0x38] sm:$0xff]
        %v1475 = vld [vmem:[%s1468 + $0x48] sm:$0xff]
        %v1476 = vld [vmem:[%s1468 + $0x50] sm:$0xff]
        %v1477 = vld [vmem:[%s1468 + $0x60] sm:$0xff]
        %v1478 = vld [vmem:[%s1468 + $0x68] sm:$0xff]
        %v1479 = vld [vmem:[%s1468 + $0x78] sm:$0xff]
        %v1480 = vld [vmem:[%s1468 + $0x80] sm:$0xff]
        %v1481 = vld [vmem:[%s1468 + $0x90] sm:$0xff]
        %v1482 = vld [vmem:[%s1468 + $0x98] sm:$0xff]
        %v1483 = vld [vmem:[%s1468 + $0xa8] sm:$0xff]
        %v1484 = vld [vmem:[%s1468 + $0xb0] sm:$0xff]
        %v1485 = vstv %s1467
        %v1486 = vmul.f32 %v1485, %v1469
        %v1487 = vmul.f32 %v1485, %v1470
        %v1488 = vmul.f32 %v1485, %v1471
        %v1489 = vmul.f32 %v1485, %v1472
        %v1490 = vmul.f32 %v1485, %v1473
        %v1491 = vmul.f32 %v1485, %v1474
        %v1492 = vmul.f32 %v1485, %v1475
        %v1493 = vmul.f32 %v1485, %v1476
        %v1494 = vmul.f32 %v1485, %v1477
        %v1495 = vmul.f32 %v1485, %v1478
        %v1496 = vmul.f32 %v1485, %v1479
        %v1497 = vmul.f32 %v1485, %v1480
        %v1498 = vmul.f32 %v1485, %v1481
        %v1499 = vmul.f32 %v1485, %v1482
        %v1500 = vmul.f32 %v1485, %v1483
        %v1501 = vmul.f32 %v1485, %v1484
        %v1502 = vadd.f32 %v1486, 0.0
        %v1503 = vadd.f32 %v1487, 0.0
        %v1504 = vadd.f32 %v1488, 0.0
        %v1505 = vadd.f32 %v1489, 0.0
        %v1506 = vadd.f32 %v1490, 0.0
        %v1507 = vadd.f32 %v1491, 0.0
        %v1508 = vadd.f32 %v1492, 0.0
        %v1509 = vadd.f32 %v1493, 0.0
        %v1510 = vadd.f32 %v1494, 0.0
        %v1511 = vadd.f32 %v1495, 0.0
        %v1512 = vadd.f32 %v1496, 0.0
        %v1513 = vadd.f32 %v1497, 0.0
        %v1514 = vadd.f32 %v1498, 0.0
        %v1515 = vadd.f32 %v1499, 0.0
        %v1516 = vadd.f32 %v1500, 0.0
        %v1517 = vadd.f32 %v1501, 0.0
        %s1518 = sld [smem:[#allocation6 + %s223]]
        %v1519 = vld [vmem:[%s1468 + $0x1] sm:$0xff]
        %v1520 = vld [vmem:[%s1468 + $0x9] sm:$0xff]
        %v1521 = vld [vmem:[%s1468 + $0x19] sm:$0xff]
        %v1522 = vld [vmem:[%s1468 + $0x21] sm:$0xff]
        %v1523 = vld [vmem:[%s1468 + $0x31] sm:$0xff]
        %v1524 = vld [vmem:[%s1468 + $0x39] sm:$0xff]
        %v1525 = vld [vmem:[%s1468 + $0x49] sm:$0xff]
        %v1526 = vld [vmem:[%s1468 + $0x51] sm:$0xff]
        %v1527 = vld [vmem:[%s1468 + $0x61] sm:$0xff]
        %v1528 = vld [vmem:[%s1468 + $0x69] sm:$0xff]
        %v1529 = vld [vmem:[%s1468 + $0x79] sm:$0xff]
        %v1530 = vld [vmem:[%s1468 + $0x81] sm:$0xff]
        %v1531 = vld [vmem:[%s1468 + $0x91] sm:$0xff]
        %v1532 = vld [vmem:[%s1468 + $0x99] sm:$0xff]
        %v1533 = vld [vmem:[%s1468 + $0xa9] sm:$0xff]
        %v1534 = vld [vmem:[%s1468 + $0xb1] sm:$0xff]
        %v1535 = vstv %s1518
        %v1536 = vmul.f32 %v1535, %v1519
        %v1537 = vmul.f32 %v1535, %v1520
        %v1538 = vmul.f32 %v1535, %v1521
        %v1539 = vmul.f32 %v1535, %v1522
        %v1540 = vmul.f32 %v1535, %v1523
        %v1541 = vmul.f32 %v1535, %v1524
        %v1542 = vmul.f32 %v1535, %v1525
        %v1543 = vmul.f32 %v1535, %v1526
        %v1544 = vmul.f32 %v1535, %v1527
        %v1545 = vmul.f32 %v1535, %v1528
        %v1546 = vmul.f32 %v1535, %v1529
        %v1547 = vmul.f32 %v1535, %v1530
        %v1548 = vmul.f32 %v1535, %v1531
        %v1549 = vmul.f32 %v1535, %v1532
        %v1550 = vmul.f32 %v1535, %v1533
        %v1551 = vmul.f32 %v1535, %v1534
        %v1552 = vadd.f32 %v1502, %v1536
        %v1553 = vadd.f32 %v1503, %v1537
        %v1554 = vadd.f32 %v1504, %v1538
        %v1555 = vadd.f32 %v1505, %v1539
        %v1556 = vadd.f32 %v1506, %v1540
        %v1557 = vadd.f32 %v1507, %v1541
        %v1558 = vadd.f32 %v1508, %v1542
        %v1559 = vadd.f32 %v1509, %v1543
        %v1560 = vadd.f32 %v1510, %v1544
        %v1561 = vadd.f32 %v1511, %v1545
        %v1562 = vadd.f32 %v1512, %v1546
        %v1563 = vadd.f32 %v1513, %v1547
        %v1564 = vadd.f32 %v1514, %v1548
        %v1565 = vadd.f32 %v1515, %v1549
        %v1566 = vadd.f32 %v1516, %v1550
        %v1567 = vadd.f32 %v1517, %v1551
        %s1568 = sld [smem:[#allocation6 + %s274]]
        %v1569 = vld [vmem:[%s1468 + $0x2] sm:$0xff]
        %v1570 = vld [vmem:[%s1468 + $0xa] sm:$0xff]
        %v1571 = vld [vmem:[%s1468 + $0x1a] sm:$0xff]
        %v1572 = vld [vmem:[%s1468 + $0x22] sm:$0xff]
        %v1573 = vld [vmem:[%s1468 + $0x32] sm:$0xff]
        %v1574 = vld [vmem:[%s1468 + $0x3a] sm:$0xff]
        %v1575 = vld [vmem:[%s1468 + $0x4a] sm:$0xff]
        %v1576 = vld [vmem:[%s1468 + $0x52] sm:$0xff]
        %v1577 = vld [vmem:[%s1468 + $0x62] sm:$0xff]
        %v1578 = vld [vmem:[%s1468 + $0x6a] sm:$0xff]
        %v1579 = vld [vmem:[%s1468 + $0x7a] sm:$0xff]
        %v1580 = vld [vmem:[%s1468 + $0x82] sm:$0xff]
        %v1581 = vld [vmem:[%s1468 + $0x92] sm:$0xff]
        %v1582 = vld [vmem:[%s1468 + $0x9a] sm:$0xff]
        %v1583 = vld [vmem:[%s1468 + $0xaa] sm:$0xff]
        %v1584 = vld [vmem:[%s1468 + $0xb2] sm:$0xff]
        %v1585 = vstv %s1568
        %v1586 = vmul.f32 %v1585, %v1569
        %v1587 = vmul.f32 %v1585, %v1570
        %v1588 = vmul.f32 %v1585, %v1571
        %v1589 = vmul.f32 %v1585, %v1572
        %v1590 = vmul.f32 %v1585, %v1573
        %v1591 = vmul.f32 %v1585, %v1574
        %v1592 = vmul.f32 %v1585, %v1575
        %v1593 = vmul.f32 %v1585, %v1576
        %v1594 = vmul.f32 %v1585, %v1577
        %v1595 = vmul.f32 %v1585, %v1578
        %v1596 = vmul.f32 %v1585, %v1579
        %v1597 = vmul.f32 %v1585, %v1580
        %v1598 = vmul.f32 %v1585, %v1581
        %v1599 = vmul.f32 %v1585, %v1582
        %v1600 = vmul.f32 %v1585, %v1583
        %v1601 = vmul.f32 %v1585, %v1584
        %v1602 = vadd.f32 %v1552, %v1586
        %v1603 = vadd.f32 %v1553, %v1587
        %v1604 = vadd.f32 %v1554, %v1588
        %v1605 = vadd.f32 %v1555, %v1589
        %v1606 = vadd.f32 %v1556, %v1590
        %v1607 = vadd.f32 %v1557, %v1591
        %v1608 = vadd.f32 %v1558, %v1592
        %v1609 = vadd.f32 %v1559, %v1593
        %v1610 = vadd.f32 %v1560, %v1594
        %v1611 = vadd.f32 %v1561, %v1595
        %v1612 = vadd.f32 %v1562, %v1596
        %v1613 = vadd.f32 %v1563, %v1597
        %v1614 = vadd.f32 %v1564, %v1598
        %v1615 = vadd.f32 %v1565, %v1599
        %v1616 = vadd.f32 %v1566, %v1600
        %v1617 = vadd.f32 %v1567, %v1601
        %s1618 = sld [smem:[#allocation6 + %s325]]
        %v1619 = vld [vmem:[%s1468 + $0x3] sm:$0xff]
        %v1620 = vld [vmem:[%s1468 + $0xb] sm:$0xff]
        %v1621 = vld [vmem:[%s1468 + $0x1b] sm:$0xff]
        %v1622 = vld [vmem:[%s1468 + $0x23] sm:$0xff]
        %v1623 = vld [vmem:[%s1468 + $0x33] sm:$0xff]
        %v1624 = vld [vmem:[%s1468 + $0x3b] sm:$0xff]
        %v1625 = vld [vmem:[%s1468 + $0x4b] sm:$0xff]
        %v1626 = vld [vmem:[%s1468 + $0x53] sm:$0xff]
        %v1627 = vld [vmem:[%s1468 + $0x63] sm:$0xff]
        %v1628 = vld [vmem:[%s1468 + $0x6b] sm:$0xff]
        %v1629 = vld [vmem:[%s1468 + $0x7b] sm:$0xff]
        %v1630 = vld [vmem:[%s1468 + $0x83] sm:$0xff]
        %v1631 = vld [vmem:[%s1468 + $0x93] sm:$0xff]
        %v1632 = vld [vmem:[%s1468 + $0x9b] sm:$0xff]
        %v1633 = vld [vmem:[%s1468 + $0xab] sm:$0xff]
        %v1634 = vld [vmem:[%s1468 + $0xb3] sm:$0xff]
        %v1635 = vstv %s1618
        %v1636 = vmul.f32 %v1635, %v1619
        %v1637 = vmul.f32 %v1635, %v1620
        %v1638 = vmul.f32 %v1635, %v1621
        %v1639 = vmul.f32 %v1635, %v1622
        %v1640 = vmul.f32 %v1635, %v1623
        %v1641 = vmul.f32 %v1635, %v1624
        %v1642 = vmul.f32 %v1635, %v1625
        %v1643 = vmul.f32 %v1635, %v1626
        %v1644 = vmul.f32 %v1635, %v1627
        %v1645 = vmul.f32 %v1635, %v1628
        %v1646 = vmul.f32 %v1635, %v1629
        %v1647 = vmul.f32 %v1635, %v1630
        %v1648 = vmul.f32 %v1635, %v1631
        %v1649 = vmul.f32 %v1635, %v1632
        %v1650 = vmul.f32 %v1635, %v1633
        %v1651 = vmul.f32 %v1635, %v1634
        %v1652 = vadd.f32 %v1602, %v1636
        %v1653 = vadd.f32 %v1603, %v1637
        %v1654 = vadd.f32 %v1604, %v1638
        %v1655 = vadd.f32 %v1605, %v1639
        %v1656 = vadd.f32 %v1606, %v1640
        %v1657 = vadd.f32 %v1607, %v1641
        %v1658 = vadd.f32 %v1608, %v1642
        %v1659 = vadd.f32 %v1609, %v1643
        %v1660 = vadd.f32 %v1610, %v1644
        %v1661 = vadd.f32 %v1611, %v1645
        %v1662 = vadd.f32 %v1612, %v1646
        %v1663 = vadd.f32 %v1613, %v1647
        %v1664 = vadd.f32 %v1614, %v1648
        %v1665 = vadd.f32 %v1615, %v1649
        %v1666 = vadd.f32 %v1616, %v1650
        %v1667 = vadd.f32 %v1617, %v1651
        %s1668 = sld [smem:[#allocation6 + %s376]]
        %v1669 = vld [vmem:[%s1468 + $0x4] sm:$0xff]
        %v1670 = vld [vmem:[%s1468 + $0xc] sm:$0xff]
        %v1671 = vld [vmem:[%s1468 + $0x1c] sm:$0xff]
        %v1672 = vld [vmem:[%s1468 + $0x24] sm:$0xff]
        %v1673 = vld [vmem:[%s1468 + $0x34] sm:$0xff]
        %v1674 = vld [vmem:[%s1468 + $0x3c] sm:$0xff]
        %v1675 = vld [vmem:[%s1468 + $0x4c] sm:$0xff]
        %v1676 = vld [vmem:[%s1468 + $0x54] sm:$0xff]
        %v1677 = vld [vmem:[%s1468 + $0x64] sm:$0xff]
        %v1678 = vld [vmem:[%s1468 + $0x6c] sm:$0xff]
        %v1679 = vld [vmem:[%s1468 + $0x7c] sm:$0xff]
        %v1680 = vld [vmem:[%s1468 + $0x84] sm:$0xff]
        %v1681 = vld [vmem:[%s1468 + $0x94] sm:$0xff]
        %v1682 = vld [vmem:[%s1468 + $0x9c] sm:$0xff]
        %v1683 = vld [vmem:[%s1468 + $0xac] sm:$0xff]
        %v1684 = vld [vmem:[%s1468 + $0xb4] sm:$0xff]
        %v1685 = vstv %s1668
        %v1686 = vmul.f32 %v1685, %v1669
        %v1687 = vmul.f32 %v1685, %v1670
        %v1688 = vmul.f32 %v1685, %v1671
        %v1689 = vmul.f32 %v1685, %v1672
        %v1690 = vmul.f32 %v1685, %v1673
        %v1691 = vmul.f32 %v1685, %v1674
        %v1692 = vmul.f32 %v1685, %v1675
        %v1693 = vmul.f32 %v1685, %v1676
        %v1694 = vmul.f32 %v1685, %v1677
        %v1695 = vmul.f32 %v1685, %v1678
        %v1696 = vmul.f32 %v1685, %v1679
        %v1697 = vmul.f32 %v1685, %v1680
        %v1698 = vmul.f32 %v1685, %v1681
        %v1699 = vmul.f32 %v1685, %v1682
        %v1700 = vmul.f32 %v1685, %v1683
        %v1701 = vmul.f32 %v1685, %v1684
        %v1702 = vadd.f32 %v1652, %v1686
        %v1703 = vadd.f32 %v1653, %v1687
        %v1704 = vadd.f32 %v1654, %v1688
        %v1705 = vadd.f32 %v1655, %v1689
        %v1706 = vadd.f32 %v1656, %v1690
        %v1707 = vadd.f32 %v1657, %v1691
        %v1708 = vadd.f32 %v1658, %v1692
        %v1709 = vadd.f32 %v1659, %v1693
        %v1710 = vadd.f32 %v1660, %v1694
        %v1711 = vadd.f32 %v1661, %v1695
        %v1712 = vadd.f32 %v1662, %v1696
        %v1713 = vadd.f32 %v1663, %v1697
        %v1714 = vadd.f32 %v1664, %v1698
        %v1715 = vadd.f32 %v1665, %v1699
        %v1716 = vadd.f32 %v1666, %v1700
        %v1717 = vadd.f32 %v1667, %v1701
        %s1718 = sld [smem:[#allocation6 + %s427]]
        %s1719 = scalar_lea.vmem [#allocation2], 216
        %v1720 = vld [vmem:[%s1719] sm:$0xff]
        %v1721 = vld [vmem:[%s1719 + $0x8] sm:$0xff]
        %v1722 = vld [vmem:[%s1719 + $0x18] sm:$0xff]
        %v1723 = vld [vmem:[%s1719 + $0x20] sm:$0xff]
        %v1724 = vld [vmem:[%s1719 + $0x30] sm:$0xff]
        %v1725 = vld [vmem:[%s1719 + $0x38] sm:$0xff]
        %v1726 = vld [vmem:[%s1719 + $0x48] sm:$0xff]
        %v1727 = vld [vmem:[%s1719 + $0x50] sm:$0xff]
        %v1728 = vld [vmem:[%s1719 + $0x60] sm:$0xff]
        %v1729 = vld [vmem:[%s1719 + $0x68] sm:$0xff]
        %v1730 = vld [vmem:[%s1719 + $0x78] sm:$0xff]
        %v1731 = vld [vmem:[%s1719 + $0x80] sm:$0xff]
        %v1732 = vld [vmem:[%s1719 + $0x90] sm:$0xff]
        %v1733 = vld [vmem:[%s1719 + $0x98] sm:$0xff]
        %v1734 = vld [vmem:[%s1719 + $0xa8] sm:$0xff]
        %v1735 = vld [vmem:[%s1719 + $0xb0] sm:$0xff]
        %v1736 = vstv %s1718
        %v1737 = vmul.f32 %v1736, %v1720
        %v1738 = vmul.f32 %v1736, %v1721
        %v1739 = vmul.f32 %v1736, %v1722
        %v1740 = vmul.f32 %v1736, %v1723
        %v1741 = vmul.f32 %v1736, %v1724
        %v1742 = vmul.f32 %v1736, %v1725
        %v1743 = vmul.f32 %v1736, %v1726
        %v1744 = vmul.f32 %v1736, %v1727
        %v1745 = vmul.f32 %v1736, %v1728
        %v1746 = vmul.f32 %v1736, %v1729
        %v1747 = vmul.f32 %v1736, %v1730
        %v1748 = vmul.f32 %v1736, %v1731
        %v1749 = vmul.f32 %v1736, %v1732
        %v1750 = vmul.f32 %v1736, %v1733
        %v1751 = vmul.f32 %v1736, %v1734
        %v1752 = vmul.f32 %v1736, %v1735
        %v1753 = vadd.f32 %v1702, %v1737
        %v1754 = vadd.f32 %v1703, %v1738
        %v1755 = vadd.f32 %v1704, %v1739
        %v1756 = vadd.f32 %v1705, %v1740
        %v1757 = vadd.f32 %v1706, %v1741
        %v1758 = vadd.f32 %v1707, %v1742
        %v1759 = vadd.f32 %v1708, %v1743
        %v1760 = vadd.f32 %v1709, %v1744
        %v1761 = vadd.f32 %v1710, %v1745
        %v1762 = vadd.f32 %v1711, %v1746
        %v1763 = vadd.f32 %v1712, %v1747
        %v1764 = vadd.f32 %v1713, %v1748
        %v1765 = vadd.f32 %v1714, %v1749
        %v1766 = vadd.f32 %v1715, %v1750
        %v1767 = vadd.f32 %v1716, %v1751
        %v1768 = vadd.f32 %v1717, %v1752
        %s1769 = sld [smem:[#allocation6 + %s479]]
        %v1770 = vld [vmem:[%s1719 + $0x1] sm:$0xff]
        %v1771 = vld [vmem:[%s1719 + $0x9] sm:$0xff]
        %v1772 = vld [vmem:[%s1719 + $0x19] sm:$0xff]
        %v1773 = vld [vmem:[%s1719 + $0x21] sm:$0xff]
        %v1774 = vld [vmem:[%s1719 + $0x31] sm:$0xff]
        %v1775 = vld [vmem:[%s1719 + $0x39] sm:$0xff]
        %v1776 = vld [vmem:[%s1719 + $0x49] sm:$0xff]
        %v1777 = vld [vmem:[%s1719 + $0x51] sm:$0xff]
        %v1778 = vld [vmem:[%s1719 + $0x61] sm:$0xff]
        %v1779 = vld [vmem:[%s1719 + $0x69] sm:$0xff]
        %v1780 = vld [vmem:[%s1719 + $0x79] sm:$0xff]
        %v1781 = vld [vmem:[%s1719 + $0x81] sm:$0xff]
        %v1782 = vld [vmem:[%s1719 + $0x91] sm:$0xff]
        %v1783 = vld [vmem:[%s1719 + $0x99] sm:$0xff]
        %v1784 = vld [vmem:[%s1719 + $0xa9] sm:$0xff]
        %v1785 = vld [vmem:[%s1719 + $0xb1] sm:$0xff]
        %v1786 = vstv %s1769
        %v1787 = vmul.f32 %v1786, %v1770
        %v1788 = vmul.f32 %v1786, %v1771
        %v1789 = vmul.f32 %v1786, %v1772
        %v1790 = vmul.f32 %v1786, %v1773
        %v1791 = vmul.f32 %v1786, %v1774
        %v1792 = vmul.f32 %v1786, %v1775
        %v1793 = vmul.f32 %v1786, %v1776
        %v1794 = vmul.f32 %v1786, %v1777
        %v1795 = vmul.f32 %v1786, %v1778
        %v1796 = vmul.f32 %v1786, %v1779
        %v1797 = vmul.f32 %v1786, %v1780
        %v1798 = vmul.f32 %v1786, %v1781
        %v1799 = vmul.f32 %v1786, %v1782
        %v1800 = vmul.f32 %v1786, %v1783
        %v1801 = vmul.f32 %v1786, %v1784
        %v1802 = vmul.f32 %v1786, %v1785
        %v1803 = vadd.f32 %v1753, %v1787
        %v1804 = vadd.f32 %v1754, %v1788
        %v1805 = vadd.f32 %v1755, %v1789
        %v1806 = vadd.f32 %v1756, %v1790
        %v1807 = vadd.f32 %v1757, %v1791
        %v1808 = vadd.f32 %v1758, %v1792
        %v1809 = vadd.f32 %v1759, %v1793
        %v1810 = vadd.f32 %v1760, %v1794
        %v1811 = vadd.f32 %v1761, %v1795
        %v1812 = vadd.f32 %v1762, %v1796
        %v1813 = vadd.f32 %v1763, %v1797
        %v1814 = vadd.f32 %v1764, %v1798
        %v1815 = vadd.f32 %v1765, %v1799
        %v1816 = vadd.f32 %v1766, %v1800
        %v1817 = vadd.f32 %v1767, %v1801
        %v1818 = vadd.f32 %v1768, %v1802
        %s1819 = sld [smem:[#allocation6 + %s530]]
        %v1820 = vld [vmem:[%s1719 + $0x2] sm:$0xff]
        %v1821 = vld [vmem:[%s1719 + $0xa] sm:$0xff]
        %v1822 = vld [vmem:[%s1719 + $0x1a] sm:$0xff]
        %v1823 = vld [vmem:[%s1719 + $0x22] sm:$0xff]
        %v1824 = vld [vmem:[%s1719 + $0x32] sm:$0xff]
        %v1825 = vld [vmem:[%s1719 + $0x3a] sm:$0xff]
        %v1826 = vld [vmem:[%s1719 + $0x4a] sm:$0xff]
        %v1827 = vld [vmem:[%s1719 + $0x52] sm:$0xff]
        %v1828 = vld [vmem:[%s1719 + $0x62] sm:$0xff]
        %v1829 = vld [vmem:[%s1719 + $0x6a] sm:$0xff]
        %v1830 = vld [vmem:[%s1719 + $0x7a] sm:$0xff]
        %v1831 = vld [vmem:[%s1719 + $0x82] sm:$0xff]
        %v1832 = vld [vmem:[%s1719 + $0x92] sm:$0xff]
        %v1833 = vld [vmem:[%s1719 + $0x9a] sm:$0xff]
        %v1834 = vld [vmem:[%s1719 + $0xaa] sm:$0xff]
        %v1835 = vld [vmem:[%s1719 + $0xb2] sm:$0xff]
        %v1836 = vstv %s1819
        %v1837 = vmul.f32 %v1836, %v1820
        %v1838 = vmul.f32 %v1836, %v1821
        %v1839 = vmul.f32 %v1836, %v1822
        %v1840 = vmul.f32 %v1836, %v1823
        %v1841 = vmul.f32 %v1836, %v1824
        %v1842 = vmul.f32 %v1836, %v1825
        %v1843 = vmul.f32 %v1836, %v1826
        %v1844 = vmul.f32 %v1836, %v1827
        %v1845 = vmul.f32 %v1836, %v1828
        %v1846 = vmul.f32 %v1836, %v1829
        %v1847 = vmul.f32 %v1836, %v1830
        %v1848 = vmul.f32 %v1836, %v1831
        %v1849 = vmul.f32 %v1836, %v1832
        %v1850 = vmul.f32 %v1836, %v1833
        %v1851 = vmul.f32 %v1836, %v1834
        %v1852 = vmul.f32 %v1836, %v1835
        %v1853 = vadd.f32 %v1803, %v1837
        %v1854 = vadd.f32 %v1804, %v1838
        %v1855 = vadd.f32 %v1805, %v1839
        %v1856 = vadd.f32 %v1806, %v1840
        %v1857 = vadd.f32 %v1807, %v1841
        %v1858 = vadd.f32 %v1808, %v1842
        %v1859 = vadd.f32 %v1809, %v1843
        %v1860 = vadd.f32 %v1810, %v1844
        %v1861 = vadd.f32 %v1811, %v1845
        %v1862 = vadd.f32 %v1812, %v1846
        %v1863 = vadd.f32 %v1813, %v1847
        %v1864 = vadd.f32 %v1814, %v1848
        %v1865 = vadd.f32 %v1815, %v1849
        %v1866 = vadd.f32 %v1816, %v1850
        %v1867 = vadd.f32 %v1817, %v1851
        %v1868 = vadd.f32 %v1818, %v1852
        %s1869 = sld [smem:[#allocation6 + %s581]]
        %v1870 = vld [vmem:[%s1719 + $0x3] sm:$0xff]
        %v1871 = vld [vmem:[%s1719 + $0xb] sm:$0xff]
        %v1872 = vld [vmem:[%s1719 + $0x1b] sm:$0xff]
        %v1873 = vld [vmem:[%s1719 + $0x23] sm:$0xff]
        %v1874 = vld [vmem:[%s1719 + $0x33] sm:$0xff]
        %v1875 = vld [vmem:[%s1719 + $0x3b] sm:$0xff]
        %v1876 = vld [vmem:[%s1719 + $0x4b] sm:$0xff]
        %v1877 = vld [vmem:[%s1719 + $0x53] sm:$0xff]
        %v1878 = vld [vmem:[%s1719 + $0x63] sm:$0xff]
        %v1879 = vld [vmem:[%s1719 + $0x6b] sm:$0xff]
        %v1880 = vld [vmem:[%s1719 + $0x7b] sm:$0xff]
        %v1881 = vld [vmem:[%s1719 + $0x83] sm:$0xff]
        %v1882 = vld [vmem:[%s1719 + $0x93] sm:$0xff]
        %v1883 = vld [vmem:[%s1719 + $0x9b] sm:$0xff]
        %v1884 = vld [vmem:[%s1719 + $0xab] sm:$0xff]
        %v1885 = vld [vmem:[%s1719 + $0xb3] sm:$0xff]
        %v1886 = vstv %s1869
        %v1887 = vmul.f32 %v1886, %v1870
        %v1888 = vmul.f32 %v1886, %v1871
        %v1889 = vmul.f32 %v1886, %v1872
        %v1890 = vmul.f32 %v1886, %v1873
        %v1891 = vmul.f32 %v1886, %v1874
        %v1892 = vmul.f32 %v1886, %v1875
        %v1893 = vmul.f32 %v1886, %v1876
        %v1894 = vmul.f32 %v1886, %v1877
        %v1895 = vmul.f32 %v1886, %v1878
        %v1896 = vmul.f32 %v1886, %v1879
        %v1897 = vmul.f32 %v1886, %v1880
        %v1898 = vmul.f32 %v1886, %v1881
        %v1899 = vmul.f32 %v1886, %v1882
        %v1900 = vmul.f32 %v1886, %v1883
        %v1901 = vmul.f32 %v1886, %v1884
        %v1902 = vmul.f32 %v1886, %v1885
        %v1903 = vadd.f32 %v1853, %v1887
        %v1904 = vadd.f32 %v1854, %v1888
        %v1905 = vadd.f32 %v1855, %v1889
        %v1906 = vadd.f32 %v1856, %v1890
        %v1907 = vadd.f32 %v1857, %v1891
        %v1908 = vadd.f32 %v1858, %v1892
        %v1909 = vadd.f32 %v1859, %v1893
        %v1910 = vadd.f32 %v1860, %v1894
        %v1911 = vadd.f32 %v1861, %v1895
        %v1912 = vadd.f32 %v1862, %v1896
        %v1913 = vadd.f32 %v1863, %v1897
        %v1914 = vadd.f32 %v1864, %v1898
        %v1915 = vadd.f32 %v1865, %v1899
        %v1916 = vadd.f32 %v1866, %v1900
        %v1917 = vadd.f32 %v1867, %v1901
        %v1918 = vadd.f32 %v1868, %v1902
        %s1919 = sld [smem:[#allocation6 + %s632]]
        %v1920 = vld [vmem:[%s1719 + $0x4] sm:$0xff]
        %v1921 = vld [vmem:[%s1719 + $0xc] sm:$0xff]
        %v1922 = vld [vmem:[%s1719 + $0x1c] sm:$0xff]
        %v1923 = vld [vmem:[%s1719 + $0x24] sm:$0xff]
        %v1924 = vld [vmem:[%s1719 + $0x34] sm:$0xff]
        %v1925 = vld [vmem:[%s1719 + $0x3c] sm:$0xff]
        %v1926 = vld [vmem:[%s1719 + $0x4c] sm:$0xff]
        %v1927 = vld [vmem:[%s1719 + $0x54] sm:$0xff]
        %v1928 = vld [vmem:[%s1719 + $0x64] sm:$0xff]
        %v1929 = vld [vmem:[%s1719 + $0x6c] sm:$0xff]
        %v1930 = vld [vmem:[%s1719 + $0x7c] sm:$0xff]
        %v1931 = vld [vmem:[%s1719 + $0x84] sm:$0xff]
        %v1932 = vld [vmem:[%s1719 + $0x94] sm:$0xff]
        %v1933 = vld [vmem:[%s1719 + $0x9c] sm:$0xff]
        %v1934 = vld [vmem:[%s1719 + $0xac] sm:$0xff]
        %v1935 = vld [vmem:[%s1719 + $0xb4] sm:$0xff]
        %v1936 = vstv %s1919
        %v1937 = vmul.f32 %v1936, %v1920
        %v1938 = vmul.f32 %v1936, %v1921
        %v1939 = vmul.f32 %v1936, %v1922
        %v1940 = vmul.f32 %v1936, %v1923
        %v1941 = vmul.f32 %v1936, %v1924
        %v1942 = vmul.f32 %v1936, %v1925
        %v1943 = vmul.f32 %v1936, %v1926
        %v1944 = vmul.f32 %v1936, %v1927
        %v1945 = vmul.f32 %v1936, %v1928
        %v1946 = vmul.f32 %v1936, %v1929
        %v1947 = vmul.f32 %v1936, %v1930
        %v1948 = vmul.f32 %v1936, %v1931
        %v1949 = vmul.f32 %v1936, %v1932
        %v1950 = vmul.f32 %v1936, %v1933
        %v1951 = vmul.f32 %v1936, %v1934
        %v1952 = vmul.f32 %v1936, %v1935
        %v1953 = vadd.f32 %v1903, %v1937
        %v1954 = vadd.f32 %v1904, %v1938
        %v1955 = vadd.f32 %v1905, %v1939
        %v1956 = vadd.f32 %v1906, %v1940
        %v1957 = vadd.f32 %v1907, %v1941
        %v1958 = vadd.f32 %v1908, %v1942
        %v1959 = vadd.f32 %v1909, %v1943
        %v1960 = vadd.f32 %v1910, %v1944
        %v1961 = vadd.f32 %v1911, %v1945
        %v1962 = vadd.f32 %v1912, %v1946
        %v1963 = vadd.f32 %v1913, %v1947
        %v1964 = vadd.f32 %v1914, %v1948
        %v1965 = vadd.f32 %v1915, %v1949
        %v1966 = vadd.f32 %v1916, %v1950
        %v1967 = vadd.f32 %v1917, %v1951
        %v1968 = vadd.f32 %v1918, %v1952
        %s1969 = sld [smem:[#allocation6 + %s683]]
        %s1970 = scalar_lea.vmem [#allocation2], 240
        %v1971 = vld [vmem:[%s1970] sm:$0xff]
        %v1972 = vld [vmem:[%s1970 + $0x8] sm:$0xff]
        %v1973 = vld [vmem:[%s1970 + $0x18] sm:$0xff]
        %v1974 = vld [vmem:[%s1970 + $0x20] sm:$0xff]
        %v1975 = vld [vmem:[%s1970 + $0x30] sm:$0xff]
        %v1976 = vld [vmem:[%s1970 + $0x38] sm:$0xff]
        %v1977 = vld [vmem:[%s1970 + $0x48] sm:$0xff]
        %v1978 = vld [vmem:[%s1970 + $0x50] sm:$0xff]
        %v1979 = vld [vmem:[%s1970 + $0x60] sm:$0xff]
        %v1980 = vld [vmem:[%s1970 + $0x68] sm:$0xff]
        %v1981 = vld [vmem:[%s1970 + $0x78] sm:$0xff]
        %v1982 = vld [vmem:[%s1970 + $0x80] sm:$0xff]
        %v1983 = vld [vmem:[%s1970 + $0x90] sm:$0xff]
        %v1984 = vld [vmem:[%s1970 + $0x98] sm:$0xff]
        %v1985 = vld [vmem:[%s1970 + $0xa8] sm:$0xff]
        %v1986 = vld [vmem:[%s1970 + $0xb0] sm:$0xff]
        %v1987 = vstv %s1969
        %v1988 = vmul.f32 %v1987, %v1971
        %v1989 = vmul.f32 %v1987, %v1972
        %v1990 = vmul.f32 %v1987, %v1973
        %v1991 = vmul.f32 %v1987, %v1974
        %v1992 = vmul.f32 %v1987, %v1975
        %v1993 = vmul.f32 %v1987, %v1976
        %v1994 = vmul.f32 %v1987, %v1977
        %v1995 = vmul.f32 %v1987, %v1978
        %v1996 = vmul.f32 %v1987, %v1979
        %v1997 = vmul.f32 %v1987, %v1980
        %v1998 = vmul.f32 %v1987, %v1981
        %v1999 = vmul.f32 %v1987, %v1982
        %v2000 = vmul.f32 %v1987, %v1983
        %v2001 = vmul.f32 %v1987, %v1984
        %v2002 = vmul.f32 %v1987, %v1985
        %v2003 = vmul.f32 %v1987, %v1986
        %v2004 = vadd.f32 %v1953, %v1988
        %v2005 = vadd.f32 %v1954, %v1989
        %v2006 = vadd.f32 %v1955, %v1990
        %v2007 = vadd.f32 %v1956, %v1991
        %v2008 = vadd.f32 %v1957, %v1992
        %v2009 = vadd.f32 %v1958, %v1993
        %v2010 = vadd.f32 %v1959, %v1994
        %v2011 = vadd.f32 %v1960, %v1995
        %v2012 = vadd.f32 %v1961, %v1996
        %v2013 = vadd.f32 %v1962, %v1997
        %v2014 = vadd.f32 %v1963, %v1998
        %v2015 = vadd.f32 %v1964, %v1999
        %v2016 = vadd.f32 %v1965, %v2000
        %v2017 = vadd.f32 %v1966, %v2001
        %v2018 = vadd.f32 %v1967, %v2002
        %v2019 = vadd.f32 %v1968, %v2003
        %s2020 = sld [smem:[#allocation6 + %s735]]
        %v2021 = vld [vmem:[%s1970 + $0x1] sm:$0xff]
        %v2022 = vld [vmem:[%s1970 + $0x9] sm:$0xff]
        %v2023 = vld [vmem:[%s1970 + $0x19] sm:$0xff]
        %v2024 = vld [vmem:[%s1970 + $0x21] sm:$0xff]
        %v2025 = vld [vmem:[%s1970 + $0x31] sm:$0xff]
        %v2026 = vld [vmem:[%s1970 + $0x39] sm:$0xff]
        %v2027 = vld [vmem:[%s1970 + $0x49] sm:$0xff]
        %v2028 = vld [vmem:[%s1970 + $0x51] sm:$0xff]
        %v2029 = vld [vmem:[%s1970 + $0x61] sm:$0xff]
        %v2030 = vld [vmem:[%s1970 + $0x69] sm:$0xff]
        %v2031 = vld [vmem:[%s1970 + $0x79] sm:$0xff]
        %v2032 = vld [vmem:[%s1970 + $0x81] sm:$0xff]
        %v2033 = vld [vmem:[%s1970 + $0x91] sm:$0xff]
        %v2034 = vld [vmem:[%s1970 + $0x99] sm:$0xff]
        %v2035 = vld [vmem:[%s1970 + $0xa9] sm:$0xff]
        %v2036 = vld [vmem:[%s1970 + $0xb1] sm:$0xff]
        %v2037 = vstv %s2020
        %v2038 = vmul.f32 %v2037, %v2021
        %v2039 = vmul.f32 %v2037, %v2022
        %v2040 = vmul.f32 %v2037, %v2023
        %v2041 = vmul.f32 %v2037, %v2024
        %v2042 = vmul.f32 %v2037, %v2025
        %v2043 = vmul.f32 %v2037, %v2026
        %v2044 = vmul.f32 %v2037, %v2027
        %v2045 = vmul.f32 %v2037, %v2028
        %v2046 = vmul.f32 %v2037, %v2029
        %v2047 = vmul.f32 %v2037, %v2030
        %v2048 = vmul.f32 %v2037, %v2031
        %v2049 = vmul.f32 %v2037, %v2032
        %v2050 = vmul.f32 %v2037, %v2033
        %v2051 = vmul.f32 %v2037, %v2034
        %v2052 = vmul.f32 %v2037, %v2035
        %v2053 = vmul.f32 %v2037, %v2036
        %v2054 = vadd.f32 %v2004, %v2038
        %v2055 = vadd.f32 %v2005, %v2039
        %v2056 = vadd.f32 %v2006, %v2040
        %v2057 = vadd.f32 %v2007, %v2041
        %v2058 = vadd.f32 %v2008, %v2042
        %v2059 = vadd.f32 %v2009, %v2043
        %v2060 = vadd.f32 %v2010, %v2044
        %v2061 = vadd.f32 %v2011, %v2045
        %v2062 = vadd.f32 %v2012, %v2046
        %v2063 = vadd.f32 %v2013, %v2047
        %v2064 = vadd.f32 %v2014, %v2048
        %v2065 = vadd.f32 %v2015, %v2049
        %v2066 = vadd.f32 %v2016, %v2050
        %v2067 = vadd.f32 %v2017, %v2051
        %v2068 = vadd.f32 %v2018, %v2052
        %v2069 = vadd.f32 %v2019, %v2053
        %s2070 = sld [smem:[#allocation6 + %s786]]
        %v2071 = vld [vmem:[%s1970 + $0x2] sm:$0xff]
        %v2072 = vld [vmem:[%s1970 + $0xa] sm:$0xff]
        %v2073 = vld [vmem:[%s1970 + $0x1a] sm:$0xff]
        %v2074 = vld [vmem:[%s1970 + $0x22] sm:$0xff]
        %v2075 = vld [vmem:[%s1970 + $0x32] sm:$0xff]
        %v2076 = vld [vmem:[%s1970 + $0x3a] sm:$0xff]
        %v2077 = vld [vmem:[%s1970 + $0x4a] sm:$0xff]
        %v2078 = vld [vmem:[%s1970 + $0x52] sm:$0xff]
        %v2079 = vld [vmem:[%s1970 + $0x62] sm:$0xff]
        %v2080 = vld [vmem:[%s1970 + $0x6a] sm:$0xff]
        %v2081 = vld [vmem:[%s1970 + $0x7a] sm:$0xff]
        %v2082 = vld [vmem:[%s1970 + $0x82] sm:$0xff]
        %v2083 = vld [vmem:[%s1970 + $0x92] sm:$0xff]
        %v2084 = vld [vmem:[%s1970 + $0x9a] sm:$0xff]
        %v2085 = vld [vmem:[%s1970 + $0xaa] sm:$0xff]
        %v2086 = vld [vmem:[%s1970 + $0xb2] sm:$0xff]
        %v2087 = vstv %s2070
        %v2088 = vmul.f32 %v2087, %v2071
        %v2089 = vmul.f32 %v2087, %v2072
        %v2090 = vmul.f32 %v2087, %v2073
        %v2091 = vmul.f32 %v2087, %v2074
        %v2092 = vmul.f32 %v2087, %v2075
        %v2093 = vmul.f32 %v2087, %v2076
        %v2094 = vmul.f32 %v2087, %v2077
        %v2095 = vmul.f32 %v2087, %v2078
        %v2096 = vmul.f32 %v2087, %v2079
        %v2097 = vmul.f32 %v2087, %v2080
        %v2098 = vmul.f32 %v2087, %v2081
        %v2099 = vmul.f32 %v2087, %v2082
        %v2100 = vmul.f32 %v2087, %v2083
        %v2101 = vmul.f32 %v2087, %v2084
        %v2102 = vmul.f32 %v2087, %v2085
        %v2103 = vmul.f32 %v2087, %v2086
        %v2104 = vadd.f32 %v2054, %v2088
        %v2105 = vadd.f32 %v2055, %v2089
        %v2106 = vadd.f32 %v2056, %v2090
        %v2107 = vadd.f32 %v2057, %v2091
        %v2108 = vadd.f32 %v2058, %v2092
        %v2109 = vadd.f32 %v2059, %v2093
        %v2110 = vadd.f32 %v2060, %v2094
        %v2111 = vadd.f32 %v2061, %v2095
        %v2112 = vadd.f32 %v2062, %v2096
        %v2113 = vadd.f32 %v2063, %v2097
        %v2114 = vadd.f32 %v2064, %v2098
        %v2115 = vadd.f32 %v2065, %v2099
        %v2116 = vadd.f32 %v2066, %v2100
        %v2117 = vadd.f32 %v2067, %v2101
        %v2118 = vadd.f32 %v2068, %v2102
        %v2119 = vadd.f32 %v2069, %v2103
        %s2120 = sld [smem:[#allocation6 + %s837]]
        %v2121 = vld [vmem:[%s1970 + $0x3] sm:$0xff]
        %v2122 = vld [vmem:[%s1970 + $0xb] sm:$0xff]
        %v2123 = vld [vmem:[%s1970 + $0x1b] sm:$0xff]
        %v2124 = vld [vmem:[%s1970 + $0x23] sm:$0xff]
        %v2125 = vld [vmem:[%s1970 + $0x33] sm:$0xff]
        %v2126 = vld [vmem:[%s1970 + $0x3b] sm:$0xff]
        %v2127 = vld [vmem:[%s1970 + $0x4b] sm:$0xff]
        %v2128 = vld [vmem:[%s1970 + $0x53] sm:$0xff]
        %v2129 = vld [vmem:[%s1970 + $0x63] sm:$0xff]
        %v2130 = vld [vmem:[%s1970 + $0x6b] sm:$0xff]
        %v2131 = vld [vmem:[%s1970 + $0x7b] sm:$0xff]
        %v2132 = vld [vmem:[%s1970 + $0x83] sm:$0xff]
        %v2133 = vld [vmem:[%s1970 + $0x93] sm:$0xff]
        %v2134 = vld [vmem:[%s1970 + $0x9b] sm:$0xff]
        %v2135 = vld [vmem:[%s1970 + $0xab] sm:$0xff]
        %v2136 = vld [vmem:[%s1970 + $0xb3] sm:$0xff]
        %v2137 = vstv %s2120
        %v2138 = vmul.f32 %v2137, %v2121
        %v2139 = vmul.f32 %v2137, %v2122
        %v2140 = vmul.f32 %v2137, %v2123
        %v2141 = vmul.f32 %v2137, %v2124
        %v2142 = vmul.f32 %v2137, %v2125
        %v2143 = vmul.f32 %v2137, %v2126
        %v2144 = vmul.f32 %v2137, %v2127
        %v2145 = vmul.f32 %v2137, %v2128
        %v2146 = vmul.f32 %v2137, %v2129
        %v2147 = vmul.f32 %v2137, %v2130
        %v2148 = vmul.f32 %v2137, %v2131
        %v2149 = vmul.f32 %v2137, %v2132
        %v2150 = vmul.f32 %v2137, %v2133
        %v2151 = vmul.f32 %v2137, %v2134
        %v2152 = vmul.f32 %v2137, %v2135
        %v2153 = vmul.f32 %v2137, %v2136
        %v2154 = vadd.f32 %v2104, %v2138
        %v2155 = vadd.f32 %v2105, %v2139
        %v2156 = vadd.f32 %v2106, %v2140
        %v2157 = vadd.f32 %v2107, %v2141
        %v2158 = vadd.f32 %v2108, %v2142
        %v2159 = vadd.f32 %v2109, %v2143
        %v2160 = vadd.f32 %v2110, %v2144
        %v2161 = vadd.f32 %v2111, %v2145
        %v2162 = vadd.f32 %v2112, %v2146
        %v2163 = vadd.f32 %v2113, %v2147
        %v2164 = vadd.f32 %v2114, %v2148
        %v2165 = vadd.f32 %v2115, %v2149
        %v2166 = vadd.f32 %v2116, %v2150
        %v2167 = vadd.f32 %v2117, %v2151
        %v2168 = vadd.f32 %v2118, %v2152
        %v2169 = vadd.f32 %v2119, %v2153
        %s2170 = sld [smem:[#allocation6 + %s888]]
        %v2171 = vld [vmem:[%s1970 + $0x4] sm:$0xff]
        %v2172 = vld [vmem:[%s1970 + $0xc] sm:$0xff]
        %v2173 = vld [vmem:[%s1970 + $0x1c] sm:$0xff]
        %v2174 = vld [vmem:[%s1970 + $0x24] sm:$0xff]
        %v2175 = vld [vmem:[%s1970 + $0x34] sm:$0xff]
        %v2176 = vld [vmem:[%s1970 + $0x3c] sm:$0xff]
        %v2177 = vld [vmem:[%s1970 + $0x4c] sm:$0xff]
        %v2178 = vld [vmem:[%s1970 + $0x54] sm:$0xff]
        %v2179 = vld [vmem:[%s1970 + $0x64] sm:$0xff]
        %v2180 = vld [vmem:[%s1970 + $0x6c] sm:$0xff]
        %v2181 = vld [vmem:[%s1970 + $0x7c] sm:$0xff]
        %v2182 = vld [vmem:[%s1970 + $0x84] sm:$0xff]
        %v2183 = vld [vmem:[%s1970 + $0x94] sm:$0xff]
        %v2184 = vld [vmem:[%s1970 + $0x9c] sm:$0xff]
        %v2185 = vld [vmem:[%s1970 + $0xac] sm:$0xff]
        %v2186 = vld [vmem:[%s1970 + $0xb4] sm:$0xff]
        %v2187 = vstv %s2170
        %v2188 = vmul.f32 %v2187, %v2171
        %v2189 = vmul.f32 %v2187, %v2172
        %v2190 = vmul.f32 %v2187, %v2173
        %v2191 = vmul.f32 %v2187, %v2174
        %v2192 = vmul.f32 %v2187, %v2175
        %v2193 = vmul.f32 %v2187, %v2176
        %v2194 = vmul.f32 %v2187, %v2177
        %v2195 = vmul.f32 %v2187, %v2178
        %v2196 = vmul.f32 %v2187, %v2179
        %v2197 = vmul.f32 %v2187, %v2180
        %v2198 = vmul.f32 %v2187, %v2181
        %v2199 = vmul.f32 %v2187, %v2182
        %v2200 = vmul.f32 %v2187, %v2183
        %v2201 = vmul.f32 %v2187, %v2184
        %v2202 = vmul.f32 %v2187, %v2185
        %v2203 = vmul.f32 %v2187, %v2186
        %v2204 = vadd.f32 %v2154, %v2188
        %v2205 = vadd.f32 %v2155, %v2189
        %v2206 = vadd.f32 %v2156, %v2190
        %v2207 = vadd.f32 %v2157, %v2191
        %v2208 = vadd.f32 %v2158, %v2192
        %v2209 = vadd.f32 %v2159, %v2193
        %v2210 = vadd.f32 %v2160, %v2194
        %v2211 = vadd.f32 %v2161, %v2195
        %v2212 = vadd.f32 %v2162, %v2196
        %v2213 = vadd.f32 %v2163, %v2197
        %v2214 = vadd.f32 %v2164, %v2198
        %v2215 = vadd.f32 %v2165, %v2199
        %v2216 = vadd.f32 %v2166, %v2200
        %v2217 = vadd.f32 %v2167, %v2201
        %v2218 = vadd.f32 %v2168, %v2202
        %v2219 = vadd.f32 %v2169, %v2203
        %s2220 = sld [smem:[#allocation6 + %s939]]
        %s2221 = scalar_lea.vmem [#allocation2], 264
        %v2222 = vld [vmem:[%s2221] sm:$0xff]
        %v2223 = vld [vmem:[%s2221 + $0x8] sm:$0xff]
        %v2224 = vld [vmem:[%s2221 + $0x18] sm:$0xff]
        %v2225 = vld [vmem:[%s2221 + $0x20] sm:$0xff]
        %v2226 = vld [vmem:[%s2221 + $0x30] sm:$0xff]
        %v2227 = vld [vmem:[%s2221 + $0x38] sm:$0xff]
        %v2228 = vld [vmem:[%s2221 + $0x48] sm:$0xff]
        %v2229 = vld [vmem:[%s2221 + $0x50] sm:$0xff]
        %v2230 = vld [vmem:[%s2221 + $0x60] sm:$0xff]
        %v2231 = vld [vmem:[%s2221 + $0x68] sm:$0xff]
        %v2232 = vld [vmem:[%s2221 + $0x78] sm:$0xff]
        %v2233 = vld [vmem:[%s2221 + $0x80] sm:$0xff]
        %v2234 = vld [vmem:[%s2221 + $0x90] sm:$0xff]
        %v2235 = vld [vmem:[%s2221 + $0x98] sm:$0xff]
        %v2236 = vld [vmem:[%s2221 + $0xa8] sm:$0xff]
        %v2237 = vld [vmem:[%s2221 + $0xb0] sm:$0xff]
        %v2238 = vstv %s2220
        %v2239 = vmul.f32 %v2238, %v2222
        %v2240 = vmul.f32 %v2238, %v2223
        %v2241 = vmul.f32 %v2238, %v2224
        %v2242 = vmul.f32 %v2238, %v2225
        %v2243 = vmul.f32 %v2238, %v2226
        %v2244 = vmul.f32 %v2238, %v2227
        %v2245 = vmul.f32 %v2238, %v2228
        %v2246 = vmul.f32 %v2238, %v2229
        %v2247 = vmul.f32 %v2238, %v2230
        %v2248 = vmul.f32 %v2238, %v2231
        %v2249 = vmul.f32 %v2238, %v2232
        %v2250 = vmul.f32 %v2238, %v2233
        %v2251 = vmul.f32 %v2238, %v2234
        %v2252 = vmul.f32 %v2238, %v2235
        %v2253 = vmul.f32 %v2238, %v2236
        %v2254 = vmul.f32 %v2238, %v2237
        %v2255 = vadd.f32 %v2204, %v2239
        %v2256 = vadd.f32 %v2205, %v2240
        %v2257 = vadd.f32 %v2206, %v2241
        %v2258 = vadd.f32 %v2207, %v2242
        %v2259 = vadd.f32 %v2208, %v2243
        %v2260 = vadd.f32 %v2209, %v2244
        %v2261 = vadd.f32 %v2210, %v2245
        %v2262 = vadd.f32 %v2211, %v2246
        %v2263 = vadd.f32 %v2212, %v2247
        %v2264 = vadd.f32 %v2213, %v2248
        %v2265 = vadd.f32 %v2214, %v2249
        %v2266 = vadd.f32 %v2215, %v2250
        %v2267 = vadd.f32 %v2216, %v2251
        %v2268 = vadd.f32 %v2217, %v2252
        %v2269 = vadd.f32 %v2218, %v2253
        %v2270 = vadd.f32 %v2219, %v2254
        %s2271 = sld [smem:[#allocation6 + %s991]]
        %v2272 = vld [vmem:[%s2221 + $0x1] sm:$0xff]
        %v2273 = vld [vmem:[%s2221 + $0x9] sm:$0xff]
        %v2274 = vld [vmem:[%s2221 + $0x19] sm:$0xff]
        %v2275 = vld [vmem:[%s2221 + $0x21] sm:$0xff]
        %v2276 = vld [vmem:[%s2221 + $0x31] sm:$0xff]
        %v2277 = vld [vmem:[%s2221 + $0x39] sm:$0xff]
        %v2278 = vld [vmem:[%s2221 + $0x49] sm:$0xff]
        %v2279 = vld [vmem:[%s2221 + $0x51] sm:$0xff]
        %v2280 = vld [vmem:[%s2221 + $0x61] sm:$0xff]
        %v2281 = vld [vmem:[%s2221 + $0x69] sm:$0xff]
        %v2282 = vld [vmem:[%s2221 + $0x79] sm:$0xff]
        %v2283 = vld [vmem:[%s2221 + $0x81] sm:$0xff]
        %v2284 = vld [vmem:[%s2221 + $0x91] sm:$0xff]
        %v2285 = vld [vmem:[%s2221 + $0x99] sm:$0xff]
        %v2286 = vld [vmem:[%s2221 + $0xa9] sm:$0xff]
        %v2287 = vld [vmem:[%s2221 + $0xb1] sm:$0xff]
        %v2288 = vstv %s2271
        %v2289 = vmul.f32 %v2288, %v2272
        %v2290 = vmul.f32 %v2288, %v2273
        %v2291 = vmul.f32 %v2288, %v2274
        %v2292 = vmul.f32 %v2288, %v2275
        %v2293 = vmul.f32 %v2288, %v2276
        %v2294 = vmul.f32 %v2288, %v2277
        %v2295 = vmul.f32 %v2288, %v2278
        %v2296 = vmul.f32 %v2288, %v2279
        %v2297 = vmul.f32 %v2288, %v2280
        %v2298 = vmul.f32 %v2288, %v2281
        %v2299 = vmul.f32 %v2288, %v2282
        %v2300 = vmul.f32 %v2288, %v2283
        %v2301 = vmul.f32 %v2288, %v2284
        %v2302 = vmul.f32 %v2288, %v2285
        %v2303 = vmul.f32 %v2288, %v2286
        %v2304 = vmul.f32 %v2288, %v2287
        %v2305 = vadd.f32 %v2255, %v2289
        %v2306 = vadd.f32 %v2256, %v2290
        %v2307 = vadd.f32 %v2257, %v2291
        %v2308 = vadd.f32 %v2258, %v2292
        %v2309 = vadd.f32 %v2259, %v2293
        %v2310 = vadd.f32 %v2260, %v2294
        %v2311 = vadd.f32 %v2261, %v2295
        %v2312 = vadd.f32 %v2262, %v2296
        %v2313 = vadd.f32 %v2263, %v2297
        %v2314 = vadd.f32 %v2264, %v2298
        %v2315 = vadd.f32 %v2265, %v2299
        %v2316 = vadd.f32 %v2266, %v2300
        %v2317 = vadd.f32 %v2267, %v2301
        %v2318 = vadd.f32 %v2268, %v2302
        %v2319 = vadd.f32 %v2269, %v2303
        %v2320 = vadd.f32 %v2270, %v2304
        %s2321 = sld [smem:[#allocation6 + %s1042]]
        %v2322 = vld [vmem:[%s2221 + $0x2] sm:$0xff]
        %v2323 = vld [vmem:[%s2221 + $0xa] sm:$0xff]
        %v2324 = vld [vmem:[%s2221 + $0x1a] sm:$0xff]
        %v2325 = vld [vmem:[%s2221 + $0x22] sm:$0xff]
        %v2326 = vld [vmem:[%s2221 + $0x32] sm:$0xff]
        %v2327 = vld [vmem:[%s2221 + $0x3a] sm:$0xff]
        %v2328 = vld [vmem:[%s2221 + $0x4a] sm:$0xff]
        %v2329 = vld [vmem:[%s2221 + $0x52] sm:$0xff]
        %v2330 = vld [vmem:[%s2221 + $0x62] sm:$0xff]
        %v2331 = vld [vmem:[%s2221 + $0x6a] sm:$0xff]
        %v2332 = vld [vmem:[%s2221 + $0x7a] sm:$0xff]
        %v2333 = vld [vmem:[%s2221 + $0x82] sm:$0xff]
        %v2334 = vld [vmem:[%s2221 + $0x92] sm:$0xff]
        %v2335 = vld [vmem:[%s2221 + $0x9a] sm:$0xff]
        %v2336 = vld [vmem:[%s2221 + $0xaa] sm:$0xff]
        %v2337 = vld [vmem:[%s2221 + $0xb2] sm:$0xff]
        %v2338 = vstv %s2321
        %v2339 = vmul.f32 %v2338, %v2322
        %v2340 = vmul.f32 %v2338, %v2323
        %v2341 = vmul.f32 %v2338, %v2324
        %v2342 = vmul.f32 %v2338, %v2325
        %v2343 = vmul.f32 %v2338, %v2326
        %v2344 = vmul.f32 %v2338, %v2327
        %v2345 = vmul.f32 %v2338, %v2328
        %v2346 = vmul.f32 %v2338, %v2329
        %v2347 = vmul.f32 %v2338, %v2330
        %v2348 = vmul.f32 %v2338, %v2331
        %v2349 = vmul.f32 %v2338, %v2332
        %v2350 = vmul.f32 %v2338, %v2333
        %v2351 = vmul.f32 %v2338, %v2334
        %v2352 = vmul.f32 %v2338, %v2335
        %v2353 = vmul.f32 %v2338, %v2336
        %v2354 = vmul.f32 %v2338, %v2337
        %v2355 = vadd.f32 %v2305, %v2339
        %v2356 = vadd.f32 %v2306, %v2340
        %v2357 = vadd.f32 %v2307, %v2341
        %v2358 = vadd.f32 %v2308, %v2342
        %v2359 = vadd.f32 %v2309, %v2343
        %v2360 = vadd.f32 %v2310, %v2344
        %v2361 = vadd.f32 %v2311, %v2345
        %v2362 = vadd.f32 %v2312, %v2346
        %v2363 = vadd.f32 %v2313, %v2347
        %v2364 = vadd.f32 %v2314, %v2348
        %v2365 = vadd.f32 %v2315, %v2349
        %v2366 = vadd.f32 %v2316, %v2350
        %v2367 = vadd.f32 %v2317, %v2351
        %v2368 = vadd.f32 %v2318, %v2352
        %v2369 = vadd.f32 %v2319, %v2353
        %v2370 = vadd.f32 %v2320, %v2354
        %s2371 = sld [smem:[#allocation6 + %s1093]]
        %v2372 = vld [vmem:[%s2221 + $0x3] sm:$0xff]
        %v2373 = vld [vmem:[%s2221 + $0xb] sm:$0xff]
        %v2374 = vld [vmem:[%s2221 + $0x1b] sm:$0xff]
        %v2375 = vld [vmem:[%s2221 + $0x23] sm:$0xff]
        %v2376 = vld [vmem:[%s2221 + $0x33] sm:$0xff]
        %v2377 = vld [vmem:[%s2221 + $0x3b] sm:$0xff]
        %v2378 = vld [vmem:[%s2221 + $0x4b] sm:$0xff]
        %v2379 = vld [vmem:[%s2221 + $0x53] sm:$0xff]
        %v2380 = vld [vmem:[%s2221 + $0x63] sm:$0xff]
        %v2381 = vld [vmem:[%s2221 + $0x6b] sm:$0xff]
        %v2382 = vld [vmem:[%s2221 + $0x7b] sm:$0xff]
        %v2383 = vld [vmem:[%s2221 + $0x83] sm:$0xff]
        %v2384 = vld [vmem:[%s2221 + $0x93] sm:$0xff]
        %v2385 = vld [vmem:[%s2221 + $0x9b] sm:$0xff]
        %v2386 = vld [vmem:[%s2221 + $0xab] sm:$0xff]
        %v2387 = vld [vmem:[%s2221 + $0xb3] sm:$0xff]
        %v2388 = vstv %s2371
        %v2389 = vmul.f32 %v2388, %v2372
        %v2390 = vmul.f32 %v2388, %v2373
        %v2391 = vmul.f32 %v2388, %v2374
        %v2392 = vmul.f32 %v2388, %v2375
        %v2393 = vmul.f32 %v2388, %v2376
        %v2394 = vmul.f32 %v2388, %v2377
        %v2395 = vmul.f32 %v2388, %v2378
        %v2396 = vmul.f32 %v2388, %v2379
        %v2397 = vmul.f32 %v2388, %v2380
        %v2398 = vmul.f32 %v2388, %v2381
        %v2399 = vmul.f32 %v2388, %v2382
        %v2400 = vmul.f32 %v2388, %v2383
        %v2401 = vmul.f32 %v2388, %v2384
        %v2402 = vmul.f32 %v2388, %v2385
        %v2403 = vmul.f32 %v2388, %v2386
        %v2404 = vmul.f32 %v2388, %v2387
        %v2405 = vadd.f32 %v2355, %v2389
        %v2406 = vadd.f32 %v2356, %v2390
        %v2407 = vadd.f32 %v2357, %v2391
        %v2408 = vadd.f32 %v2358, %v2392
        %v2409 = vadd.f32 %v2359, %v2393
        %v2410 = vadd.f32 %v2360, %v2394
        %v2411 = vadd.f32 %v2361, %v2395
        %v2412 = vadd.f32 %v2362, %v2396
        %v2413 = vadd.f32 %v2363, %v2397
        %v2414 = vadd.f32 %v2364, %v2398
        %v2415 = vadd.f32 %v2365, %v2399
        %v2416 = vadd.f32 %v2366, %v2400
        %v2417 = vadd.f32 %v2367, %v2401
        %v2418 = vadd.f32 %v2368, %v2402
        %v2419 = vadd.f32 %v2369, %v2403
        %v2420 = vadd.f32 %v2370, %v2404
        %s2421 = sld [smem:[#allocation6 + %s1144]]
        %v2422 = vld [vmem:[%s2221 + $0x4] sm:$0xff]
        %v2423 = vld [vmem:[%s2221 + $0xc] sm:$0xff]
        %v2424 = vld [vmem:[%s2221 + $0x1c] sm:$0xff]
        %v2425 = vld [vmem:[%s2221 + $0x24] sm:$0xff]
        %v2426 = vld [vmem:[%s2221 + $0x34] sm:$0xff]
        %v2427 = vld [vmem:[%s2221 + $0x3c] sm:$0xff]
        %v2428 = vld [vmem:[%s2221 + $0x4c] sm:$0xff]
        %v2429 = vld [vmem:[%s2221 + $0x54] sm:$0xff]
        %v2430 = vld [vmem:[%s2221 + $0x64] sm:$0xff]
        %v2431 = vld [vmem:[%s2221 + $0x6c] sm:$0xff]
        %v2432 = vld [vmem:[%s2221 + $0x7c] sm:$0xff]
        %v2433 = vld [vmem:[%s2221 + $0x84] sm:$0xff]
        %v2434 = vld [vmem:[%s2221 + $0x94] sm:$0xff]
        %v2435 = vld [vmem:[%s2221 + $0x9c] sm:$0xff]
        %v2436 = vld [vmem:[%s2221 + $0xac] sm:$0xff]
        %v2437 = vld [vmem:[%s2221 + $0xb4] sm:$0xff]
        %v2438 = vstv %s2421
        %v2439 = vmul.f32 %v2438, %v2422
        %v2440 = vmul.f32 %v2438, %v2423
        %v2441 = vmul.f32 %v2438, %v2424
        %v2442 = vmul.f32 %v2438, %v2425
        %v2443 = vmul.f32 %v2438, %v2426
        %v2444 = vmul.f32 %v2438, %v2427
        %v2445 = vmul.f32 %v2438, %v2428
        %v2446 = vmul.f32 %v2438, %v2429
        %v2447 = vmul.f32 %v2438, %v2430
        %v2448 = vmul.f32 %v2438, %v2431
        %v2449 = vmul.f32 %v2438, %v2432
        %v2450 = vmul.f32 %v2438, %v2433
        %v2451 = vmul.f32 %v2438, %v2434
        %v2452 = vmul.f32 %v2438, %v2435
        %v2453 = vmul.f32 %v2438, %v2436
        %v2454 = vmul.f32 %v2438, %v2437
        %v2455 = vadd.f32 %v2405, %v2439
        %v2456 = vadd.f32 %v2406, %v2440
        %v2457 = vadd.f32 %v2407, %v2441
        %v2458 = vadd.f32 %v2408, %v2442
        %v2459 = vadd.f32 %v2409, %v2443
        %v2460 = vadd.f32 %v2410, %v2444
        %v2461 = vadd.f32 %v2411, %v2445
        %v2462 = vadd.f32 %v2412, %v2446
        %v2463 = vadd.f32 %v2413, %v2447
        %v2464 = vadd.f32 %v2414, %v2448
        %v2465 = vadd.f32 %v2415, %v2449
        %v2466 = vadd.f32 %v2416, %v2450
        %v2467 = vadd.f32 %v2417, %v2451
        %v2468 = vadd.f32 %v2418, %v2452
        %v2469 = vadd.f32 %v2419, %v2453
        %v2470 = vadd.f32 %v2420, %v2454
        %s2471 = sld [smem:[#allocation6 + %s1195]]
        %s2472 = scalar_lea.vmem [#allocation2], 288
        %v2473 = vld [vmem:[%s2472] sm:$0xff]
        %v2474 = vld [vmem:[%s2472 + $0x8] sm:$0xff]
        %v2475 = vld [vmem:[%s2472 + $0x18] sm:$0xff]
        %v2476 = vld [vmem:[%s2472 + $0x20] sm:$0xff]
        %v2477 = vld [vmem:[%s2472 + $0x30] sm:$0xff]
        %v2478 = vld [vmem:[%s2472 + $0x38] sm:$0xff]
        %v2479 = vld [vmem:[%s2472 + $0x48] sm:$0xff]
        %v2480 = vld [vmem:[%s2472 + $0x50] sm:$0xff]
        %v2481 = vld [vmem:[%s2472 + $0x60] sm:$0xff]
        %v2482 = vld [vmem:[%s2472 + $0x68] sm:$0xff]
        %v2483 = vld [vmem:[%s2472 + $0x78] sm:$0xff]
        %v2484 = vld [vmem:[%s2472 + $0x80] sm:$0xff]
        %v2485 = vld [vmem:[%s2472 + $0x90] sm:$0xff]
        %v2486 = vld [vmem:[%s2472 + $0x98] sm:$0xff]
        %v2487 = vld [vmem:[%s2472 + $0xa8] sm:$0xff]
        %v2488 = vld [vmem:[%s2472 + $0xb0] sm:$0xff]
        %v2489 = vstv %s2471
        %v2490 = vmul.f32 %v2489, %v2473
        %v2491 = vmul.f32 %v2489, %v2474
        %v2492 = vmul.f32 %v2489, %v2475
        %v2493 = vmul.f32 %v2489, %v2476
        %v2494 = vmul.f32 %v2489, %v2477
        %v2495 = vmul.f32 %v2489, %v2478
        %v2496 = vmul.f32 %v2489, %v2479
        %v2497 = vmul.f32 %v2489, %v2480
        %v2498 = vmul.f32 %v2489, %v2481
        %v2499 = vmul.f32 %v2489, %v2482
        %v2500 = vmul.f32 %v2489, %v2483
        %v2501 = vmul.f32 %v2489, %v2484
        %v2502 = vmul.f32 %v2489, %v2485
        %v2503 = vmul.f32 %v2489, %v2486
        %v2504 = vmul.f32 %v2489, %v2487
        %v2505 = vmul.f32 %v2489, %v2488
        %v2506 = vadd.f32 %v2455, %v2490
        %v2507 = vadd.f32 %v2456, %v2491
        %v2508 = vadd.f32 %v2457, %v2492
        %v2509 = vadd.f32 %v2458, %v2493
        %v2510 = vadd.f32 %v2459, %v2494
        %v2511 = vadd.f32 %v2460, %v2495
        %v2512 = vadd.f32 %v2461, %v2496
        %v2513 = vadd.f32 %v2462, %v2497
        %v2514 = vadd.f32 %v2463, %v2498
        %v2515 = vadd.f32 %v2464, %v2499
        %v2516 = vadd.f32 %v2465, %v2500
        %v2517 = vadd.f32 %v2466, %v2501
        %v2518 = vadd.f32 %v2467, %v2502
        %v2519 = vadd.f32 %v2468, %v2503
        %v2520 = vadd.f32 %v2469, %v2504
        %v2521 = vadd.f32 %v2470, %v2505
        %s2522 = sld [smem:[#allocation6 + %s1247]]
        %v2523 = vld [vmem:[%s2472 + $0x1] sm:$0xff]
        %v2524 = vld [vmem:[%s2472 + $0x9] sm:$0xff]
        %v2525 = vld [vmem:[%s2472 + $0x19] sm:$0xff]
        %v2526 = vld [vmem:[%s2472 + $0x21] sm:$0xff]
        %v2527 = vld [vmem:[%s2472 + $0x31] sm:$0xff]
        %v2528 = vld [vmem:[%s2472 + $0x39] sm:$0xff]
        %v2529 = vld [vmem:[%s2472 + $0x49] sm:$0xff]
        %v2530 = vld [vmem:[%s2472 + $0x51] sm:$0xff]
        %v2531 = vld [vmem:[%s2472 + $0x61] sm:$0xff]
        %v2532 = vld [vmem:[%s2472 + $0x69] sm:$0xff]
        %v2533 = vld [vmem:[%s2472 + $0x79] sm:$0xff]
        %v2534 = vld [vmem:[%s2472 + $0x81] sm:$0xff]
        %v2535 = vld [vmem:[%s2472 + $0x91] sm:$0xff]
        %v2536 = vld [vmem:[%s2472 + $0x99] sm:$0xff]
        %v2537 = vld [vmem:[%s2472 + $0xa9] sm:$0xff]
        %v2538 = vld [vmem:[%s2472 + $0xb1] sm:$0xff]
        %v2539 = vstv %s2522
        %v2540 = vmul.f32 %v2539, %v2523
        %v2541 = vmul.f32 %v2539, %v2524
        %v2542 = vmul.f32 %v2539, %v2525
        %v2543 = vmul.f32 %v2539, %v2526
        %v2544 = vmul.f32 %v2539, %v2527
        %v2545 = vmul.f32 %v2539, %v2528
        %v2546 = vmul.f32 %v2539, %v2529
        %v2547 = vmul.f32 %v2539, %v2530
        %v2548 = vmul.f32 %v2539, %v2531
        %v2549 = vmul.f32 %v2539, %v2532
        %v2550 = vmul.f32 %v2539, %v2533
        %v2551 = vmul.f32 %v2539, %v2534
        %v2552 = vmul.f32 %v2539, %v2535
        %v2553 = vmul.f32 %v2539, %v2536
        %v2554 = vmul.f32 %v2539, %v2537
        %v2555 = vmul.f32 %v2539, %v2538
        %v2556 = vadd.f32 %v2506, %v2540
        %v2557 = vadd.f32 %v2507, %v2541
        %v2558 = vadd.f32 %v2508, %v2542
        %v2559 = vadd.f32 %v2509, %v2543
        %v2560 = vadd.f32 %v2510, %v2544
        %v2561 = vadd.f32 %v2511, %v2545
        %v2562 = vadd.f32 %v2512, %v2546
        %v2563 = vadd.f32 %v2513, %v2547
        %v2564 = vadd.f32 %v2514, %v2548
        %v2565 = vadd.f32 %v2515, %v2549
        %v2566 = vadd.f32 %v2516, %v2550
        %v2567 = vadd.f32 %v2517, %v2551
        %v2568 = vadd.f32 %v2518, %v2552
        %v2569 = vadd.f32 %v2519, %v2553
        %v2570 = vadd.f32 %v2520, %v2554
        %v2571 = vadd.f32 %v2521, %v2555
        %s2572 = sld [smem:[#allocation6 + %s1298]]
        %v2573 = vld [vmem:[%s2472 + $0x2] sm:$0xff]
        %v2574 = vld [vmem:[%s2472 + $0xa] sm:$0xff]
        %v2575 = vld [vmem:[%s2472 + $0x1a] sm:$0xff]
        %v2576 = vld [vmem:[%s2472 + $0x22] sm:$0xff]
        %v2577 = vld [vmem:[%s2472 + $0x32] sm:$0xff]
        %v2578 = vld [vmem:[%s2472 + $0x3a] sm:$0xff]
        %v2579 = vld [vmem:[%s2472 + $0x4a] sm:$0xff]
        %v2580 = vld [vmem:[%s2472 + $0x52] sm:$0xff]
        %v2581 = vld [vmem:[%s2472 + $0x62] sm:$0xff]
        %v2582 = vld [vmem:[%s2472 + $0x6a] sm:$0xff]
        %v2583 = vld [vmem:[%s2472 + $0x7a] sm:$0xff]
        %v2584 = vld [vmem:[%s2472 + $0x82] sm:$0xff]
        %v2585 = vld [vmem:[%s2472 + $0x92] sm:$0xff]
        %v2586 = vld [vmem:[%s2472 + $0x9a] sm:$0xff]
        %v2587 = vld [vmem:[%s2472 + $0xaa] sm:$0xff]
        %v2588 = vld [vmem:[%s2472 + $0xb2] sm:$0xff]
        %v2589 = vstv %s2572
        %v2590 = vmul.f32 %v2589, %v2573
        %v2591 = vmul.f32 %v2589, %v2574
        %v2592 = vmul.f32 %v2589, %v2575
        %v2593 = vmul.f32 %v2589, %v2576
        %v2594 = vmul.f32 %v2589, %v2577
        %v2595 = vmul.f32 %v2589, %v2578
        %v2596 = vmul.f32 %v2589, %v2579
        %v2597 = vmul.f32 %v2589, %v2580
        %v2598 = vmul.f32 %v2589, %v2581
        %v2599 = vmul.f32 %v2589, %v2582
        %v2600 = vmul.f32 %v2589, %v2583
        %v2601 = vmul.f32 %v2589, %v2584
        %v2602 = vmul.f32 %v2589, %v2585
        %v2603 = vmul.f32 %v2589, %v2586
        %v2604 = vmul.f32 %v2589, %v2587
        %v2605 = vmul.f32 %v2589, %v2588
        %v2606 = vadd.f32 %v2556, %v2590
        %v2607 = vadd.f32 %v2557, %v2591
        %v2608 = vadd.f32 %v2558, %v2592
        %v2609 = vadd.f32 %v2559, %v2593
        %v2610 = vadd.f32 %v2560, %v2594
        %v2611 = vadd.f32 %v2561, %v2595
        %v2612 = vadd.f32 %v2562, %v2596
        %v2613 = vadd.f32 %v2563, %v2597
        %v2614 = vadd.f32 %v2564, %v2598
        %v2615 = vadd.f32 %v2565, %v2599
        %v2616 = vadd.f32 %v2566, %v2600
        %v2617 = vadd.f32 %v2567, %v2601
        %v2618 = vadd.f32 %v2568, %v2602
        %v2619 = vadd.f32 %v2569, %v2603
        %v2620 = vadd.f32 %v2570, %v2604
        %v2621 = vadd.f32 %v2571, %v2605
        %s2622 = sld [smem:[#allocation6 + %s1349]]
        %v2623 = vld [vmem:[%s2472 + $0x3] sm:$0xff]
        %v2624 = vld [vmem:[%s2472 + $0xb] sm:$0xff]
        %v2625 = vld [vmem:[%s2472 + $0x1b] sm:$0xff]
        %v2626 = vld [vmem:[%s2472 + $0x23] sm:$0xff]
        %v2627 = vld [vmem:[%s2472 + $0x33] sm:$0xff]
        %v2628 = vld [vmem:[%s2472 + $0x3b] sm:$0xff]
        %v2629 = vld [vmem:[%s2472 + $0x4b] sm:$0xff]
        %v2630 = vld [vmem:[%s2472 + $0x53] sm:$0xff]
        %v2631 = vld [vmem:[%s2472 + $0x63] sm:$0xff]
        %v2632 = vld [vmem:[%s2472 + $0x6b] sm:$0xff]
        %v2633 = vld [vmem:[%s2472 + $0x7b] sm:$0xff]
        %v2634 = vld [vmem:[%s2472 + $0x83] sm:$0xff]
        %v2635 = vld [vmem:[%s2472 + $0x93] sm:$0xff]
        %v2636 = vld [vmem:[%s2472 + $0x9b] sm:$0xff]
        %v2637 = vld [vmem:[%s2472 + $0xab] sm:$0xff]
        %v2638 = vld [vmem:[%s2472 + $0xb3] sm:$0xff]
        %v2639 = vstv %s2622
        %v2640 = vmul.f32 %v2639, %v2623
        %v2641 = vmul.f32 %v2639, %v2624
        %v2642 = vmul.f32 %v2639, %v2625
        %v2643 = vmul.f32 %v2639, %v2626
        %v2644 = vmul.f32 %v2639, %v2627
        %v2645 = vmul.f32 %v2639, %v2628
        %v2646 = vmul.f32 %v2639, %v2629
        %v2647 = vmul.f32 %v2639, %v2630
        %v2648 = vmul.f32 %v2639, %v2631
        %v2649 = vmul.f32 %v2639, %v2632
        %v2650 = vmul.f32 %v2639, %v2633
        %v2651 = vmul.f32 %v2639, %v2634
        %v2652 = vmul.f32 %v2639, %v2635
        %v2653 = vmul.f32 %v2639, %v2636
        %v2654 = vmul.f32 %v2639, %v2637
        %v2655 = vmul.f32 %v2639, %v2638
        %v2656 = vadd.f32 %v2606, %v2640
        %v2657 = vadd.f32 %v2607, %v2641
        %v2658 = vadd.f32 %v2608, %v2642
        %v2659 = vadd.f32 %v2609, %v2643
        %v2660 = vadd.f32 %v2610, %v2644
        %v2661 = vadd.f32 %v2611, %v2645
        %v2662 = vadd.f32 %v2612, %v2646
        %v2663 = vadd.f32 %v2613, %v2647
        %v2664 = vadd.f32 %v2614, %v2648
        %v2665 = vadd.f32 %v2615, %v2649
        %v2666 = vadd.f32 %v2616, %v2650
        %v2667 = vadd.f32 %v2617, %v2651
        %v2668 = vadd.f32 %v2618, %v2652
        %v2669 = vadd.f32 %v2619, %v2653
        %v2670 = vadd.f32 %v2620, %v2654
        %v2671 = vadd.f32 %v2621, %v2655
        %s2672 = sld [smem:[#allocation6 + %s1400]]
        %v2673 = vld [vmem:[%s2472 + $0x4] sm:$0xff]
        %v2674 = vld [vmem:[%s2472 + $0xc] sm:$0xff]
        %v2675 = vld [vmem:[%s2472 + $0x1c] sm:$0xff]
        %v2676 = vld [vmem:[%s2472 + $0x24] sm:$0xff]
        %v2677 = vld [vmem:[%s2472 + $0x34] sm:$0xff]
        %v2678 = vld [vmem:[%s2472 + $0x3c] sm:$0xff]
        %v2679 = vld [vmem:[%s2472 + $0x4c] sm:$0xff]
        %v2680 = vld [vmem:[%s2472 + $0x54] sm:$0xff]
        %v2681 = vld [vmem:[%s2472 + $0x64] sm:$0xff]
        %v2682 = vld [vmem:[%s2472 + $0x6c] sm:$0xff]
        %v2683 = vld [vmem:[%s2472 + $0x7c] sm:$0xff]
        %v2684 = vld [vmem:[%s2472 + $0x84] sm:$0xff]
        %v2685 = vld [vmem:[%s2472 + $0x94] sm:$0xff]
        %v2686 = vld [vmem:[%s2472 + $0x9c] sm:$0xff]
        %v2687 = vld [vmem:[%s2472 + $0xac] sm:$0xff]
        %v2688 = vld [vmem:[%s2472 + $0xb4] sm:$0xff]
        %v2689 = vstv %s2672
        %v2690 = vmul.f32 %v2689, %v2673
        %v2691 = vmul.f32 %v2689, %v2674
        %v2692 = vmul.f32 %v2689, %v2675
        %v2693 = vmul.f32 %v2689, %v2676
        %v2694 = vmul.f32 %v2689, %v2677
        %v2695 = vmul.f32 %v2689, %v2678
        %v2696 = vmul.f32 %v2689, %v2679
        %v2697 = vmul.f32 %v2689, %v2680
        %v2698 = vmul.f32 %v2689, %v2681
        %v2699 = vmul.f32 %v2689, %v2682
        %v2700 = vmul.f32 %v2689, %v2683
        %v2701 = vmul.f32 %v2689, %v2684
        %v2702 = vmul.f32 %v2689, %v2685
        %v2703 = vmul.f32 %v2689, %v2686
        %v2704 = vmul.f32 %v2689, %v2687
        %v2705 = vmul.f32 %v2689, %v2688
        %v2706 = vadd.f32 %v2656, %v2690
        %v2707 = vadd.f32 %v2657, %v2691
        %v2708 = vadd.f32 %v2658, %v2692
        %v2709 = vadd.f32 %v2659, %v2693
        %v2710 = vadd.f32 %v2660, %v2694
        %v2711 = vadd.f32 %v2661, %v2695
        %v2712 = vadd.f32 %v2662, %v2696
        %v2713 = vadd.f32 %v2663, %v2697
        %v2714 = vadd.f32 %v2664, %v2698
        %v2715 = vadd.f32 %v2665, %v2699
        %v2716 = vadd.f32 %v2666, %v2700
        %v2717 = vadd.f32 %v2667, %v2701
        %v2718 = vadd.f32 %v2668, %v2702
        %v2719 = vadd.f32 %v2669, %v2703
        %v2720 = vadd.f32 %v2670, %v2704
        %v2721 = vadd.f32 %v2671, %v2705
        %s2722 = scalar_lea.vmem %s171, 128 [#allocation7]
        %2723 = vst [vmem:[%s2722] sm:$0xff] %v2706
        %2724 = vst [vmem:[%s2722 + $0x8] sm:$0xff] %v2707
        %2725 = vst [vmem:[%s2722 + $0x10] sm:$0xff] %v2708
        %2726 = vst [vmem:[%s2722 + $0x18] sm:$0xff] %v2709
        %2727 = vst [vmem:[%s2722 + $0x20] sm:$0xff] %v2710
        %2728 = vst [vmem:[%s2722 + $0x28] sm:$0xff] %v2711
        %2729 = vst [vmem:[%s2722 + $0x30] sm:$0xff] %v2712
        %2730 = vst [vmem:[%s2722 + $0x38] sm:$0xff] %v2713
        %2731 = vst [vmem:[%s2722 + $0x40] sm:$0xff] %v2714
        %2732 = vst [vmem:[%s2722 + $0x48] sm:$0xff] %v2715
        %2733 = vst [vmem:[%s2722 + $0x50] sm:$0xff] %v2716
        %2734 = vst [vmem:[%s2722 + $0x58] sm:$0xff] %v2717
        %2735 = vst [vmem:[%s2722 + $0x60] sm:$0xff] %v2718
        %2736 = vst [vmem:[%s2722 + $0x68] sm:$0xff] %v2719
        %2737 = vst [vmem:[%s2722 + $0x70] sm:$0xff] %v2720
        %2738 = vst [vmem:[%s2722 + $0x78] sm:$0xff] %v2721
        %s2739 = sand.u32 %s87, 1
        %s2740 = scalar_lea.sflag [#allocation4], %s2739
        %s2741 = sand.u32 %s87, 1
        %s2742 = smul.addr %s2741, 256
        %s2743 = scalar_lea.vmem [#allocation7], %s2742
        // Predicated region
        $region37: #{tpu_custom_call.1} parent=27 // pred_check
          %p2744 = pneg %p97
        $region38: #{tpu_custom_call.1} parent=27 // pred_check_branch
          %2746 = sbr.rel (%p2744) target = $region40
        $region39: #{tpu_custom_call.1} parent=27 // pred_region
          %s2748 = ssub.s32 4096, 4096
          %2749 = vsyncadd %s2740, %s2748
          %s2750 = smul.addr %s23, 32
          %s2751 = sadd.s32 %s22, %s2750
          %s2752 = smul.addr %s2751, 128
          %s2753 = scalar_lea.hbm %s2, %s2752
          %s2754 = sshll.u32 %s2743, 4
          %s2755 = int_to_ptr.vmem [resolvable:$true] %s2754
          %2760 = dma.vmem_to_hbm [thread:$0]  %s2755, 4096, %s2753, %s2740, 128, 128, 8
        $region40: #{tpu_custom_call.1} parent=27 // pred_fallthru
          _
      $region28: #{tpu_custom_call.1} parent=5 // pred_fallthru
        _
      %p2761 = scmp.le.s32.totalorder 2, %s13
      // Predicated region
      $region41: #{tpu_custom_call.1} parent=5 // pred_check
        %p2762 = pneg %p2761
      $region42: #{tpu_custom_call.1} parent=5 // pred_check_branch
        %2764 = sbr.rel (%p2762) target = $region44
      $region43: #{tpu_custom_call.1} parent=5 // pred_region
        %s2765 = ssub.s32 %s13, 2
        // Predicated region
        $region45: #{tpu_custom_call.1} parent=43 // pred_check
          %p2766 = pneg %p103
        $region46: #{tpu_custom_call.1} parent=43 // pred_check_branch
          %2768 = sbr.rel (%p2766) target = $region48
        $region47: #{tpu_custom_call.1} parent=43 // pred_region
          %s2769 = sand.u32 %s88, 1
          %s2770 = scalar_lea.sflag [#allocation4], %s2769
          %s2771 = sand.u32 %s88, 1
          %s2772 = smul.addr %s2771, 256
          %s2773 = scalar_lea.vmem [#allocation7], %s2772
          %2774 = dma.done %s2770, 4096
        $region48: #{tpu_custom_call.1} parent=43 // pred_fallthru
          _
      $region44: #{tpu_custom_call.1} parent=5 // pred_fallthru
        _
    $region6: #{tpu_custom_call.1} parent=1 // loop_footer
      %s17 = sadd.s32 1, %s13
    $region7: #{tpu_custom_call.1} parent=1 // loop_footer_branch
      %12 = sbr.rel target = $region3
    $region8: #{tpu_custom_call.1} parent=1 // loop_exit
      _
    %2775 = vsyncpa [#allocation3], 1
    %s2776 = scalar_lea.sflag [#allocation3], 1
    %2777 = vsyncpa %s2776, 1
    %2778 = vsyncpa [#allocation4], 1
    %s2779 = scalar_lea.sflag [#allocation4], 1
    %2780 = vsyncpa %s2779, 1
    %2781 = vsyncpa [#allocation5], 1
    %s2782 = scalar_lea.sflag [#allocation5], 1
    %2783 = vsyncpa %s2782, 1

</llo_original>
